<compile_context>
chip_gen: v7x
topology: tpu7x:2x2x1
jax: 0.10.0
libtpu: 0.0.40
codegen_flags: <defaults>
</compile_context>

<pallas_src>
import numpy as np
import jax
import jax.numpy as jnp
from jax.experimental import pallas as pl
from jax.experimental.pallas import tpu as pltpu

# ----------------------- synthetic "cfg" values -----------------------------
IMG_FEAT_DIM = 16                            # cfg.img_feat_dim
HANDMESH_FEAT_DIM = 4                        # cfg.handmesh_feat_dim_from_spconv
MESH_FEAT_DIM = 4 * HANDMESH_FEAT_DIM + 1    # 4*D + 1 (the +1 is the z coord)
NUM_CLASSES = 3                              # 'semantic' in cfg.nerf_mode
COMB_DIM = MESH_FEAT_DIM + IMG_FEAT_DIM      # alpha_0 input channels (33)
NUM_INPUT_VIEWS = 1                          # cfg.num_input_views

VD_OFF = COMB_DIM                            # viewdir columns start here (33)
COMB_PAD = 64                                # lane-aligned packed-input width
OUT_PACKED = 8                               # [density | sem(3) | rgb(3) | pad]
HEAD_W = 128                                 # fused head width (alpha|sem|rgb0|pad)
MAX_TILE = 2048
TILE_ALIGN = 256


# ------------------------------ Pallas kernel --------------------------------
def mononhr_kernel(comb_ref,
                   w_a0, w_sq, w_h, w_r1a, w_side, w_ro, b_ref,
                   out_ref):
    f32 = jnp.float32
    bf16 = jnp.bfloat16

    comb = comb_ref[...]                                     # (TN, 64) bf16

    # ---- alpha MLP: bf16 MXU matmuls, f32 accumulate, ReLU in f32 ----
    x = jnp.maximum(jnp.dot(comb, w_a0[...], preferred_element_type=f32)
                    + b_ref[0:1, :], 0.0)
    x = jnp.maximum(jnp.dot(x.astype(bf16), w_sq[0], preferred_element_type=f32)
                    + b_ref[1:2, :], 0.0)
    x = jnp.maximum(jnp.dot(x.astype(bf16), w_sq[1], preferred_element_type=f32)
                    + b_ref[2:3, :], 0.0)
    xb = x.astype(bf16)

    # ---- fused density + semantic + rgb_0 head: (TN, 128) one MXU pass ----
    # columns: [0]=alpha, [1:4]=semantics, [4:68]=rgb_0 pre-activation, rest=0
    head = jnp.dot(xb, w_h[0], preferred_element_type=f32) + b_ref[3:4, 0:HEAD_W]
    a = jnp.maximum(head[:, 4:4 + 64], 0.0).astype(bf16)     # (TN, 64)

    # ---- side matmul on comb: img-feat term (cols 0:256) + viewdir term
    #      (cols 256:384); zero-padded rows avoid any unaligned lane slices.
    side = jnp.dot(comb, w_side[...], preferred_element_type=f32)   # (TN, 384)

    # rgb_1 (NO relu in torch): rgb_0 features + img features
    r = (jnp.dot(a, w_r1a[...], preferred_element_type=f32)
         + side[:, 0:256] + b_ref[4:5, :])
    # rgb_2 (NO relu in torch)
    r = jnp.dot(r.astype(bf16), w_sq[2], preferred_element_type=f32) + b_ref[5:6, :]
    # rgb_3: 256-wide MXU part + viewdir term from the side matmul, then ReLU
    r = jnp.maximum(jnp.dot(r.astype(bf16), w_h[1], preferred_element_type=f32)
                    + side[:, 256:384] + b_ref[6:7, 0:128], 0.0)
    rgb = jnp.dot(r.astype(bf16), w_ro[...], preferred_element_type=f32) + b_ref[7:8, 0:3]

    # ---- packed output, written directly into lane slices ----
    out_ref[:, 0:4] = head[:, 0:4]                           # alpha | sem(3)
    out_ref[:, 4:7] = rgb                                    # rgb(3)
    out_ref[:, 7:8] = jnp.zeros((head.shape[0], 1), f32)     # pad lane


# ------------------------------ parameters -----------------------------------
def _xavier(key, c_in, c_out):
    bound = float(np.sqrt(6.0 / (c_in + c_out)))
    return jax.random.uniform(key, (c_in, c_out), jnp.float32, -bound, bound)


def _bias(key, c_in, c_out):
    bound = float(1.0 / np.sqrt(c_in))
    return jax.random.uniform(key, (1, c_out), jnp.float32, -bound, bound)


def init_params(key):
    """Parameters in PyTorch-equivalent (unsplit, f32) form."""
    ks = jax.random.split(key, 24)
    p = {}
    p["w_a0"], p["b_a0"] = _xavier(ks[0], COMB_DIM, 256), _bias(ks[1], COMB_DIM, 256)
    p["w_a1"], p["b_a1"] = _xavier(ks[2], 256, 256), _bias(ks[3], 256, 256)
    p["w_a2"], p["b_a2"] = _xavier(ks[4], 256, 256), _bias(ks[5], 256, 256)
    p["w_ao"], p["b_ao"] = _xavier(ks[6], 256, 1), _bias(ks[7], 256, 1)
    p["w_sem"], p["b_sem"] = _xavier(ks[8], 256, NUM_CLASSES), _bias(ks[9], 256, NUM_CLASSES)
    p["w_r0"], p["b_r0"] = _xavier(ks[10], 1, 64), _bias(ks[11], 1, 64)
    p["w_r1"], p["b_r1"] = _xavier(ks[12], 64 + IMG_FEAT_DIM, 256), _bias(ks[13], 64 + IMG_FEAT_DIM, 256)
    p["w_r2"], p["b_r2"] = _xavier(ks[14], 256, 256), _bias(ks[15], 256, 256)
    p["w_r3"], p["b_r3"] = _xavier(ks[16], 256 + 3, 128), _bias(ks[17], 256 + 3, 128)
    p["w_ro"], p["b_ro"] = _xavier(ks[18], 128, 3), _bias(ks[19], 128, 3)
    return p


def _pack_kernel_weights(p):
    """Kernel weight forms: bf16 MXU operands, fused/stacked, zero-row padded."""
    bf16, f32 = jnp.bfloat16, jnp.float32

    # first alpha layer, lane-padded input width 33 -> 64
    w_a0 = jnp.pad(p["w_a0"], ((0, COMB_PAD - COMB_DIM), (0, 0))).astype(bf16)  # (64,256)

    # the three square 256x256 weights, stacked into one operand
    w_sq = jnp.stack([p["w_a1"], p["w_a2"], p["w_r2"]]).astype(bf16)            # (3,256,256)

    # fused head: [w_ao | w_sem | w_ao @ w_r0] padded to (256, 128); fold the
    # rgb_0 bias too (forward-identical to rgb_0(alpha.detach()))
    w_rgb0 = p["w_ao"] @ p["w_r0"]                                              # (256, 64)
    w_head = jnp.concatenate([p["w_ao"], p["w_sem"], w_rgb0], axis=-1)          # (256, 68)
    w_head = jnp.pad(w_head, ((0, 0), (0, HEAD_W - w_head.shape[-1])))
    b_rgb0 = p["b_ao"] * p["w_r0"] + p["b_r0"]                                  # (1, 64)
    b_head = jnp.concatenate([p["b_ao"], p["b_sem"], b_rgb0], axis=-1)          # (1, 68)

    # stacked (256,128) weights: fused head + rgb_3 feature part
    w_h = jnp.stack([w_head, p["w_r3"][:256]]).astype(bf16)                     # (2,256,128)

    # rgb_1 on rgb_0 features
    w_r1a = p["w_r1"][:64].astype(bf16)                                         # (64,256)

    # side weight on comb: img part (rows 17:33 of cols 0:256) and viewdir part
    # (rows 33:36 of cols 256:384); all other rows zero -> no lane slices needed
    w_r1i_pad = jnp.zeros((COMB_PAD, 256), f32).at[
        MESH_FEAT_DIM:MESH_FEAT_DIM + IMG_FEAT_DIM].set(p["w_r1"][64:])
    w_r3v_pad = jnp.zeros((COMB_PAD, 128), f32).at[VD_OFF:VD_OFF + 3].set(p["w_r3"][256:])
    w_side = jnp.concatenate([w_r1i_pad, w_r3v_pad], axis=-1).astype(bf16)      # (64,384)

    w_ro = p["w_ro"].astype(bf16)                                               # (128,3)

    # packed biases: one (8, 256) f32 operand, one row per layer
    def pad256(b):
        return jnp.pad(b, ((0, 0), (0, 256 - b.shape[-1])))
    biases = jnp.concatenate([
        p["b_a0"], p["b_a1"], p["b_a2"], pad256(b_head),
        p["b_r1"], p["b_r2"], pad256(p["b_r3"]), pad256(p["b_ro"]),
    ], axis=0).astype(f32)                                                      # (8,256)

    return [w_a0, w_sq, w_h, w_r1a, w_side, w_ro, biases]


def _choose_tile(n_points):
    """256-aligned tile <= MAX_TILE; prefer grid >= 4 (2 steps/TC on v7x), then >= 2."""
    n_align = ((n_points + TILE_ALIGN - 1) // TILE_ALIGN) * TILE_ALIGN
    for parts in (4, 2, 1):
        tile = (n_align // parts // TILE_ALIGN) * TILE_ALIGN
        if tile >= TILE_ALIGN:
            return min(MAX_TILE, tile)
    return TILE_ALIGN


def _resident_spec(shape):
    nd = len(shape)
    return pl.BlockSpec(shape, lambda i, _z=(0,) * nd: _z)


# ------------------------------ wrapper ---------------------------------------
def mononhr_forward(params, rays_points_world, ray_directions,
                    rays_points_world_img_features, ray_points_handmesh_features):
    # ---- glue: reproduce the PyTorch tensor parsing (reshapes / concats) ----
    num_points_per_ray = rays_points_world.shape[-2]
    points = rays_points_world.reshape(1, -1, 3)
    n_points = points.shape[1]
    mesh_feat = ray_points_handmesh_features.reshape(n_points, -1)
    img_feat = rays_points_world_img_features.reshape(n_points, -1)
    mesh_feat = jnp.concatenate([mesh_feat, points[0, :, 2:]], axis=-1)   # (N, 17)
    num_rays = ray_directions.shape[1]
    viewdir = jnp.broadcast_to(
        ray_directions, (1, num_rays, num_points_per_ray, 3)).reshape(n_points, 3)

    # packed input: [mesh(17) | img(16) | viewdir(3) | zeros] -> width 64, bf16
    comb_core = jnp.concatenate([mesh_feat, img_feat, viewdir], axis=-1)  # (N, 36)

    tile_n = _choose_tile(n_points)
    n_pad = ((n_points + tile_n - 1) // tile_n) * tile_n
    comb64 = jnp.pad(
        comb_core,
        ((0, n_pad - n_points), (0, COMB_PAD - comb_core.shape[-1]))
    ).astype(jnp.bfloat16)

    grid = (n_pad // tile_n,)

    weights = _pack_kernel_weights(params)
    in_specs = ([pl.BlockSpec((tile_n, COMB_PAD), lambda i: (i, 0))]
                + [_resident_spec(w.shape) for w in weights])

    out_shape = jax.ShapeDtypeStruct((n_pad, OUT_PACKED), jnp.float32)
    out_spec = pl.BlockSpec((tile_n, OUT_PACKED), lambda i: (i, 0))

    packed = pl.pallas_call(
        mononhr_kernel,
        out_shape=out_shape,
        grid_spec=pltpu.PrefetchScalarGridSpec(
            num_scalar_prefetch=0,
            grid=grid,
            in_specs=in_specs,
            out_specs=out_spec,
        ),
        compiler_params=pltpu.CompilerParams(
            dimension_semantics=("parallel",),
            vmem_limit_bytes=32 * 1024 * 1024),
    )(comb64, *weights)

    packed = packed[:n_points]
    raw_densities = packed[:, 0:1].reshape(1, n_points, 1)
    rays_semantics = packed[:, 1:1 + NUM_CLASSES].reshape(1, n_points, NUM_CLASSES)
    rays_colors = packed[:, 1 + NUM_CLASSES:1 + NUM_CLASSES + 3].reshape(1, n_points, 3)
    return raw_densities, rays_semantics, rays_colors


# ------------------ matmul-precision-matched JAX reference --------------------
def mononhr_reference(params, rays_points_world, ray_directions,
                      rays_points_world_img_features, ray_points_handmesh_features):
    """Plain-JAX reference in PyTorch op order (bf16 matmul operands, f32 acc)."""
    bf16 = jnp.bfloat16
    f32 = jnp.float32
    dot = lambda a, b: jnp.dot(a.astype(bf16), b.astype(bf16),
                               preferred_element_type=f32)
    relu = lambda v: jnp.maximum(v, 0.0)

    num_points_per_ray = rays_points_world.shape[-2]
    points = rays_points_world.reshape(1, -1, 3)
    n = points.shape[1]
    mesh_feat = ray_points_handmesh_features.reshape(n, -1)
    img_feat = rays_points_world_img_features.reshape(n, -1)
    mesh_feat = jnp.concatenate([mesh_feat, points[0, :, 2:]], axis=-1)
    comb = jnp.concatenate([mesh_feat, img_feat], axis=-1)
    num_rays = ray_directions.shape[1]
    viewdir = jnp.broadcast_to(
        ray_directions, (1, num_rays, num_points_per_ray, 3)).reshape(n, 3)

    x = relu(dot(comb, params["w_a0"]) + params["b_a0"])
    x = relu(dot(x, params["w_a1"]) + params["b_a1"])
    x = relu(dot(x, params["w_a2"]) + params["b_a2"])
    alpha = dot(x, params["w_ao"]) + params["b_ao"]
    sem = dot(x, params["w_sem"]) + params["b_sem"]

    a = relu(alpha * params["w_r0"] + params["b_r0"])                  # K=1, f32
    w_r1a, w_r1i = params["w_r1"][:64], params["w_r1"][64:]
    r = dot(a, w_r1a) + dot(img_feat, w_r1i) + params["b_r1"]
    r = dot(r, params["w_r2"]) + params["b_r2"]
    w_r3f, w_r3v = params["w_r3"][:256], params["w_r3"][256:]
    vd = viewdir.astype(bf16).astype(f32)
    r = relu(dot(r, w_r3f) + vd @ w_r3v + params["b_r3"])              # K=3, f32
    rgb = dot(r, params["w_ro"]) + params["b_ro"]
    return (alpha.reshape(1, n, 1), sem.reshape(1, n, NUM_CLASSES),
            rgb.reshape(1, n, 3))


# --------------------------------- main ---------------------------------------
if __name__ == "__main__":
    key = jax.random.PRNGKey(0)
    kp, k1, k2, k3, k4 = jax.random.split(key, 5)
    params = init_params(kp)

    num_rays = 64
    num_points_per_ray = 8   # cfg.N_samples

    rays_points_world = jax.random.normal(
        k1, (1, num_rays, 1, num_points_per_ray, 3), jnp.float32)
    ray_directions = jax.random.normal(
        k2, (1, num_rays, 1, 3), jnp.float32)
    rays_points_world_img_features = jax.random.normal(
        k3, (NUM_INPUT_VIEWS, num_rays, 1, num_points_per_ray, IMG_FEAT_DIM), jnp.float32)
    ray_points_handmesh_features = jax.random.normal(
        k4, (1, num_rays, num_points_per_ray, 4 * HANDMESH_FEAT_DIM), jnp.float32)

    dens, sem, rgb = mononhr_forward(
        params, rays_points_world, ray_directions,
        rays_points_world_img_features, ray_points_handmesh_features)
    jax.block_until_ready((dens, sem, rgb))

    dens_r, sem_r, rgb_r = mononhr_reference(
        params, rays_points_world, ray_directions,
        rays_points_world_img_features, ray_points_handmesh_features)

    # density / semantics are numerically identical in structure (same bf16
    # matmul, wider N) -> tight; rgb absorbs the rgb_0 / viewdir weight-fusion
    # re-rounding -> slightly looser.
    np.testing.assert_allclose(np.asarray(dens), np.asarray(dens_r), rtol=1e-2, atol=1e-2)
    np.testing.assert_allclose(np.asarray(sem), np.asarray(sem_r), rtol=1e-2, atol=1e-2)
    np.testing.assert_allclose(np.asarray(rgb), np.asarray(rgb_r), rtol=2e-2, atol=2e-2)

    print("KERNEL_OK")
</pallas_src>

<mosaic_0001>
module attributes {stable_mosaic.version = 11 : i64} {
  func.func @mononhr_kernel(%arg0: i32, %arg1: memref<256x64xbf16, #tpu.memory_space<vmem>>, %arg2: memref<64x256xbf16, #tpu.memory_space<vmem>>, %arg3: memref<3x256x256xbf16, #tpu.memory_space<vmem>>, %arg4: memref<2x256x128xbf16, #tpu.memory_space<vmem>>, %arg5: memref<64x256xbf16, #tpu.memory_space<vmem>>, %arg6: memref<64x384xbf16, #tpu.memory_space<vmem>>, %arg7: memref<128x3xbf16, #tpu.memory_space<vmem>>, %arg8: memref<8x256xf32, #tpu.memory_space<vmem>>, %arg9: memref<256x8xf32, #tpu.memory_space<vmem>>) attributes {dimension_semantics = [#tpu.dimension_semantics<parallel>], iteration_bounds = array<i64: 2>, scalar_prefetch = 0 : i64, scratch_operands = 0 : i64, tpu.core_type = #tpu.core_type<tc>, window_params = [{transform_indices = @transform_0, window_bounds = array<i64: 256, 64>}, {pipeline_mode = #tpu.pipeline_mode<synchronous>, transform_indices = @transform_1, window_bounds = array<i64: 64, 256>}, {pipeline_mode = #tpu.pipeline_mode<synchronous>, transform_indices = @transform_2, window_bounds = array<i64: 3, 256, 256>}, {pipeline_mode = #tpu.pipeline_mode<synchronous>, transform_indices = @transform_3, window_bounds = array<i64: 2, 256, 128>}, {pipeline_mode = #tpu.pipeline_mode<synchronous>, transform_indices = @transform_4, window_bounds = array<i64: 64, 256>}, {pipeline_mode = #tpu.pipeline_mode<synchronous>, transform_indices = @transform_5, window_bounds = array<i64: 64, 384>}, {pipeline_mode = #tpu.pipeline_mode<synchronous>, transform_indices = @transform_6, window_bounds = array<i64: 128, 3>}, {pipeline_mode = #tpu.pipeline_mode<synchronous>, transform_indices = @transform_7, window_bounds = array<i64: 8, 256>}, {transform_indices = @transform_8, window_bounds = array<i64: 256, 8>}]} {
    %c0 = arith.constant 0 : index
    %c0_0 = arith.constant 0 : index
    %0 = vector.load %arg1[%c0, %c0_0] : memref<256x64xbf16, #tpu.memory_space<vmem>>, vector<256x64xbf16>
    %c0_1 = arith.constant 0 : index
    %c0_2 = arith.constant 0 : index
    %1 = vector.load %arg2[%c0_1, %c0_2] : memref<64x256xbf16, #tpu.memory_space<vmem>>, vector<64x256xbf16>
    %cst = arith.constant dense<0.000000e+00> : vector<256x256xf32>
    %2 = tpu.matmul %0, %1, %cst {dimension_numbers = #tpu.dot_dimension_numbers<[1], [0], [0], [1], [0, 0, 1, 1], [], []>} : vector<256x64xbf16>, vector<64x256xbf16>, vector<256x256xf32> -> vector<256x256xf32>
    %c0_3 = arith.constant 0 : index
    %c0_4 = arith.constant 0 : index
    %3 = vector.load %arg8[%c0_3, %c0_4] : memref<8x256xf32, #tpu.memory_space<vmem>>, vector<1x256xf32>
    %4 = vector.broadcast %3 : vector<1x256xf32> to vector<256x256xf32>
    %5 = arith.addf %2, %4 : vector<256x256xf32>
    %cst_5 = arith.constant 0.000000e+00 : f32
    %6 = vector.broadcast %cst_5 : f32 to vector<256x256xf32>
    %7 = arith.maximumf %5, %6 : vector<256x256xf32>
    %8 = arith.truncf %7 : vector<256x256xf32> to vector<256x256xbf16>
    %c0_6 = arith.constant 0 : index
    %c0_7 = arith.constant 0 : index
    %c0_8 = arith.constant 0 : index
    %9 = vector.load %arg3[%c0_6, %c0_7, %c0_8] : memref<3x256x256xbf16, #tpu.memory_space<vmem>>, vector<1x256x256xbf16>
    %10 = vector.shape_cast %9 : vector<1x256x256xbf16> to vector<256x256xbf16>
    %cst_9 = arith.constant dense<0.000000e+00> : vector<256x256xf32>
    %11 = tpu.matmul %8, %10, %cst_9 {dimension_numbers = #tpu.dot_dimension_numbers<[1], [0], [0], [1], [0, 0, 1, 1], [], []>} : vector<256x256xbf16>, vector<256x256xbf16>, vector<256x256xf32> -> vector<256x256xf32>
    %c1 = arith.constant 1 : index
    %c0_10 = arith.constant 0 : index
    %12 = vector.load %arg8[%c1, %c0_10] : memref<8x256xf32, #tpu.memory_space<vmem>>, vector<1x256xf32>
    %13 = vector.broadcast %12 : vector<1x256xf32> to vector<256x256xf32>
    %14 = arith.addf %11, %13 : vector<256x256xf32>
    %cst_11 = arith.constant 0.000000e+00 : f32
    %15 = vector.broadcast %cst_11 : f32 to vector<256x256xf32>
    %16 = arith.maximumf %14, %15 : vector<256x256xf32>
    %17 = arith.truncf %16 : vector<256x256xf32> to vector<256x256xbf16>
    %c1_12 = arith.constant 1 : index
    %c0_13 = arith.constant 0 : index
    %c0_14 = arith.constant 0 : index
    %18 = vector.load %arg3[%c1_12, %c0_13, %c0_14] : memref<3x256x256xbf16, #tpu.memory_space<vmem>>, vector<1x256x256xbf16>
    %19 = vector.shape_cast %18 : vector<1x256x256xbf16> to vector<256x256xbf16>
    %cst_15 = arith.constant dense<0.000000e+00> : vector<256x256xf32>
    %20 = tpu.matmul %17, %19, %cst_15 {dimension_numbers = #tpu.dot_dimension_numbers<[1], [0], [0], [1], [0, 0, 1, 1], [], []>} : vector<256x256xbf16>, vector<256x256xbf16>, vector<256x256xf32> -> vector<256x256xf32>
    %c2 = arith.constant 2 : index
    %c0_16 = arith.constant 0 : index
    %21 = vector.load %arg8[%c2, %c0_16] : memref<8x256xf32, #tpu.memory_space<vmem>>, vector<1x256xf32>
    %22 = vector.broadcast %21 : vector<1x256xf32> to vector<256x256xf32>
    %23 = arith.addf %20, %22 : vector<256x256xf32>
    %cst_17 = arith.constant 0.000000e+00 : f32
    %24 = vector.broadcast %cst_17 : f32 to vector<256x256xf32>
    %25 = arith.maximumf %23, %24 : vector<256x256xf32>
    %26 = arith.truncf %25 : vector<256x256xf32> to vector<256x256xbf16>
    %c0_18 = arith.constant 0 : index
    %c0_19 = arith.constant 0 : index
    %c0_20 = arith.constant 0 : index
    %27 = vector.load %arg4[%c0_18, %c0_19, %c0_20] : memref<2x256x128xbf16, #tpu.memory_space<vmem>>, vector<1x256x128xbf16>
    %28 = vector.shape_cast %27 : vector<1x256x128xbf16> to vector<256x128xbf16>
    %cst_21 = arith.constant dense<0.000000e+00> : vector<256x128xf32>
    %29 = tpu.matmul %26, %28, %cst_21 {dimension_numbers = #tpu.dot_dimension_numbers<[1], [0], [0], [1], [0, 0, 1, 1], [], []>} : vector<256x256xbf16>, vector<256x128xbf16>, vector<256x128xf32> -> vector<256x128xf32>
    %c3 = arith.constant 3 : index
    %c0_22 = arith.constant 0 : index
    %30 = vector.load %arg8[%c3, %c0_22] : memref<8x256xf32, #tpu.memory_space<vmem>>, vector<1x128xf32>
    %31 = vector.broadcast %30 : vector<1x128xf32> to vector<256x128xf32>
    %32 = arith.addf %29, %31 : vector<256x128xf32>
    %33 = vector.extract_strided_slice %32 {offsets = [0, 4], sizes = [256, 64], strides = [1, 1]} : vector<256x128xf32> to vector<256x64xf32>
    %cst_23 = arith.constant 0.000000e+00 : f32
    %34 = vector.broadcast %cst_23 : f32 to vector<256x64xf32>
    %35 = arith.maximumf %33, %34 : vector<256x64xf32>
    %36 = arith.truncf %35 : vector<256x64xf32> to vector<256x64xbf16>
    %c0_24 = arith.constant 0 : index
    %c0_25 = arith.constant 0 : index
    %37 = vector.load %arg6[%c0_24, %c0_25] : memref<64x384xbf16, #tpu.memory_space<vmem>>, vector<64x384xbf16>
    %cst_26 = arith.constant dense<0.000000e+00> : vector<256x384xf32>
    %38 = tpu.matmul %0, %37, %cst_26 {dimension_numbers = #tpu.dot_dimension_numbers<[1], [0], [0], [1], [0, 0, 1, 1], [], []>} : vector<256x64xbf16>, vector<64x384xbf16>, vector<256x384xf32> -> vector<256x384xf32>
    %c0_27 = arith.constant 0 : index
    %c0_28 = arith.constant 0 : index
    %39 = vector.load %arg5[%c0_27, %c0_28] : memref<64x256xbf16, #tpu.memory_space<vmem>>, vector<64x256xbf16>
    %cst_29 = arith.constant dense<0.000000e+00> : vector<256x256xf32>
    %40 = tpu.matmul %36, %39, %cst_29 {dimension_numbers = #tpu.dot_dimension_numbers<[1], [0], [0], [1], [0, 0, 1, 1], [], []>} : vector<256x64xbf16>, vector<64x256xbf16>, vector<256x256xf32> -> vector<256x256xf32>
    %41 = vector.extract_strided_slice %38 {offsets = [0, 0], sizes = [256, 256], strides = [1, 1]} : vector<256x384xf32> to vector<256x256xf32>
    %42 = arith.addf %40, %41 : vector<256x256xf32>
    %c4 = arith.constant 4 : index
    %c0_30 = arith.constant 0 : index
    %43 = vector.load %arg8[%c4, %c0_30] : memref<8x256xf32, #tpu.memory_space<vmem>>, vector<1x256xf32>
    %44 = vector.broadcast %43 : vector<1x256xf32> to vector<256x256xf32>
    %45 = arith.addf %42, %44 : vector<256x256xf32>
    %46 = arith.truncf %45 : vector<256x256xf32> to vector<256x256xbf16>
    %c2_31 = arith.constant 2 : index
    %c0_32 = arith.constant 0 : index
    %c0_33 = arith.constant 0 : index
    %47 = vector.load %arg3[%c2_31, %c0_32, %c0_33] : memref<3x256x256xbf16, #tpu.memory_space<vmem>>, vector<1x256x256xbf16>
    %48 = vector.shape_cast %47 : vector<1x256x256xbf16> to vector<256x256xbf16>
    %cst_34 = arith.constant dense<0.000000e+00> : vector<256x256xf32>
    %49 = tpu.matmul %46, %48, %cst_34 {dimension_numbers = #tpu.dot_dimension_numbers<[1], [0], [0], [1], [0, 0, 1, 1], [], []>} : vector<256x256xbf16>, vector<256x256xbf16>, vector<256x256xf32> -> vector<256x256xf32>
    %c5 = arith.constant 5 : index
    %c0_35 = arith.constant 0 : index
    %50 = vector.load %arg8[%c5, %c0_35] : memref<8x256xf32, #tpu.memory_space<vmem>>, vector<1x256xf32>
    %51 = vector.broadcast %50 : vector<1x256xf32> to vector<256x256xf32>
    %52 = arith.addf %49, %51 : vector<256x256xf32>
    %53 = arith.truncf %52 : vector<256x256xf32> to vector<256x256xbf16>
    %c1_36 = arith.constant 1 : index
    %c0_37 = arith.constant 0 : index
    %c0_38 = arith.constant 0 : index
    %54 = vector.load %arg4[%c1_36, %c0_37, %c0_38] : memref<2x256x128xbf16, #tpu.memory_space<vmem>>, vector<1x256x128xbf16>
    %55 = vector.shape_cast %54 : vector<1x256x128xbf16> to vector<256x128xbf16>
    %cst_39 = arith.constant dense<0.000000e+00> : vector<256x128xf32>
    %56 = tpu.matmul %53, %55, %cst_39 {dimension_numbers = #tpu.dot_dimension_numbers<[1], [0], [0], [1], [0, 0, 1, 1], [], []>} : vector<256x256xbf16>, vector<256x128xbf16>, vector<256x128xf32> -> vector<256x128xf32>
    %57 = vector.extract_strided_slice %38 {offsets = [0, 256], sizes = [256, 128], strides = [1, 1]} : vector<256x384xf32> to vector<256x128xf32>
    %58 = arith.addf %56, %57 : vector<256x128xf32>
    %c6 = arith.constant 6 : index
    %c0_40 = arith.constant 0 : index
    %59 = vector.load %arg8[%c6, %c0_40] : memref<8x256xf32, #tpu.memory_space<vmem>>, vector<1x128xf32>
    %60 = vector.broadcast %59 : vector<1x128xf32> to vector<256x128xf32>
    %61 = arith.addf %58, %60 : vector<256x128xf32>
    %cst_41 = arith.constant 0.000000e+00 : f32
    %62 = vector.broadcast %cst_41 : f32 to vector<256x128xf32>
    %63 = arith.maximumf %61, %62 : vector<256x128xf32>
    %64 = arith.truncf %63 : vector<256x128xf32> to vector<256x128xbf16>
    %c0_42 = arith.constant 0 : index
    %c0_43 = arith.constant 0 : index
    %65 = vector.load %arg7[%c0_42, %c0_43] : memref<128x3xbf16, #tpu.memory_space<vmem>>, vector<128x3xbf16>
    %cst_44 = arith.constant dense<0.000000e+00> : vector<256x3xf32>
    %66 = tpu.matmul %64, %65, %cst_44 {dimension_numbers = #tpu.dot_dimension_numbers<[1], [0], [0], [1], [0, 0, 1, 1], [], []>} : vector<256x128xbf16>, vector<128x3xbf16>, vector<256x3xf32> -> vector<256x3xf32>
    %c7 = arith.constant 7 : index
    %c0_45 = arith.constant 0 : index
    %67 = vector.load %arg8[%c7, %c0_45] : memref<8x256xf32, #tpu.memory_space<vmem>>, vector<1x3xf32>
    %68 = vector.broadcast %67 : vector<1x3xf32> to vector<256x3xf32>
    %69 = arith.addf %66, %68 : vector<256x3xf32>
    %70 = vector.extract_strided_slice %32 {offsets = [0, 0], sizes = [256, 4], strides = [1, 1]} : vector<256x128xf32> to vector<256x4xf32>
    %c0_46 = arith.constant 0 : index
    %c0_47 = arith.constant 0 : index
    %71 = vector.load %arg9[%c0_46, %c0_47] : memref<256x8xf32, #tpu.memory_space<vmem>>, vector<256x4xf32>
    tpu.vector_store %arg9[%c0_46, %c0_47], %70 {strides = array<i32>} : memref<256x8xf32, #tpu.memory_space<vmem>>, vector<256x4xf32>,
    %c0_48 = arith.constant 0 : index
    %c4_49 = arith.constant 4 : index
    %72 = vector.load %arg9[%c0_48, %c4_49] : memref<256x8xf32, #tpu.memory_space<vmem>>, vector<256x3xf32>
    tpu.vector_store %arg9[%c0_48, %c4_49], %69 {strides = array<i32>} : memref<256x8xf32, #tpu.memory_space<vmem>>, vector<256x3xf32>,
    %cst_50 = arith.constant 0.000000e+00 : f32
    %73 = vector.broadcast %cst_50 : f32 to vector<256x1xf32>
    %c0_51 = arith.constant 0 : index
    %c7_52 = arith.constant 7 : index
    %74 = vector.load %arg9[%c0_51, %c7_52] : memref<256x8xf32, #tpu.memory_space<vmem>>, vector<256x1xf32>
    tpu.vector_store %arg9[%c0_51, %c7_52], %73 {strides = array<i32>} : memref<256x8xf32, #tpu.memory_space<vmem>>, vector<256x1xf32>,
    return
  }
  func.func @transform_0(%arg0: i32) -> (i32, i32) {
    %c0_i32 = arith.constant 0 : i32
    %c0_i32_0 = arith.constant 0 : i32
    return %arg0, %c0_i32 : i32, i32
  }
  func.func @transform_1(%arg0: i32) -> (i32, i32) {
    %c0_i32 = arith.constant 0 : i32
    %c0_i32_0 = arith.constant 0 : i32
    %c0_i32_1 = arith.constant 0 : i32
    return %c0_i32, %c0_i32_0 : i32, i32
  }
  func.func @transform_2(%arg0: i32) -> (i32, i32, i32) {
    %c0_i32 = arith.constant 0 : i32
    %c0_i32_0 = arith.constant 0 : i32
    %c0_i32_1 = arith.constant 0 : i32
    %c0_i32_2 = arith.constant 0 : i32
    return %c0_i32, %c0_i32_0, %c0_i32_1 : i32, i32, i32
  }
  func.func @transform_3(%arg0: i32) -> (i32, i32, i32) {
    %c0_i32 = arith.constant 0 : i32
    %c0_i32_0 = arith.constant 0 : i32
    %c0_i32_1 = arith.constant 0 : i32
    %c0_i32_2 = arith.constant 0 : i32
    return %c0_i32, %c0_i32_0, %c0_i32_1 : i32, i32, i32
  }
  func.func @transform_4(%arg0: i32) -> (i32, i32) {
    %c0_i32 = arith.constant 0 : i32
    %c0_i32_0 = arith.constant 0 : i32
    %c0_i32_1 = arith.constant 0 : i32
    return %c0_i32, %c0_i32_0 : i32, i32
  }
  func.func @transform_5(%arg0: i32) -> (i32, i32) {
    %c0_i32 = arith.constant 0 : i32
    %c0_i32_0 = arith.constant 0 : i32
    %c0_i32_1 = arith.constant 0 : i32
    return %c0_i32, %c0_i32_0 : i32, i32
  }
  func.func @transform_6(%arg0: i32) -> (i32, i32) {
    %c0_i32 = arith.constant 0 : i32
    %c0_i32_0 = arith.constant 0 : i32
    %c0_i32_1 = arith.constant 0 : i32
    return %c0_i32, %c0_i32_0 : i32, i32
  }
  func.func @transform_7(%arg0: i32) -> (i32, i32) {
    %c0_i32 = arith.constant 0 : i32
    %c0_i32_0 = arith.constant 0 : i32
    %c0_i32_1 = arith.constant 0 : i32
    return %c0_i32, %c0_i32_0 : i32, i32
  }
  func.func @transform_8(%arg0: i32) -> (i32, i32) {
    %c0_i32 = arith.constant 0 : i32
    %c0_i32_0 = arith.constant 0 : i32
    return %arg0, %c0_i32 : i32, i32
  }
}

</mosaic_0001>

<llo_original>
// kernel: tpu_custom_call.1
$region0: #{tpu_custom_call.1}
  #allocation0 [shape = 'u32[]', space=smem, size = 0x4, offset = 0x4, fixed_abs, tag = 'smem constant byte address 0x4 - core index']
  #allocation1 [shape = 'u32[144,128]{1,0:T(1,128)}', space=vmem, size = 0x12000, scoped, tag = 'internal scratch']
  %s0 = inlined_call_operand.vmem [shape: bf16[512,64], index: 0, kind: input, shape index: {}]
  %s1 = inlined_call_operand.vmem [shape: bf16[64,256], index: 1, kind: input, shape index: {}]
  %s2 = inlined_call_operand.hbm [shape: bf16[3,256,256], index: 2, kind: input, shape index: {}]
  %s3 = inlined_call_operand.vmem [shape: bf16[2,256,128], index: 3, kind: input, shape index: {}]
  %s4 = inlined_call_operand.hbm [shape: bf16[64,256], index: 4, kind: input, shape index: {}]
  %s5 = inlined_call_operand.vmem [shape: bf16[64,384], index: 5, kind: input, shape index: {}]
  %s6 = inlined_call_operand.vmem [shape: bf16[128,3], index: 6, kind: input, shape index: {}]
  %s7 = inlined_call_operand.vmem [shape: f32[8,256], index: 7, kind: input, shape index: {}]
  %s8 = inlined_call_operand.vmem [shape: f32[512,8], index: 8, kind: output, shape index: {}]
  %s9 = sld [smem:[#allocation0]]
  $region73: #{tpu_custom_call.1} parent=0
    _
  %s11 = ssub.s32 1, %s9
  %s12 = scalar_select 0, %s11, %s9
  $region1: #{tpu_custom_call.1} parent=0
    #allocation2 [shape = 'u8[393216]{0}', space=vmem, size = 0x60000, scoped, tag = 'input window, operand 2, single buffered']
    #allocation3 [shape = 's32[2]{0}', space=sflag, size = 0x8, scoped, tag = 'scoped memory for tpu_custom_call.1']
    #allocation4 [shape = 'u8[32768]{0}', space=vmem, size = 0x8000, scoped, tag = 'input window, operand 4, single buffered']
    #allocation5 [shape = 's32[1]{0}', space=sflag, size = 0x4, scoped, tag = 'scoped memory for tpu_custom_call.1']
    %13 = vsyncpa [#allocation3], 0
    %14 = vsyncpa [#allocation5], 0
    loop: start=0, step=1, limit=4
    $region2: #{tpu_custom_call.1} parent=1 // loop_pre_header
      _
    $region3: #{tpu_custom_call.1} parent=1 // loop_header
      %s16 = sphi 0, %s20
      %p17 = scmp.ge.s32.totalorder %s16, 4
      %s26 = sphi 0, %s28
      %s29 = sphi 0, %s26
      %s30 = sphi 0, %s29
      %s46 = sphi 0, %s30
      %s50 = sphi 0, %s50
      %s52 = sphi 0, %s50
      %s53 = sphi 0, %s52
      %s67 = sphi 0, %s53
      %s71 = sphi 0, %s71
      %s73 = sphi 0, %s71
      %s74 = sphi 0, %s73
      %s88 = sphi 0, %s74
      %s92 = sphi 0, %s92
      %s94 = sphi 0, %s92
      %s95 = sphi 0, %s94
      %s109 = sphi 0, %s95
      %s113 = sphi 0, %s113
      %s115 = sphi 0, %s113
      %s116 = sphi 0, %s115
      %s130 = sphi 0, %s116
      %s134 = sphi 0, %s134
      %s136 = sphi 0, %s134
      %s137 = sphi 0, %s136
      %s151 = sphi 0, %s137
      %s155 = sphi 0, %s155
      %s157 = sphi 0, %s155
      %s158 = sphi 0, %s157
      %s172 = sphi 0, %s158
      %s176 = sphi 0, %s176
      %s178 = sphi 0, %s176
      %s179 = sphi 0, %s178
      %s193 = sphi 0, %s179
      %s199 = sphi 0, %s201
      %s202 = sphi 0, %s199
      %s203 = sphi 0, %s202
      %s219 = sphi 0, %s203
    $region4: #{tpu_custom_call.1} parent=1 // loop_header_branch
      %19 = sbr.rel (%p17) target = $region8
    $region5: #{tpu_custom_call.1} parent=1 // loop_body
      %s21 = ssub.s32 %s16, 1
      %s22 = ssub.s32 %s16, 2
      %s23 = sadd.s32 %s16, 1
      %s24 = ssub.s32 %s16, %s23
      %p25 = scmp.eq.s32.totalorder %s24, 0
      %s27 = sadd.s32 %s26, 1
      %s28 = scalar_select %p25, %s26, %s27
      %p31 = pneg %p25
      %p32 = scmp.eq.s32.totalorder %s16, 1
      %p33 = por %p31, %p32
      %p34 = scmp.ne.s32.totalorder %s26, %s29
      %p35 = scmp.eq.s32.totalorder %s16, 0
      %p36 = por %p34, %p35
      %p37 = scmp.ne.s32.totalorder %s26, %s29
      %p38 = scmp.eq.s32.totalorder %s21, 1
      %p39 = por %p37, %p38
      %p40 = scmp.ne.s32.totalorder %s29, %s30
      %p41 = scmp.eq.s32.totalorder %s21, 0
      %p42 = por %p40, %p41
      %p43 = scmp.ne.s32.totalorder %s29, %s30
      %p44 = scmp.eq.s32.totalorder %s22, 1
      %p45 = por %p43, %p44
      %p47 = scmp.ne.s32.totalorder %s30, %s46
      %p48 = scmp.eq.s32.totalorder %s22, 0
      %p49 = por %p47, %p48
      %s51 = sadd.s32 %s50, 1
      %p54 = scmp.eq.s32.totalorder %s16, 1
      %p55 = scmp.ne.s32.totalorder %s50, %s52
      %p56 = scmp.eq.s32.totalorder %s16, 0
      %p57 = por %p55, %p56
      %p58 = scmp.ne.s32.totalorder %s50, %s52
      %p59 = scmp.eq.s32.totalorder %s21, 1
      %p60 = por %p58, %p59
      %p61 = scmp.ne.s32.totalorder %s52, %s53
      %p62 = scmp.eq.s32.totalorder %s21, 0
      %p63 = por %p61, %p62
      %p64 = scmp.ne.s32.totalorder %s52, %s53
      %p65 = scmp.eq.s32.totalorder %s22, 1
      %p66 = por %p64, %p65
      %p68 = scmp.ne.s32.totalorder %s53, %s67
      %p69 = scmp.eq.s32.totalorder %s22, 0
      %p70 = por %p68, %p69
      %s72 = sadd.s32 %s71, 1
      %p75 = scmp.eq.s32.totalorder %s16, 1
      %p76 = scmp.ne.s32.totalorder %s71, %s73
      %p77 = scmp.eq.s32.totalorder %s16, 0
      %p78 = por %p76, %p77
      %p79 = scmp.ne.s32.totalorder %s71, %s73
      %p80 = scmp.eq.s32.totalorder %s21, 1
      %p81 = por %p79, %p80
      %p82 = scmp.ne.s32.totalorder %s73, %s74
      %p83 = scmp.eq.s32.totalorder %s21, 0
      %p84 = por %p82, %p83
      %p85 = scmp.ne.s32.totalorder %s73, %s74
      %p86 = scmp.eq.s32.totalorder %s22, 1
      %p87 = por %p85, %p86
      %p89 = scmp.ne.s32.totalorder %s74, %s88
      %p90 = scmp.eq.s32.totalorder %s22, 0
      %p91 = por %p89, %p90
      %s93 = sadd.s32 %s92, 1
      %p96 = scmp.eq.s32.totalorder %s16, 1
      %p97 = scmp.ne.s32.totalorder %s92, %s94
      %p98 = scmp.eq.s32.totalorder %s16, 0
      %p99 = por %p97, %p98
      %p100 = scmp.ne.s32.totalorder %s92, %s94
      %p101 = scmp.eq.s32.totalorder %s21, 1
      %p102 = por %p100, %p101
      %p103 = scmp.ne.s32.totalorder %s94, %s95
      %p104 = scmp.eq.s32.totalorder %s21, 0
      %p105 = por %p103, %p104
      %p106 = scmp.ne.s32.totalorder %s94, %s95
      %p107 = scmp.eq.s32.totalorder %s22, 1
      %p108 = por %p106, %p107
      %p110 = scmp.ne.s32.totalorder %s95, %s109
      %p111 = scmp.eq.s32.totalorder %s22, 0
      %p112 = por %p110, %p111
      %s114 = sadd.s32 %s113, 1
      %p117 = scmp.eq.s32.totalorder %s16, 1
      %p118 = scmp.ne.s32.totalorder %s113, %s115
      %p119 = scmp.eq.s32.totalorder %s16, 0
      %p120 = por %p118, %p119
      %p121 = scmp.ne.s32.totalorder %s113, %s115
      %p122 = scmp.eq.s32.totalorder %s21, 1
      %p123 = por %p121, %p122
      %p124 = scmp.ne.s32.totalorder %s115, %s116
      %p125 = scmp.eq.s32.totalorder %s21, 0
      %p126 = por %p124, %p125
      %p127 = scmp.ne.s32.totalorder %s115, %s116
      %p128 = scmp.eq.s32.totalorder %s22, 1
      %p129 = por %p127, %p128
      %p131 = scmp.ne.s32.totalorder %s116, %s130
      %p132 = scmp.eq.s32.totalorder %s22, 0
      %p133 = por %p131, %p132
      %s135 = sadd.s32 %s134, 1
      %p138 = scmp.eq.s32.totalorder %s16, 1
      %p139 = scmp.ne.s32.totalorder %s134, %s136
      %p140 = scmp.eq.s32.totalorder %s16, 0
      %p141 = por %p139, %p140
      %p142 = scmp.ne.s32.totalorder %s134, %s136
      %p143 = scmp.eq.s32.totalorder %s21, 1
      %p144 = por %p142, %p143
      %p145 = scmp.ne.s32.totalorder %s136, %s137
      %p146 = scmp.eq.s32.totalorder %s21, 0
      %p147 = por %p145, %p146
      %p148 = scmp.ne.s32.totalorder %s136, %s137
      %p149 = scmp.eq.s32.totalorder %s22, 1
      %p150 = por %p148, %p149
      %p152 = scmp.ne.s32.totalorder %s137, %s151
      %p153 = scmp.eq.s32.totalorder %s22, 0
      %p154 = por %p152, %p153
      %s156 = sadd.s32 %s155, 1
      %p159 = scmp.eq.s32.totalorder %s16, 1
      %p160 = scmp.ne.s32.totalorder %s155, %s157
      %p161 = scmp.eq.s32.totalorder %s16, 0
      %p162 = por %p160, %p161
      %p163 = scmp.ne.s32.totalorder %s155, %s157
      %p164 = scmp.eq.s32.totalorder %s21, 1
      %p165 = por %p163, %p164
      %p166 = scmp.ne.s32.totalorder %s157, %s158
      %p167 = scmp.eq.s32.totalorder %s21, 0
      %p168 = por %p166, %p167
      %p169 = scmp.ne.s32.totalorder %s157, %s158
      %p170 = scmp.eq.s32.totalorder %s22, 1
      %p171 = por %p169, %p170
      %p173 = scmp.ne.s32.totalorder %s158, %s172
      %p174 = scmp.eq.s32.totalorder %s22, 0
      %p175 = por %p173, %p174
      %s177 = sadd.s32 %s176, 1
      %p180 = scmp.eq.s32.totalorder %s16, 1
      %p181 = scmp.ne.s32.totalorder %s176, %s178
      %p182 = scmp.eq.s32.totalorder %s16, 0
      %p183 = por %p181, %p182
      %p184 = scmp.ne.s32.totalorder %s176, %s178
      %p185 = scmp.eq.s32.totalorder %s21, 1
      %p186 = por %p184, %p185
      %p187 = scmp.ne.s32.totalorder %s178, %s179
      %p188 = scmp.eq.s32.totalorder %s21, 0
      %p189 = por %p187, %p188
      %p190 = scmp.ne.s32.totalorder %s178, %s179
      %p191 = scmp.eq.s32.totalorder %s22, 1
      %p192 = por %p190, %p191
      %p194 = scmp.ne.s32.totalorder %s179, %s193
      %p195 = scmp.eq.s32.totalorder %s22, 0
      %p196 = por %p194, %p195
      %s197 = ssub.s32 %s16, %s23
      %p198 = scmp.eq.s32.totalorder %s197, 0
      %s200 = sadd.s32 %s199, 1
      %s201 = scalar_select %p198, %s199, %s200
      %p204 = pneg %p198
      %p205 = scmp.eq.s32.totalorder %s16, 1
      %p206 = por %p204, %p205
      %p207 = scmp.ne.s32.totalorder %s199, %s202
      %p208 = scmp.eq.s32.totalorder %s16, 0
      %p209 = por %p207, %p208
      %p210 = scmp.ne.s32.totalorder %s199, %s202
      %p211 = scmp.eq.s32.totalorder %s21, 1
      %p212 = por %p210, %p211
      %p213 = scmp.ne.s32.totalorder %s202, %s203
      %p214 = scmp.eq.s32.totalorder %s21, 0
      %p215 = por %p213, %p214
      %p216 = scmp.ne.s32.totalorder %s202, %s203
      %p217 = scmp.eq.s32.totalorder %s22, 1
      %p218 = por %p216, %p217
      %p220 = scmp.ne.s32.totalorder %s203, %s219
      %p221 = scmp.eq.s32.totalorder %s22, 0
      %p222 = por %p220, %p221
      %p223 = scmp.le.s32.totalorder 1, %s16
      %p224 = scmp.lt.s32.totalorder %s16, 3
      %p225 = pnand %p223, %p224
      %p226 = pneg %p225
      // Predicated region
      $region9: #{tpu_custom_call.1} parent=5 // pred_check
        _
      $region10: #{tpu_custom_call.1} parent=5 // pred_check_branch
        %228 = sbr.rel (%p225) target = $region12
      $region11: #{tpu_custom_call.1} parent=5 // pred_region
        %s229 = ssub.s32 %s16, 1
        // Predicated region
        $region13: #{tpu_custom_call.1} parent=11 // pred_check
          %p230 = pneg %p63
        $region14: #{tpu_custom_call.1} parent=11 // pred_check_branch
          %232 = sbr.rel (%p230) target = $region16
        $region15: #{tpu_custom_call.1} parent=11 // pred_region
          _
        $region16: #{tpu_custom_call.1} parent=11 // pred_fallthru
          _
        // Predicated region
        $region17: #{tpu_custom_call.1} parent=11 // pred_check
          %p233 = pneg %p84
        $region18: #{tpu_custom_call.1} parent=11 // pred_check_branch
          %235 = sbr.rel (%p233) target = $region20
        $region19: #{tpu_custom_call.1} parent=11 // pred_region
          %s237 = ssub.s32 12288, 12288
          %238 = vsyncadd [#allocation3], %s237
          %s239 = sshll.u32 [#allocation2], 4
          %s240 = int_to_ptr.vmem [resolvable:$true] %s239
          %245 = dma.hbm_to_vmem [thread:$0]  %s2, 12288, %s240, [#allocation3], 128, 128, 8
        $region20: #{tpu_custom_call.1} parent=11 // pred_fallthru
          _
        // Predicated region
        $region21: #{tpu_custom_call.1} parent=11 // pred_check
          %p246 = pneg %p105
        $region22: #{tpu_custom_call.1} parent=11 // pred_check_branch
          %248 = sbr.rel (%p246) target = $region24
        $region23: #{tpu_custom_call.1} parent=11 // pred_region
          _
        $region24: #{tpu_custom_call.1} parent=11 // pred_fallthru
          _
        // Predicated region
        $region25: #{tpu_custom_call.1} parent=11 // pred_check
          %p249 = pneg %p126
        $region26: #{tpu_custom_call.1} parent=11 // pred_check_branch
          %251 = sbr.rel (%p249) target = $region28
        $region27: #{tpu_custom_call.1} parent=11 // pred_region
          %s253 = ssub.s32 1024, 1024
          %254 = vsyncadd [#allocation5], %s253
          %s255 = sshll.u32 [#allocation4], 4
          %s256 = int_to_ptr.vmem [resolvable:$true] %s255
          %261 = dma.hbm_to_vmem [thread:$0]  %s4, 1024, %s256, [#allocation5], 128, 128, 8
        $region28: #{tpu_custom_call.1} parent=11 // pred_fallthru
          _
        // Predicated region
        $region29: #{tpu_custom_call.1} parent=11 // pred_check
          %p262 = pneg %p147
        $region30: #{tpu_custom_call.1} parent=11 // pred_check_branch
          %264 = sbr.rel (%p262) target = $region32
        $region31: #{tpu_custom_call.1} parent=11 // pred_region
          _
        $region32: #{tpu_custom_call.1} parent=11 // pred_fallthru
          _
        // Predicated region
        $region33: #{tpu_custom_call.1} parent=11 // pred_check
          %p265 = pneg %p168
        $region34: #{tpu_custom_call.1} parent=11 // pred_check_branch
          %267 = sbr.rel (%p265) target = $region36
        $region35: #{tpu_custom_call.1} parent=11 // pred_region
          _
        $region36: #{tpu_custom_call.1} parent=11 // pred_fallthru
          _
        // Predicated region
        $region37: #{tpu_custom_call.1} parent=11 // pred_check
          %p268 = pneg %p189
        $region38: #{tpu_custom_call.1} parent=11 // pred_check_branch
          %270 = sbr.rel (%p268) target = $region40
        $region39: #{tpu_custom_call.1} parent=11 // pred_region
          _
        $region40: #{tpu_custom_call.1} parent=11 // pred_fallthru
          _
      $region12: #{tpu_custom_call.1} parent=5 // pred_fallthru
        _
      %p271 = scmp.lt.s32.totalorder %s16, 2
      // Predicated region
      $region41: #{tpu_custom_call.1} parent=5 // pred_check
        %p272 = pneg %p271
      $region42: #{tpu_custom_call.1} parent=5 // pred_check_branch
        %274 = sbr.rel (%p272) target = $region44
      $region43: #{tpu_custom_call.1} parent=5 // pred_region
        // Predicated region
        $region45: #{tpu_custom_call.1} parent=43 // pred_check
          %p275 = pneg %p36
        $region46: #{tpu_custom_call.1} parent=43 // pred_check_branch
          %277 = sbr.rel (%p275) target = $region48
        $region47: #{tpu_custom_call.1} parent=43 // pred_region
          %s278 = smul.u32 32, %s16
          %p279 = scmp.lt.s32.totalorder %s278, 63
          %s280 = scalar_select %p279, %s278, 63
          %s281 = smul.addr %s280, 4
          %s282 = scalar_lea.vmem %s0, %s281
          %s283 = smul.u32 32, %s16
        $region48: #{tpu_custom_call.1} parent=43 // pred_fallthru
          _
      $region44: #{tpu_custom_call.1} parent=5 // pred_fallthru
        _
      %p284 = scmp.le.s32.totalorder 1, %s16
      %p285 = scmp.lt.s32.totalorder %s16, 3
      %p286 = pnand %p284, %p285
      %p287 = pneg %p286
      // Predicated region
      $region49: #{tpu_custom_call.1} parent=5 // pred_check
        _
      $region50: #{tpu_custom_call.1} parent=5 // pred_check_branch
        %289 = sbr.rel (%p286) target = $region52
      $region51: #{tpu_custom_call.1} parent=5 // pred_region
        %s290 = ssub.s32 %s16, 1
        // Predicated region
        $region53: #{tpu_custom_call.1} parent=51 // pred_check
          %p291 = pneg %p84
        $region54: #{tpu_custom_call.1} parent=51 // pred_check_branch
          %293 = sbr.rel (%p291) target = $region56
        $region55: #{tpu_custom_call.1} parent=51 // pred_region
          %294 = dma.done [#allocation3], 12288
        $region56: #{tpu_custom_call.1} parent=51 // pred_fallthru
          _
        // Predicated region
        $region57: #{tpu_custom_call.1} parent=51 // pred_check
          %p295 = pneg %p126
        $region58: #{tpu_custom_call.1} parent=51 // pred_check_branch
          %297 = sbr.rel (%p295) target = $region60
        $region59: #{tpu_custom_call.1} parent=51 // pred_region
          %298 = dma.done [#allocation5], 1024
        $region60: #{tpu_custom_call.1} parent=51 // pred_fallthru
          _
        %s299 = smul.u32 32, %s21
        %p300 = scmp.lt.s32.totalorder %s299, 63
        %s301 = scalar_select %p300, %s299, 63
        %s302 = smul.addr %s301, 4
        %s303 = scalar_lea.vmem %s0, %s302
        %p304 = pneg %p42
        %p305 = pneg %p39
        %p306 = pneg %p63
        %p307 = pneg %p60
        %p308 = pneg %p84
        %p309 = pneg %p81
        %p310 = pneg %p105
        %p311 = pneg %p102
        %p312 = pneg %p126
        %p313 = pneg %p123
        %p314 = pneg %p147
        %p315 = pneg %p144
        %p316 = pneg %p168
        %p317 = pneg %p165
        %p318 = pneg %p189
        %p319 = pneg %p186
        %p320 = pneg %p215
        %p321 = pneg %p212
        %s322 = smul.u32 32, %s21
        %p323 = scmp.lt.s32.totalorder %s322, 63
        %s324 = scalar_select %p323, %s322, 63
        %s325 = smul.addr %s324, 8
        %s326 = scalar_lea.vmem %s8, %s325
        %s327 = smul.u32 32, %s21
        %p328 = scmp.lt.s32.totalorder %s327, 63
        %s329 = scalar_select %p328, %s327, 63
        %s330 = smul.addr %s329, 4
        %s331 = scalar_lea.vmem %s0, %s330
        %s332 = smul.u32 32, %s21
        %s333 = smul.u32 32, %s21
        %p334 = scmp.lt.s32.totalorder %s333, 63
        %s335 = scalar_select %p334, %s333, 63
        %s336 = smul.addr %s335, 8
        %s337 = scalar_lea.vmem %s8, %s336
        %s338 = smul.u32 32, %s21
        %v340 = vld [vmem:[%s331] sm:$0xf]
        %v341 = vld [vmem:[%s331 + $0x4] sm:$0xf]
        %v342 = vld [vmem:[%s331 + $0x8] sm:$0xf]
        %v343 = vld [vmem:[%s331 + $0xc] sm:$0xf]
        %v344 = vld [vmem:[%s331 + $0x10] sm:$0xf]
        %v345 = vld [vmem:[%s331 + $0x14] sm:$0xf]
        %v346 = vld [vmem:[%s331 + $0x18] sm:$0xf]
        %v347 = vld [vmem:[%s331 + $0x1c] sm:$0xf]
        %v348 = vld [vmem:[%s331 + $0x20] sm:$0xf]
        %v349 = vld [vmem:[%s331 + $0x24] sm:$0xf]
        %v350 = vld [vmem:[%s331 + $0x28] sm:$0xf]
        %v351 = vld [vmem:[%s331 + $0x2c] sm:$0xf]
        %v352 = vld [vmem:[%s331 + $0x30] sm:$0xf]
        %v353 = vld [vmem:[%s331 + $0x34] sm:$0xf]
        %v354 = vld [vmem:[%s331 + $0x38] sm:$0xf]
        %v355 = vld [vmem:[%s331 + $0x3c] sm:$0xf]
        %v356 = vld [vmem:[%s331 + $0x40] sm:$0xf]
        %v357 = vld [vmem:[%s331 + $0x44] sm:$0xf]
        %v358 = vld [vmem:[%s331 + $0x48] sm:$0xf]
        %v359 = vld [vmem:[%s331 + $0x4c] sm:$0xf]
        %v360 = vld [vmem:[%s331 + $0x50] sm:$0xf]
        %v361 = vld [vmem:[%s331 + $0x54] sm:$0xf]
        %v362 = vld [vmem:[%s331 + $0x58] sm:$0xf]
        %v363 = vld [vmem:[%s331 + $0x5c] sm:$0xf]
        %v364 = vld [vmem:[%s331 + $0x60] sm:$0xf]
        %v365 = vld [vmem:[%s331 + $0x64] sm:$0xf]
        %v366 = vld [vmem:[%s331 + $0x68] sm:$0xf]
        %v367 = vld [vmem:[%s331 + $0x6c] sm:$0xf]
        %v368 = vld [vmem:[%s331 + $0x70] sm:$0xf]
        %v369 = vld [vmem:[%s331 + $0x74] sm:$0xf]
        %v370 = vld [vmem:[%s331 + $0x78] sm:$0xf]
        %v371 = vld [vmem:[%s331 + $0x7c] sm:$0xf]
        %v372 = vld [vmem:[%s1] sm:$0xff]
        %v373 = vld [vmem:[%s1 + $0x8] sm:$0xff]
        %v374 = vld [vmem:[%s1 + $0x10] sm:$0xff]
        %v375 = vld [vmem:[%s1 + $0x18] sm:$0xff]
        %v376 = vld [vmem:[%s1 + $0x20] sm:$0xff]
        %v377 = vld [vmem:[%s1 + $0x28] sm:$0xff]
        %v378 = vld [vmem:[%s1 + $0x30] sm:$0xff]
        %v379 = vld [vmem:[%s1 + $0x38] sm:$0xff]
        %v380 = vld [vmem:[%s7] ss:$8 sm:$0x3]
        %v382 = vlaneseq
        %v383 = vshrl.u32 %v382, 7
        %v384 = vsub.s32 0, %v383
        %v385 = vrot.slane %v380, %v384
        %v386 = vlaneseq
        %v387 = vshrl.u32 %v386, 7
        %v388 = vsub.s32 1, %v387
        %v389 = vrot.slane %v380, %v388
        %v424 = vunpack.c.l.b16 %v340
        %v425 = vunpack.c.l.b16 %v341
        %v426 = vunpack.c.l.b16 %v342
        %v427 = vunpack.c.l.b16 %v343
        %v428 = vunpack.c.l.b16 %v344
        %v429 = vunpack.c.l.b16 %v345
        %v430 = vunpack.c.l.b16 %v346
        %v431 = vunpack.c.l.b16 %v347
        %v432 = vunpack.c.l.b16 %v348
        %v433 = vunpack.c.l.b16 %v349
        %v434 = vunpack.c.l.b16 %v350
        %v435 = vunpack.c.l.b16 %v351
        %v436 = vunpack.c.l.b16 %v352
        %v437 = vunpack.c.l.b16 %v353
        %v438 = vunpack.c.l.b16 %v354
        %v439 = vunpack.c.l.b16 %v355
        %v440 = vunpack.c.l.b16 %v356
        %v441 = vunpack.c.l.b16 %v357
        %v442 = vunpack.c.l.b16 %v358
        %v443 = vunpack.c.l.b16 %v359
        %v444 = vunpack.c.l.b16 %v360
        %v445 = vunpack.c.l.b16 %v361
        %v446 = vunpack.c.l.b16 %v362
        %v447 = vunpack.c.l.b16 %v363
        %v448 = vunpack.c.l.b16 %v364
        %v449 = vunpack.c.l.b16 %v365
        %v450 = vunpack.c.l.b16 %v366
        %v451 = vunpack.c.l.b16 %v367
        %v452 = vunpack.c.l.b16 %v368
        %v453 = vunpack.c.l.b16 %v369
        %v454 = vunpack.c.l.b16 %v370
        %v455 = vunpack.c.l.b16 %v371
        %v456 = vpack.c.b16 %v425, %v424
        %v457 = vpack.c.b16 %v427, %v426
        %v458 = vpack.c.b16 %v429, %v428
        %v459 = vpack.c.b16 %v431, %v430
        %v460 = vpack.c.b16 %v433, %v432
        %v461 = vpack.c.b16 %v435, %v434
        %v462 = vpack.c.b16 %v437, %v436
        %v463 = vpack.c.b16 %v439, %v438
        %v464 = vpack.c.b16 %v441, %v440
        %v465 = vpack.c.b16 %v443, %v442
        %v466 = vpack.c.b16 %v445, %v444
        %v467 = vpack.c.b16 %v447, %v446
        %v468 = vpack.c.b16 %v449, %v448
        %v469 = vpack.c.b16 %v451, %v450
        %v470 = vpack.c.b16 %v453, %v452
        %v471 = vpack.c.b16 %v455, %v454
        %v480 = vunpack.c.l.b16 %v372
        %v481 = vunpack.c.h.b16 %v372
        %v482 = vunpack.c.l.b16 %v373
        %v483 = vunpack.c.h.b16 %v373
        %v484 = vunpack.c.l.b16 %v374
        %v485 = vunpack.c.h.b16 %v374
        %v486 = vunpack.c.l.b16 %v375
        %v487 = vunpack.c.h.b16 %v375
        %v488 = vunpack.c.l.b16 %v376
        %v489 = vunpack.c.h.b16 %v376
        %v490 = vunpack.c.l.b16 %v377
        %v491 = vunpack.c.h.b16 %v377
        %v492 = vunpack.c.l.b16 %v378
        %v493 = vunpack.c.h.b16 %v378
        %v494 = vunpack.c.l.b16 %v379
        %v495 = vunpack.c.h.b16 %v379
        %v496 = vpack.c.b16 %v482, %v480
        %v497 = vpack.c.b16 %v483, %v481
        %v498 = vpack.c.b16 %v486, %v484
        %v499 = vpack.c.b16 %v487, %v485
        %v500 = vpack.c.b16 %v490, %v488
        %v501 = vpack.c.b16 %v491, %v489
        %v502 = vpack.c.b16 %v494, %v492
        %v503 = vpack.c.b16 %v495, %v493
        %vm512 = vcmask 523264
        %v514 = vsel %vm512, %v456, 0
        %v517 = vsel %vm512, %v457, 0
        %v520 = vsel %vm512, %v458, 0
        %v523 = vsel %vm512, %v459, 0
        %v526 = vsel %vm512, %v460, 0
        %v529 = vsel %vm512, %v461, 0
        %v532 = vsel %vm512, %v462, 0
        %v535 = vsel %vm512, %v463, 0
        %v538 = vsel %vm512, %v464, 0
        %v541 = vsel %vm512, %v465, 0
        %v544 = vsel %vm512, %v466, 0
        %v547 = vsel %vm512, %v467, 0
        %v550 = vsel %vm512, %v468, 0
        %v553 = vsel %vm512, %v469, 0
        %v556 = vsel %vm512, %v470, 0
        %v559 = vsel %vm512, %v471, 0
        %561 = vmatprep.subr.bf16.mxu0 %v497
        %562 = vmatpush1.bf16.msra.mxu0 %v496
        %563 = vmatprep.subr.bf16.mxu0 %v499
        %564 = vmatpush1.bf16.msra.mxu0 %v498
        %565 = vmatprep.subr.bf16.mxu0 %v501
        %566 = vmatpush1.bf16.msra.mxu0 %v500
        %567 = vmatprep.subr.bf16.mxu0 %v503
        %568 = vmatpush1.bf16.msra.mxu0 %v502
        %569 = vmatprep.subr.bf16.mxu0 0
        %570 = vmatpush1.bf16.msra.mxu0 0
        %571 = vmatprep.subr.bf16.mxu0 0
        %572 = vmatpush1.bf16.msra.mxu0 0
        %573 = vmatprep.subr.bf16.mxu0 0
        %574 = vmatpush1.bf16.msra.mxu0 0
        %575 = vmatprep.subr.bf16.mxu0 0
        %576 = vmatpush1.bf16.msra.mxu0 0
        %577 = vmatprep.subr.bf16.mxu0 0
        %578 = vmatpush1.bf16.msra.mxu0 0
        %579 = vmatprep.subr.bf16.mxu0 0
        %580 = vmatpush1.bf16.msra.mxu0 0
        %581 = vmatprep.subr.bf16.mxu0 0
        %582 = vmatpush1.bf16.msra.mxu0 0
        %583 = vmatprep.subr.bf16.mxu0 0
        %584 = vmatpush1.bf16.msra.mxu0 0
        %585 = vmatprep.subr.bf16.mxu0 0
        %586 = vmatpush1.bf16.msra.mxu0 0
        %587 = vmatprep.subr.bf16.mxu0 0
        %588 = vmatpush1.bf16.msra.mxu0 0
        %589 = vmatprep.subr.bf16.mxu0 0
        %590 = vmatpush1.bf16.msra.mxu0 0
        %591 = vmatprep.subr.bf16.mxu0 0
        %592 = vmatpush1.bf16.msra.mxu0 0
        %593 = vmatprep.mubr.bf16.mxu0 0
        %594 = vmatmul.mubr.bf16.gmra.mrb[0].mxu0 %v514
        %v595 = vpop.f32.mrb[0].mxu0
        %v596 = vadd.f32 %v385, %v595
        %v597 = vpop.f32.mrb[0].mxu0
        %v598 = vadd.f32 %v389, %v597
        %v599 = vpop.f32.mrb[0].mxu0
        %v600 = vadd.f32 %v385, %v599
        %v601 = vpop.f32.mrb[0].mxu0
        %v602 = vadd.f32 %v389, %v601
        %603 = vmatprep.mubr.bf16.mxu0 0
        %604 = vmatmul.mubr.bf16.gmra.mrb[0].mxu0 %v517
        %v605 = vpop.f32.mrb[0].mxu0
        %v606 = vadd.f32 %v385, %v605
        %v607 = vpop.f32.mrb[0].mxu0
        %v608 = vadd.f32 %v389, %v607
        %v609 = vpop.f32.mrb[0].mxu0
        %v610 = vadd.f32 %v385, %v609
        %v611 = vpop.f32.mrb[0].mxu0
        %v612 = vadd.f32 %v389, %v611
        %613 = vmatprep.mubr.bf16.mxu0 0
        %614 = vmatmul.mubr.bf16.gmra.mrb[0].mxu0 %v520
        %v615 = vpop.f32.mrb[0].mxu0
        %v616 = vadd.f32 %v385, %v615
        %v617 = vpop.f32.mrb[0].mxu0
        %v618 = vadd.f32 %v389, %v617
        %v619 = vpop.f32.mrb[0].mxu0
        %v620 = vadd.f32 %v385, %v619
        %v621 = vpop.f32.mrb[0].mxu0
        %v622 = vadd.f32 %v389, %v621
        %623 = vmatprep.mubr.bf16.mxu0 0
        %624 = vmatmul.mubr.bf16.gmra.mrb[0].mxu0 %v523
        %v625 = vpop.f32.mrb[0].mxu0
        %v626 = vadd.f32 %v385, %v625
        %v627 = vpop.f32.mrb[0].mxu0
        %v628 = vadd.f32 %v389, %v627
        %v629 = vpop.f32.mrb[0].mxu0
        %v630 = vadd.f32 %v385, %v629
        %v631 = vpop.f32.mrb[0].mxu0
        %v632 = vadd.f32 %v389, %v631
        %633 = vmatprep.mubr.bf16.mxu0 0
        %634 = vmatmul.mubr.bf16.gmra.mrb[0].mxu0 %v526
        %v635 = vpop.f32.mrb[0].mxu0
        %v636 = vadd.f32 %v385, %v635
        %v637 = vpop.f32.mrb[0].mxu0
        %v638 = vadd.f32 %v389, %v637
        %v639 = vpop.f32.mrb[0].mxu0
        %v640 = vadd.f32 %v385, %v639
        %v641 = vpop.f32.mrb[0].mxu0
        %v642 = vadd.f32 %v389, %v641
        %643 = vmatprep.mubr.bf16.mxu0 0
        %644 = vmatmul.mubr.bf16.gmra.mrb[0].mxu0 %v529
        %v645 = vpop.f32.mrb[0].mxu0
        %v646 = vadd.f32 %v385, %v645
        %v647 = vpop.f32.mrb[0].mxu0
        %v648 = vadd.f32 %v389, %v647
        %v649 = vpop.f32.mrb[0].mxu0
        %v650 = vadd.f32 %v385, %v649
        %v651 = vpop.f32.mrb[0].mxu0
        %v652 = vadd.f32 %v389, %v651
        %653 = vmatprep.mubr.bf16.mxu0 0
        %654 = vmatmul.mubr.bf16.gmra.mrb[0].mxu0 %v532
        %v655 = vpop.f32.mrb[0].mxu0
        %v656 = vadd.f32 %v385, %v655
        %v657 = vpop.f32.mrb[0].mxu0
        %v658 = vadd.f32 %v389, %v657
        %v659 = vpop.f32.mrb[0].mxu0
        %v660 = vadd.f32 %v385, %v659
        %v661 = vpop.f32.mrb[0].mxu0
        %v662 = vadd.f32 %v389, %v661
        %663 = vmatprep.mubr.bf16.mxu0 0
        %664 = vmatmul.mubr.bf16.gmra.mrb[0].mxu0 %v535
        %v665 = vpop.f32.mrb[0].mxu0
        %v666 = vadd.f32 %v385, %v665
        %v667 = vpop.f32.mrb[0].mxu0
        %v668 = vadd.f32 %v389, %v667
        %v669 = vpop.f32.mrb[0].mxu0
        %v670 = vadd.f32 %v385, %v669
        %v671 = vpop.f32.mrb[0].mxu0
        %v672 = vadd.f32 %v389, %v671
        %673 = vmatprep.mubr.bf16.mxu0 0
        %674 = vmatmul.mubr.bf16.gmra.mrb[0].mxu0 %v538
        %v675 = vpop.f32.mrb[0].mxu0
        %v676 = vadd.f32 %v385, %v675
        %v677 = vpop.f32.mrb[0].mxu0
        %v678 = vadd.f32 %v389, %v677
        %v679 = vpop.f32.mrb[0].mxu0
        %v680 = vadd.f32 %v385, %v679
        %v681 = vpop.f32.mrb[0].mxu0
        %v682 = vadd.f32 %v389, %v681
        %683 = vmatprep.mubr.bf16.mxu0 0
        %684 = vmatmul.mubr.bf16.gmra.mrb[0].mxu0 %v541
        %v685 = vpop.f32.mrb[0].mxu0
        %v686 = vadd.f32 %v385, %v685
        %v687 = vpop.f32.mrb[0].mxu0
        %v688 = vadd.f32 %v389, %v687
        %v689 = vpop.f32.mrb[0].mxu0
        %v690 = vadd.f32 %v385, %v689
        %v691 = vpop.f32.mrb[0].mxu0
        %v692 = vadd.f32 %v389, %v691
        %693 = vmatprep.mubr.bf16.mxu0 0
        %694 = vmatmul.mubr.bf16.gmra.mrb[0].mxu0 %v544
        %v695 = vpop.f32.mrb[0].mxu0
        %v696 = vadd.f32 %v385, %v695
        %v697 = vpop.f32.mrb[0].mxu0
        %v698 = vadd.f32 %v389, %v697
        %v699 = vpop.f32.mrb[0].mxu0
        %v700 = vadd.f32 %v385, %v699
        %v701 = vpop.f32.mrb[0].mxu0
        %v702 = vadd.f32 %v389, %v701
        %703 = vmatprep.mubr.bf16.mxu0 0
        %704 = vmatmul.mubr.bf16.gmra.mrb[0].mxu0 %v547
        %v705 = vpop.f32.mrb[0].mxu0
        %v706 = vadd.f32 %v385, %v705
        %v707 = vpop.f32.mrb[0].mxu0
        %v708 = vadd.f32 %v389, %v707
        %v709 = vpop.f32.mrb[0].mxu0
        %v710 = vadd.f32 %v385, %v709
        %v711 = vpop.f32.mrb[0].mxu0
        %v712 = vadd.f32 %v389, %v711
        %713 = vmatprep.mubr.bf16.mxu0 0
        %714 = vmatmul.mubr.bf16.gmra.mrb[0].mxu0 %v550
        %v715 = vpop.f32.mrb[0].mxu0
        %v716 = vadd.f32 %v385, %v715
        %v717 = vpop.f32.mrb[0].mxu0
        %v718 = vadd.f32 %v389, %v717
        %v719 = vpop.f32.mrb[0].mxu0
        %v720 = vadd.f32 %v385, %v719
        %v721 = vpop.f32.mrb[0].mxu0
        %v722 = vadd.f32 %v389, %v721
        %723 = vmatprep.mubr.bf16.mxu0 0
        %724 = vmatmul.mubr.bf16.gmra.mrb[0].mxu0 %v553
        %v725 = vpop.f32.mrb[0].mxu0
        %v726 = vadd.f32 %v385, %v725
        %v727 = vpop.f32.mrb[0].mxu0
        %v728 = vadd.f32 %v389, %v727
        %v729 = vpop.f32.mrb[0].mxu0
        %v730 = vadd.f32 %v385, %v729
        %v731 = vpop.f32.mrb[0].mxu0
        %v732 = vadd.f32 %v389, %v731
        %733 = vmatprep.mubr.bf16.mxu0 0
        %734 = vmatmul.mubr.bf16.gmra.mrb[0].mxu0 %v556
        %v735 = vpop.f32.mrb[0].mxu0
        %v736 = vadd.f32 %v385, %v735
        %v737 = vpop.f32.mrb[0].mxu0
        %v738 = vadd.f32 %v389, %v737
        %v739 = vpop.f32.mrb[0].mxu0
        %v740 = vadd.f32 %v385, %v739
        %v741 = vpop.f32.mrb[0].mxu0
        %v742 = vadd.f32 %v389, %v741
        %743 = vmatprep.mubr.bf16.mxu0 0
        %744 = vmatmul.mubr.bf16.gmra.mrb[0].mxu0 %v559
        %v745 = vpop.f32.mrb[0].mxu0
        %v746 = vadd.f32 %v385, %v745
        %v747 = vpop.f32.mrb[0].mxu0
        %v748 = vadd.f32 %v389, %v747
        %v749 = vpop.f32.mrb[0].mxu0
        %v750 = vadd.f32 %v385, %v749
        %v751 = vpop.f32.mrb[0].mxu0
        %v752 = vadd.f32 %v389, %v751
        %753 = vdwg.mxu0
        %v754 = vmax.f32 %v596, 0.0
        %v755 = vmax.f32 %v598, 0.0
        %v756 = vmax.f32 %v600, 0.0
        %v757 = vmax.f32 %v602, 0.0
        %v758 = vmax.f32 %v606, 0.0
        %v759 = vmax.f32 %v608, 0.0
        %v760 = vmax.f32 %v610, 0.0
        %v761 = vmax.f32 %v612, 0.0
        %v762 = vmax.f32 %v616, 0.0
        %v763 = vmax.f32 %v618, 0.0
        %v764 = vmax.f32 %v620, 0.0
        %v765 = vmax.f32 %v622, 0.0
        %v766 = vmax.f32 %v626, 0.0
        %v767 = vmax.f32 %v628, 0.0
        %v768 = vmax.f32 %v630, 0.0
        %v769 = vmax.f32 %v632, 0.0
        %v770 = vmax.f32 %v636, 0.0
        %v771 = vmax.f32 %v638, 0.0
        %v772 = vmax.f32 %v640, 0.0
        %v773 = vmax.f32 %v642, 0.0
        %v774 = vmax.f32 %v646, 0.0
        %v775 = vmax.f32 %v648, 0.0
        %v776 = vmax.f32 %v650, 0.0
        %v777 = vmax.f32 %v652, 0.0
        %v778 = vmax.f32 %v656, 0.0
        %v779 = vmax.f32 %v658, 0.0
        %v780 = vmax.f32 %v660, 0.0
        %v781 = vmax.f32 %v662, 0.0
        %v782 = vmax.f32 %v666, 0.0
        %v783 = vmax.f32 %v668, 0.0
        %v784 = vmax.f32 %v670, 0.0
        %v785 = vmax.f32 %v672, 0.0
        %v786 = vmax.f32 %v676, 0.0
        %v787 = vmax.f32 %v678, 0.0
        %v788 = vmax.f32 %v680, 0.0
        %v789 = vmax.f32 %v682, 0.0
        %v790 = vmax.f32 %v686, 0.0
        %v791 = vmax.f32 %v688, 0.0
        %v792 = vmax.f32 %v690, 0.0
        %v793 = vmax.f32 %v692, 0.0
        %v794 = vmax.f32 %v696, 0.0
        %v795 = vmax.f32 %v698, 0.0
        %v796 = vmax.f32 %v700, 0.0
        %v797 = vmax.f32 %v702, 0.0
        %v798 = vmax.f32 %v706, 0.0
        %v799 = vmax.f32 %v708, 0.0
        %v800 = vmax.f32 %v710, 0.0
        %v801 = vmax.f32 %v712, 0.0
        %v802 = vmax.f32 %v716, 0.0
        %v803 = vmax.f32 %v718, 0.0
        %v804 = vmax.f32 %v720, 0.0
        %v805 = vmax.f32 %v722, 0.0
        %v806 = vmax.f32 %v726, 0.0
        %v807 = vmax.f32 %v728, 0.0
        %v808 = vmax.f32 %v730, 0.0
        %v809 = vmax.f32 %v732, 0.0
        %v810 = vmax.f32 %v736, 0.0
        %v811 = vmax.f32 %v738, 0.0
        %v812 = vmax.f32 %v740, 0.0
        %v813 = vmax.f32 %v742, 0.0
        %v814 = vmax.f32 %v746, 0.0
        %v815 = vmax.f32 %v748, 0.0
        %v816 = vmax.f32 %v750, 0.0
        %v817 = vmax.f32 %v752, 0.0
        %v818 = vpack.c.bf16 %v756, %v754
        %v819 = vpack.c.bf16 %v757, %v755
        %v820 = vpack.c.bf16 %v760, %v758
        %v821 = vpack.c.bf16 %v761, %v759
        %v822 = vpack.c.bf16 %v764, %v762
        %v823 = vpack.c.bf16 %v765, %v763
        %v824 = vpack.c.bf16 %v768, %v766
        %v825 = vpack.c.bf16 %v769, %v767
        %v826 = vpack.c.bf16 %v772, %v770
        %v827 = vpack.c.bf16 %v773, %v771
        %v828 = vpack.c.bf16 %v776, %v774
        %v829 = vpack.c.bf16 %v777, %v775
        %v830 = vpack.c.bf16 %v780, %v778
        %v831 = vpack.c.bf16 %v781, %v779
        %v832 = vpack.c.bf16 %v784, %v782
        %v833 = vpack.c.bf16 %v785, %v783
        %v834 = vpack.c.bf16 %v788, %v786
        %v835 = vpack.c.bf16 %v789, %v787
        %v836 = vpack.c.bf16 %v792, %v790
        %v837 = vpack.c.bf16 %v793, %v791
        %v838 = vpack.c.bf16 %v796, %v794
        %v839 = vpack.c.bf16 %v797, %v795
        %v840 = vpack.c.bf16 %v800, %v798
        %v841 = vpack.c.bf16 %v801, %v799
        %v842 = vpack.c.bf16 %v804, %v802
        %v843 = vpack.c.bf16 %v805, %v803
        %v844 = vpack.c.bf16 %v808, %v806
        %v845 = vpack.c.bf16 %v809, %v807
        %v846 = vpack.c.bf16 %v812, %v810
        %v847 = vpack.c.bf16 %v813, %v811
        %v848 = vpack.c.bf16 %v816, %v814
        %v849 = vpack.c.bf16 %v817, %v815
        %v850 = vld [vmem:[#allocation2] sm:$0xff]
        %v851 = vld [vmem:[#allocation2 + $0x8] sm:$0xff]
        %v852 = vld [vmem:[#allocation2 + $0x10] sm:$0xff]
        %v853 = vld [vmem:[#allocation2 + $0x18] sm:$0xff]
        %v854 = vld [vmem:[#allocation2 + $0x20] sm:$0xff]
        %v855 = vld [vmem:[#allocation2 + $0x28] sm:$0xff]
        %v856 = vld [vmem:[#allocation2 + $0x30] sm:$0xff]
        %v857 = vld [vmem:[#allocation2 + $0x38] sm:$0xff]
        %v858 = vld [vmem:[#allocation2 + $0x40] sm:$0xff]
        %v859 = vld [vmem:[#allocation2 + $0x48] sm:$0xff]
        %v860 = vld [vmem:[#allocation2 + $0x50] sm:$0xff]
        %v861 = vld [vmem:[#allocation2 + $0x58] sm:$0xff]
        %v862 = vld [vmem:[#allocation2 + $0x60] sm:$0xff]
        %v863 = vld [vmem:[#allocation2 + $0x68] sm:$0xff]
        %v864 = vld [vmem:[#allocation2 + $0x70] sm:$0xff]
        %v865 = vld [vmem:[#allocation2 + $0x78] sm:$0xff]
        %v866 = vld [vmem:[#allocation2 + $0x80] sm:$0xff]
        %v867 = vld [vmem:[#allocation2 + $0x88] sm:$0xff]
        %v868 = vld [vmem:[#allocation2 + $0x90] sm:$0xff]
        %v869 = vld [vmem:[#allocation2 + $0x98] sm:$0xff]
        %v870 = vld [vmem:[#allocation2 + $0xa0] sm:$0xff]
        %v871 = vld [vmem:[#allocation2 + $0xa8] sm:$0xff]
        %v872 = vld [vmem:[#allocation2 + $0xb0] sm:$0xff]
        %v873 = vld [vmem:[#allocation2 + $0xb8] sm:$0xff]
        %v874 = vld [vmem:[#allocation2 + $0xc0] sm:$0xff]
        %v875 = vld [vmem:[#allocation2 + $0xc8] sm:$0xff]
        %v876 = vld [vmem:[#allocation2 + $0xd0] sm:$0xff]
        %v877 = vld [vmem:[#allocation2 + $0xd8] sm:$0xff]
        %v878 = vld [vmem:[#allocation2 + $0xe0] sm:$0xff]
        %v879 = vld [vmem:[#allocation2 + $0xe8] sm:$0xff]
        %v880 = vld [vmem:[#allocation2 + $0xf0] sm:$0xff]
        %v881 = vld [vmem:[#allocation2 + $0xf8] sm:$0xff]
        %s882 = scalar_lea.vmem %s7, 1
        %v883 = vld [vmem:[%s882] ss:$8 sm:$0x3]
        %v885 = vlaneseq
        %v886 = vshrl.u32 %v885, 7
        %v887 = vsub.s32 0, %v886
        %v888 = vrot.slane %v883, %v887
        %v889 = vlaneseq
        %v890 = vshrl.u32 %v889, 7
        %v891 = vsub.s32 1, %v890
        %v892 = vrot.slane %v883, %v891
        %v927 = vunpack.c.l.b16 %v850
        %v928 = vunpack.c.h.b16 %v850
        %v929 = vunpack.c.l.b16 %v851
        %v930 = vunpack.c.h.b16 %v851
        %v931 = vunpack.c.l.b16 %v852
        %v932 = vunpack.c.h.b16 %v852
        %v933 = vunpack.c.l.b16 %v853
        %v934 = vunpack.c.h.b16 %v853
        %v935 = vunpack.c.l.b16 %v854
        %v936 = vunpack.c.h.b16 %v854
        %v937 = vunpack.c.l.b16 %v855
        %v938 = vunpack.c.h.b16 %v855
        %v939 = vunpack.c.l.b16 %v856
        %v940 = vunpack.c.h.b16 %v856
        %v941 = vunpack.c.l.b16 %v857
        %v942 = vunpack.c.h.b16 %v857
        %v943 = vunpack.c.l.b16 %v858
        %v944 = vunpack.c.h.b16 %v858
        %v945 = vunpack.c.l.b16 %v859
        %v946 = vunpack.c.h.b16 %v859
        %v947 = vunpack.c.l.b16 %v860
        %v948 = vunpack.c.h.b16 %v860
        %v949 = vunpack.c.l.b16 %v861
        %v950 = vunpack.c.h.b16 %v861
        %v951 = vunpack.c.l.b16 %v862
        %v952 = vunpack.c.h.b16 %v862
        %v953 = vunpack.c.l.b16 %v863
        %v954 = vunpack.c.h.b16 %v863
        %v955 = vunpack.c.l.b16 %v864
        %v956 = vunpack.c.h.b16 %v864
        %v957 = vunpack.c.l.b16 %v865
        %v958 = vunpack.c.h.b16 %v865
        %v959 = vunpack.c.l.b16 %v866
        %v960 = vunpack.c.h.b16 %v866
        %v961 = vunpack.c.l.b16 %v867
        %v962 = vunpack.c.h.b16 %v867
        %v963 = vunpack.c.l.b16 %v868
        %v964 = vunpack.c.h.b16 %v868
        %v965 = vunpack.c.l.b16 %v869
        %v966 = vunpack.c.h.b16 %v869
        %v967 = vunpack.c.l.b16 %v870
        %v968 = vunpack.c.h.b16 %v870
        %v969 = vunpack.c.l.b16 %v871
        %v970 = vunpack.c.h.b16 %v871
        %v971 = vunpack.c.l.b16 %v872
        %v972 = vunpack.c.h.b16 %v872
        %v973 = vunpack.c.l.b16 %v873
        %v974 = vunpack.c.h.b16 %v873
        %v975 = vunpack.c.l.b16 %v874
        %v976 = vunpack.c.h.b16 %v874
        %v977 = vunpack.c.l.b16 %v875
        %v978 = vunpack.c.h.b16 %v875
        %v979 = vunpack.c.l.b16 %v876
        %v980 = vunpack.c.h.b16 %v876
        %v981 = vunpack.c.l.b16 %v877
        %v982 = vunpack.c.h.b16 %v877
        %v983 = vunpack.c.l.b16 %v878
        %v984 = vunpack.c.h.b16 %v878
        %v985 = vunpack.c.l.b16 %v879
        %v986 = vunpack.c.h.b16 %v879
        %v987 = vunpack.c.l.b16 %v880
        %v988 = vunpack.c.h.b16 %v880
        %v989 = vunpack.c.l.b16 %v881
        %v990 = vunpack.c.h.b16 %v881
        %v991 = vpack.c.b16 %v929, %v927
        %v992 = vpack.c.b16 %v930, %v928
        %v993 = vpack.c.b16 %v933, %v931
        %v994 = vpack.c.b16 %v934, %v932
        %v995 = vpack.c.b16 %v937, %v935
        %v996 = vpack.c.b16 %v938, %v936
        %v997 = vpack.c.b16 %v941, %v939
        %v998 = vpack.c.b16 %v942, %v940
        %v999 = vpack.c.b16 %v945, %v943
        %v1000 = vpack.c.b16 %v946, %v944
        %v1001 = vpack.c.b16 %v949, %v947
        %v1002 = vpack.c.b16 %v950, %v948
        %v1003 = vpack.c.b16 %v953, %v951
        %v1004 = vpack.c.b16 %v954, %v952
        %v1005 = vpack.c.b16 %v957, %v955
        %v1006 = vpack.c.b16 %v958, %v956
        %v1007 = vpack.c.b16 %v961, %v959
        %v1008 = vpack.c.b16 %v962, %v960
        %v1009 = vpack.c.b16 %v965, %v963
        %v1010 = vpack.c.b16 %v966, %v964
        %v1011 = vpack.c.b16 %v969, %v967
        %v1012 = vpack.c.b16 %v970, %v968
        %v1013 = vpack.c.b16 %v973, %v971
        %v1014 = vpack.c.b16 %v974, %v972
        %v1015 = vpack.c.b16 %v977, %v975
        %v1016 = vpack.c.b16 %v978, %v976
        %v1017 = vpack.c.b16 %v981, %v979
        %v1018 = vpack.c.b16 %v982, %v980
        %v1019 = vpack.c.b16 %v985, %v983
        %v1020 = vpack.c.b16 %v986, %v984
        %v1021 = vpack.c.b16 %v989, %v987
        %v1022 = vpack.c.b16 %v990, %v988
        %1055 = vmatprep.subr.bf16.mxu0 %v992
        %1056 = vmatpush1.bf16.msra.mxu0 %v991
        %1057 = vmatprep.subr.bf16.mxu0 %v994
        %1058 = vmatpush1.bf16.msra.mxu0 %v993
        %1059 = vmatprep.subr.bf16.mxu0 %v996
        %1060 = vmatpush1.bf16.msra.mxu0 %v995
        %1061 = vmatprep.subr.bf16.mxu0 %v998
        %1062 = vmatpush1.bf16.msra.mxu0 %v997
        %1063 = vmatprep.subr.bf16.mxu0 %v1000
        %1064 = vmatpush1.bf16.msra.mxu0 %v999
        %1065 = vmatprep.subr.bf16.mxu0 %v1002
        %1066 = vmatpush1.bf16.msra.mxu0 %v1001
        %1067 = vmatprep.subr.bf16.mxu0 %v1004
        %1068 = vmatpush1.bf16.msra.mxu0 %v1003
        %1069 = vmatprep.subr.bf16.mxu0 %v1006
        %1070 = vmatpush1.bf16.msra.mxu0 %v1005
        %1071 = vmatprep.subr.bf16.mxu0 %v1008
        %1072 = vmatpush1.bf16.msra.mxu0 %v1007
        %1073 = vmatprep.subr.bf16.mxu0 %v1010
        %1074 = vmatpush1.bf16.msra.mxu0 %v1009
        %1075 = vmatprep.subr.bf16.mxu0 %v1012
        %1076 = vmatpush1.bf16.msra.mxu0 %v1011
        %1077 = vmatprep.subr.bf16.mxu0 %v1014
        %1078 = vmatpush1.bf16.msra.mxu0 %v1013
        %1079 = vmatprep.subr.bf16.mxu0 %v1016
        %1080 = vmatpush1.bf16.msra.mxu0 %v1015
        %1081 = vmatprep.subr.bf16.mxu0 %v1018
        %1082 = vmatpush1.bf16.msra.mxu0 %v1017
        %1083 = vmatprep.subr.bf16.mxu0 %v1020
        %1084 = vmatpush1.bf16.msra.mxu0 %v1019
        %1085 = vmatprep.subr.bf16.mxu0 %v1022
        %1086 = vmatpush1.bf16.msra.mxu0 %v1021
        %1087 = vmatprep.mubr.bf16.mxu0 %v819
        %1088 = vmatmul.mubr.bf16.gmra.mrb[0].mxu0 %v818
        %v1089 = vpop.f32.mrb[0].mxu0
        %v1090 = vadd.f32 %v888, %v1089
        %v1091 = vpop.f32.mrb[0].mxu0
        %v1092 = vadd.f32 %v892, %v1091
        %v1093 = vpop.f32.mrb[0].mxu0
        %v1094 = vadd.f32 %v888, %v1093
        %v1095 = vpop.f32.mrb[0].mxu0
        %v1096 = vadd.f32 %v892, %v1095
        %1097 = vmatprep.mubr.bf16.mxu0 %v821
        %1098 = vmatmul.mubr.bf16.gmra.mrb[0].mxu0 %v820
        %v1099 = vpop.f32.mrb[0].mxu0
        %v1100 = vadd.f32 %v888, %v1099
        %v1101 = vpop.f32.mrb[0].mxu0
        %v1102 = vadd.f32 %v892, %v1101
        %v1103 = vpop.f32.mrb[0].mxu0
        %v1104 = vadd.f32 %v888, %v1103
        %v1105 = vpop.f32.mrb[0].mxu0
        %v1106 = vadd.f32 %v892, %v1105
        %1107 = vmatprep.mubr.bf16.mxu0 %v823
        %1108 = vmatmul.mubr.bf16.gmra.mrb[0].mxu0 %v822
        %v1109 = vpop.f32.mrb[0].mxu0
        %v1110 = vadd.f32 %v888, %v1109
        %v1111 = vpop.f32.mrb[0].mxu0
        %v1112 = vadd.f32 %v892, %v1111
        %v1113 = vpop.f32.mrb[0].mxu0
        %v1114 = vadd.f32 %v888, %v1113
        %v1115 = vpop.f32.mrb[0].mxu0
        %v1116 = vadd.f32 %v892, %v1115
        %1117 = vmatprep.mubr.bf16.mxu0 %v825
        %1118 = vmatmul.mubr.bf16.gmra.mrb[0].mxu0 %v824
        %v1119 = vpop.f32.mrb[0].mxu0
        %v1120 = vadd.f32 %v888, %v1119
        %v1121 = vpop.f32.mrb[0].mxu0
        %v1122 = vadd.f32 %v892, %v1121
        %v1123 = vpop.f32.mrb[0].mxu0
        %v1124 = vadd.f32 %v888, %v1123
        %v1125 = vpop.f32.mrb[0].mxu0
        %v1126 = vadd.f32 %v892, %v1125
        %1127 = vmatprep.mubr.bf16.mxu0 %v827
        %1128 = vmatmul.mubr.bf16.gmra.mrb[0].mxu0 %v826
        %v1129 = vpop.f32.mrb[0].mxu0
        %v1130 = vadd.f32 %v888, %v1129
        %v1131 = vpop.f32.mrb[0].mxu0
        %v1132 = vadd.f32 %v892, %v1131
        %v1133 = vpop.f32.mrb[0].mxu0
        %v1134 = vadd.f32 %v888, %v1133
        %v1135 = vpop.f32.mrb[0].mxu0
        %v1136 = vadd.f32 %v892, %v1135
        %1137 = vmatprep.mubr.bf16.mxu0 %v829
        %1138 = vmatmul.mubr.bf16.gmra.mrb[0].mxu0 %v828
        %v1139 = vpop.f32.mrb[0].mxu0
        %v1140 = vadd.f32 %v888, %v1139
        %v1141 = vpop.f32.mrb[0].mxu0
        %v1142 = vadd.f32 %v892, %v1141
        %v1143 = vpop.f32.mrb[0].mxu0
        %v1144 = vadd.f32 %v888, %v1143
        %v1145 = vpop.f32.mrb[0].mxu0
        %v1146 = vadd.f32 %v892, %v1145
        %1147 = vmatprep.mubr.bf16.mxu0 %v831
        %1148 = vmatmul.mubr.bf16.gmra.mrb[0].mxu0 %v830
        %v1149 = vpop.f32.mrb[0].mxu0
        %v1150 = vadd.f32 %v888, %v1149
        %v1151 = vpop.f32.mrb[0].mxu0
        %v1152 = vadd.f32 %v892, %v1151
        %v1153 = vpop.f32.mrb[0].mxu0
        %v1154 = vadd.f32 %v888, %v1153
        %v1155 = vpop.f32.mrb[0].mxu0
        %v1156 = vadd.f32 %v892, %v1155
        %1157 = vmatprep.mubr.bf16.mxu0 %v833
        %1158 = vmatmul.mubr.bf16.gmra.mrb[0].mxu0 %v832
        %v1159 = vpop.f32.mrb[0].mxu0
        %v1160 = vadd.f32 %v888, %v1159
        %v1161 = vpop.f32.mrb[0].mxu0
        %v1162 = vadd.f32 %v892, %v1161
        %v1163 = vpop.f32.mrb[0].mxu0
        %v1164 = vadd.f32 %v888, %v1163
        %v1165 = vpop.f32.mrb[0].mxu0
        %v1166 = vadd.f32 %v892, %v1165
        %1167 = vmatprep.mubr.bf16.mxu0 %v835
        %1168 = vmatmul.mubr.bf16.gmra.mrb[0].mxu0 %v834
        %v1169 = vpop.f32.mrb[0].mxu0
        %v1170 = vadd.f32 %v888, %v1169
        %v1171 = vpop.f32.mrb[0].mxu0
        %v1172 = vadd.f32 %v892, %v1171
        %v1173 = vpop.f32.mrb[0].mxu0
        %v1174 = vadd.f32 %v888, %v1173
        %v1175 = vpop.f32.mrb[0].mxu0
        %v1176 = vadd.f32 %v892, %v1175
        %1177 = vmatprep.mubr.bf16.mxu0 %v837
        %1178 = vmatmul.mubr.bf16.gmra.mrb[0].mxu0 %v836
        %v1179 = vpop.f32.mrb[0].mxu0
        %v1180 = vadd.f32 %v888, %v1179
        %v1181 = vpop.f32.mrb[0].mxu0
        %v1182 = vadd.f32 %v892, %v1181
        %v1183 = vpop.f32.mrb[0].mxu0
        %v1184 = vadd.f32 %v888, %v1183
        %v1185 = vpop.f32.mrb[0].mxu0
        %v1186 = vadd.f32 %v892, %v1185
        %1187 = vmatprep.mubr.bf16.mxu0 %v839
        %1188 = vmatmul.mubr.bf16.gmra.mrb[0].mxu0 %v838
        %v1189 = vpop.f32.mrb[0].mxu0
        %v1190 = vadd.f32 %v888, %v1189
        %v1191 = vpop.f32.mrb[0].mxu0
        %v1192 = vadd.f32 %v892, %v1191
        %v1193 = vpop.f32.mrb[0].mxu0
        %v1194 = vadd.f32 %v888, %v1193
        %v1195 = vpop.f32.mrb[0].mxu0
        %v1196 = vadd.f32 %v892, %v1195
        %1197 = vmatprep.mubr.bf16.mxu0 %v841
        %1198 = vmatmul.mubr.bf16.gmra.mrb[0].mxu0 %v840
        %v1199 = vpop.f32.mrb[0].mxu0
        %v1200 = vadd.f32 %v888, %v1199
        %v1201 = vpop.f32.mrb[0].mxu0
        %v1202 = vadd.f32 %v892, %v1201
        %v1203 = vpop.f32.mrb[0].mxu0
        %v1204 = vadd.f32 %v888, %v1203
        %v1205 = vpop.f32.mrb[0].mxu0
        %v1206 = vadd.f32 %v892, %v1205
        %1207 = vmatprep.mubr.bf16.mxu0 %v843
        %1208 = vmatmul.mubr.bf16.gmra.mrb[0].mxu0 %v842
        %v1209 = vpop.f32.mrb[0].mxu0
        %v1210 = vadd.f32 %v888, %v1209
        %v1211 = vpop.f32.mrb[0].mxu0
        %v1212 = vadd.f32 %v892, %v1211
        %v1213 = vpop.f32.mrb[0].mxu0
        %v1214 = vadd.f32 %v888, %v1213
        %v1215 = vpop.f32.mrb[0].mxu0
        %v1216 = vadd.f32 %v892, %v1215
        %1217 = vmatprep.mubr.bf16.mxu0 %v845
        %1218 = vmatmul.mubr.bf16.gmra.mrb[0].mxu0 %v844
        %v1219 = vpop.f32.mrb[0].mxu0
        %v1220 = vadd.f32 %v888, %v1219
        %v1221 = vpop.f32.mrb[0].mxu0
        %v1222 = vadd.f32 %v892, %v1221
        %v1223 = vpop.f32.mrb[0].mxu0
        %v1224 = vadd.f32 %v888, %v1223
        %v1225 = vpop.f32.mrb[0].mxu0
        %v1226 = vadd.f32 %v892, %v1225
        %1227 = vmatprep.mubr.bf16.mxu0 %v847
        %1228 = vmatmul.mubr.bf16.gmra.mrb[0].mxu0 %v846
        %v1229 = vpop.f32.mrb[0].mxu0
        %v1230 = vadd.f32 %v888, %v1229
        %v1231 = vpop.f32.mrb[0].mxu0
        %v1232 = vadd.f32 %v892, %v1231
        %v1233 = vpop.f32.mrb[0].mxu0
        %v1234 = vadd.f32 %v888, %v1233
        %v1235 = vpop.f32.mrb[0].mxu0
        %v1236 = vadd.f32 %v892, %v1235
        %1237 = vmatprep.mubr.bf16.mxu0 %v849
        %1238 = vmatmul.mubr.bf16.gmra.mrb[0].mxu0 %v848
        %v1239 = vpop.f32.mrb[0].mxu0
        %v1240 = vadd.f32 %v888, %v1239
        %v1241 = vpop.f32.mrb[0].mxu0
        %v1242 = vadd.f32 %v892, %v1241
        %v1243 = vpop.f32.mrb[0].mxu0
        %v1244 = vadd.f32 %v888, %v1243
        %v1245 = vpop.f32.mrb[0].mxu0
        %v1246 = vadd.f32 %v892, %v1245
        %1247 = vdwg.mxu0
        %v1248 = vmax.f32 %v1090, 0.0
        %v1249 = vmax.f32 %v1092, 0.0
        %v1250 = vmax.f32 %v1094, 0.0
        %v1251 = vmax.f32 %v1096, 0.0
        %v1252 = vmax.f32 %v1100, 0.0
        %v1253 = vmax.f32 %v1102, 0.0
        %v1254 = vmax.f32 %v1104, 0.0
        %v1255 = vmax.f32 %v1106, 0.0
        %v1256 = vmax.f32 %v1110, 0.0
        %v1257 = vmax.f32 %v1112, 0.0
        %v1258 = vmax.f32 %v1114, 0.0
        %v1259 = vmax.f32 %v1116, 0.0
        %v1260 = vmax.f32 %v1120, 0.0
        %v1261 = vmax.f32 %v1122, 0.0
        %v1262 = vmax.f32 %v1124, 0.0
        %v1263 = vmax.f32 %v1126, 0.0
        %v1264 = vmax.f32 %v1130, 0.0
        %v1265 = vmax.f32 %v1132, 0.0
        %v1266 = vmax.f32 %v1134, 0.0
        %v1267 = vmax.f32 %v1136, 0.0
        %v1268 = vmax.f32 %v1140, 0.0
        %v1269 = vmax.f32 %v1142, 0.0
        %v1270 = vmax.f32 %v1144, 0.0
        %v1271 = vmax.f32 %v1146, 0.0
        %v1272 = vmax.f32 %v1150, 0.0
        %v1273 = vmax.f32 %v1152, 0.0
        %v1274 = vmax.f32 %v1154, 0.0
        %v1275 = vmax.f32 %v1156, 0.0
        %v1276 = vmax.f32 %v1160, 0.0
        %v1277 = vmax.f32 %v1162, 0.0
        %v1278 = vmax.f32 %v1164, 0.0
        %v1279 = vmax.f32 %v1166, 0.0
        %v1280 = vmax.f32 %v1170, 0.0
        %v1281 = vmax.f32 %v1172, 0.0
        %v1282 = vmax.f32 %v1174, 0.0
        %v1283 = vmax.f32 %v1176, 0.0
        %v1284 = vmax.f32 %v1180, 0.0
        %v1285 = vmax.f32 %v1182, 0.0
        %v1286 = vmax.f32 %v1184, 0.0
        %v1287 = vmax.f32 %v1186, 0.0
        %v1288 = vmax.f32 %v1190, 0.0
        %v1289 = vmax.f32 %v1192, 0.0
        %v1290 = vmax.f32 %v1194, 0.0
        %v1291 = vmax.f32 %v1196, 0.0
        %v1292 = vmax.f32 %v1200, 0.0
        %v1293 = vmax.f32 %v1202, 0.0
        %v1294 = vmax.f32 %v1204, 0.0
        %v1295 = vmax.f32 %v1206, 0.0
        %v1296 = vmax.f32 %v1210, 0.0
        %v1297 = vmax.f32 %v1212, 0.0
        %v1298 = vmax.f32 %v1214, 0.0
        %v1299 = vmax.f32 %v1216, 0.0
        %v1300 = vmax.f32 %v1220, 0.0
        %v1301 = vmax.f32 %v1222, 0.0
        %v1302 = vmax.f32 %v1224, 0.0
        %v1303 = vmax.f32 %v1226, 0.0
        %v1304 = vmax.f32 %v1230, 0.0
        %v1305 = vmax.f32 %v1232, 0.0
        %v1306 = vmax.f32 %v1234, 0.0
        %v1307 = vmax.f32 %v1236, 0.0
        %v1308 = vmax.f32 %v1240, 0.0
        %v1309 = vmax.f32 %v1242, 0.0
        %v1310 = vmax.f32 %v1244, 0.0
        %v1311 = vmax.f32 %v1246, 0.0
        %v1312 = vpack.c.bf16 %v1250, %v1248
        %v1313 = vpack.c.bf16 %v1251, %v1249
        %v1314 = vpack.c.bf16 %v1254, %v1252
        %v1315 = vpack.c.bf16 %v1255, %v1253
        %v1316 = vpack.c.bf16 %v1258, %v1256
        %v1317 = vpack.c.bf16 %v1259, %v1257
        %v1318 = vpack.c.bf16 %v1262, %v1260
        %v1319 = vpack.c.bf16 %v1263, %v1261
        %v1320 = vpack.c.bf16 %v1266, %v1264
        %v1321 = vpack.c.bf16 %v1267, %v1265
        %v1322 = vpack.c.bf16 %v1270, %v1268
        %v1323 = vpack.c.bf16 %v1271, %v1269
        %v1324 = vpack.c.bf16 %v1274, %v1272
        %v1325 = vpack.c.bf16 %v1275, %v1273
        %v1326 = vpack.c.bf16 %v1278, %v1276
        %v1327 = vpack.c.bf16 %v1279, %v1277
        %v1328 = vpack.c.bf16 %v1282, %v1280
        %v1329 = vpack.c.bf16 %v1283, %v1281
        %v1330 = vpack.c.bf16 %v1286, %v1284
        %v1331 = vpack.c.bf16 %v1287, %v1285
        %v1332 = vpack.c.bf16 %v1290, %v1288
        %v1333 = vpack.c.bf16 %v1291, %v1289
        %v1334 = vpack.c.bf16 %v1294, %v1292
        %v1335 = vpack.c.bf16 %v1295, %v1293
        %v1336 = vpack.c.bf16 %v1298, %v1296
        %v1337 = vpack.c.bf16 %v1299, %v1297
        %v1338 = vpack.c.bf16 %v1302, %v1300
        %v1339 = vpack.c.bf16 %v1303, %v1301
        %v1340 = vpack.c.bf16 %v1306, %v1304
        %v1341 = vpack.c.bf16 %v1307, %v1305
        %v1342 = vpack.c.bf16 %v1310, %v1308
        %v1343 = vpack.c.bf16 %v1311, %v1309
        %s1344 = scalar_lea.vmem [#allocation2], 256
        %v1345 = vld [vmem:[%s1344] sm:$0xff]
        %v1346 = vld [vmem:[%s1344 + $0x8] sm:$0xff]
        %v1347 = vld [vmem:[%s1344 + $0x10] sm:$0xff]
        %v1348 = vld [vmem:[%s1344 + $0x18] sm:$0xff]
        %v1349 = vld [vmem:[%s1344 + $0x20] sm:$0xff]
        %v1350 = vld [vmem:[%s1344 + $0x28] sm:$0xff]
        %v1351 = vld [vmem:[%s1344 + $0x30] sm:$0xff]
        %v1352 = vld [vmem:[%s1344 + $0x38] sm:$0xff]
        %v1353 = vld [vmem:[%s1344 + $0x40] sm:$0xff]
        %v1354 = vld [vmem:[%s1344 + $0x48] sm:$0xff]
        %v1355 = vld [vmem:[%s1344 + $0x50] sm:$0xff]
        %v1356 = vld [vmem:[%s1344 + $0x58] sm:$0xff]
        %v1357 = vld [vmem:[%s1344 + $0x60] sm:$0xff]
        %v1358 = vld [vmem:[%s1344 + $0x68] sm:$0xff]
        %v1359 = vld [vmem:[%s1344 + $0x70] sm:$0xff]
        %v1360 = vld [vmem:[%s1344 + $0x78] sm:$0xff]
        %v1361 = vld [vmem:[%s1344 + $0x80] sm:$0xff]
        %v1362 = vld [vmem:[%s1344 + $0x88] sm:$0xff]
        %v1363 = vld [vmem:[%s1344 + $0x90] sm:$0xff]
        %v1364 = vld [vmem:[%s1344 + $0x98] sm:$0xff]
        %v1365 = vld [vmem:[%s1344 + $0xa0] sm:$0xff]
        %v1366 = vld [vmem:[%s1344 + $0xa8] sm:$0xff]
        %v1367 = vld [vmem:[%s1344 + $0xb0] sm:$0xff]
        %v1368 = vld [vmem:[%s1344 + $0xb8] sm:$0xff]
        %v1369 = vld [vmem:[%s1344 + $0xc0] sm:$0xff]
        %v1370 = vld [vmem:[%s1344 + $0xc8] sm:$0xff]
        %v1371 = vld [vmem:[%s1344 + $0xd0] sm:$0xff]
        %v1372 = vld [vmem:[%s1344 + $0xd8] sm:$0xff]
        %v1373 = vld [vmem:[%s1344 + $0xe0] sm:$0xff]
        %v1374 = vld [vmem:[%s1344 + $0xe8] sm:$0xff]
        %v1375 = vld [vmem:[%s1344 + $0xf0] sm:$0xff]
        %v1376 = vld [vmem:[%s1344 + $0xf8] sm:$0xff]
        %s1377 = scalar_lea.vmem %s7, 2
        %v1378 = vld [vmem:[%s1377] ss:$8 sm:$0x3]
        %v1380 = vlaneseq
        %v1381 = vshrl.u32 %v1380, 7
        %v1382 = vsub.s32 0, %v1381
        %v1383 = vrot.slane %v1378, %v1382
        %v1384 = vlaneseq
        %v1385 = vshrl.u32 %v1384, 7
        %v1386 = vsub.s32 1, %v1385
        %v1387 = vrot.slane %v1378, %v1386
        %v1422 = vunpack.c.l.b16 %v1345
        %v1423 = vunpack.c.h.b16 %v1345
        %v1424 = vunpack.c.l.b16 %v1346
        %v1425 = vunpack.c.h.b16 %v1346
        %v1426 = vunpack.c.l.b16 %v1347
        %v1427 = vunpack.c.h.b16 %v1347
        %v1428 = vunpack.c.l.b16 %v1348
        %v1429 = vunpack.c.h.b16 %v1348
        %v1430 = vunpack.c.l.b16 %v1349
        %v1431 = vunpack.c.h.b16 %v1349
        %v1432 = vunpack.c.l.b16 %v1350
        %v1433 = vunpack.c.h.b16 %v1350
        %v1434 = vunpack.c.l.b16 %v1351
        %v1435 = vunpack.c.h.b16 %v1351
        %v1436 = vunpack.c.l.b16 %v1352
        %v1437 = vunpack.c.h.b16 %v1352
        %v1438 = vunpack.c.l.b16 %v1353
        %v1439 = vunpack.c.h.b16 %v1353
        %v1440 = vunpack.c.l.b16 %v1354
        %v1441 = vunpack.c.h.b16 %v1354
        %v1442 = vunpack.c.l.b16 %v1355
        %v1443 = vunpack.c.h.b16 %v1355
        %v1444 = vunpack.c.l.b16 %v1356
        %v1445 = vunpack.c.h.b16 %v1356
        %v1446 = vunpack.c.l.b16 %v1357
        %v1447 = vunpack.c.h.b16 %v1357
        %v1448 = vunpack.c.l.b16 %v1358
        %v1449 = vunpack.c.h.b16 %v1358
        %v1450 = vunpack.c.l.b16 %v1359
        %v1451 = vunpack.c.h.b16 %v1359
        %v1452 = vunpack.c.l.b16 %v1360
        %v1453 = vunpack.c.h.b16 %v1360
        %v1454 = vunpack.c.l.b16 %v1361
        %v1455 = vunpack.c.h.b16 %v1361
        %v1456 = vunpack.c.l.b16 %v1362
        %v1457 = vunpack.c.h.b16 %v1362
        %v1458 = vunpack.c.l.b16 %v1363
        %v1459 = vunpack.c.h.b16 %v1363
        %v1460 = vunpack.c.l.b16 %v1364
        %v1461 = vunpack.c.h.b16 %v1364
        %v1462 = vunpack.c.l.b16 %v1365
        %v1463 = vunpack.c.h.b16 %v1365
        %v1464 = vunpack.c.l.b16 %v1366
        %v1465 = vunpack.c.h.b16 %v1366
        %v1466 = vunpack.c.l.b16 %v1367
        %v1467 = vunpack.c.h.b16 %v1367
        %v1468 = vunpack.c.l.b16 %v1368
        %v1469 = vunpack.c.h.b16 %v1368
        %v1470 = vunpack.c.l.b16 %v1369
        %v1471 = vunpack.c.h.b16 %v1369
        %v1472 = vunpack.c.l.b16 %v1370
        %v1473 = vunpack.c.h.b16 %v1370
        %v1474 = vunpack.c.l.b16 %v1371
        %v1475 = vunpack.c.h.b16 %v1371
        %v1476 = vunpack.c.l.b16 %v1372
        %v1477 = vunpack.c.h.b16 %v1372
        %v1478 = vunpack.c.l.b16 %v1373
        %v1479 = vunpack.c.h.b16 %v1373
        %v1480 = vunpack.c.l.b16 %v1374
        %v1481 = vunpack.c.h.b16 %v1374
        %v1482 = vunpack.c.l.b16 %v1375
        %v1483 = vunpack.c.h.b16 %v1375
        %v1484 = vunpack.c.l.b16 %v1376
        %v1485 = vunpack.c.h.b16 %v1376
        %v1486 = vpack.c.b16 %v1424, %v1422
        %v1487 = vpack.c.b16 %v1425, %v1423
        %v1488 = vpack.c.b16 %v1428, %v1426
        %v1489 = vpack.c.b16 %v1429, %v1427
        %v1490 = vpack.c.b16 %v1432, %v1430
        %v1491 = vpack.c.b16 %v1433, %v1431
        %v1492 = vpack.c.b16 %v1436, %v1434
        %v1493 = vpack.c.b16 %v1437, %v1435
        %v1494 = vpack.c.b16 %v1440, %v1438
        %v1495 = vpack.c.b16 %v1441, %v1439
        %v1496 = vpack.c.b16 %v1444, %v1442
        %v1497 = vpack.c.b16 %v1445, %v1443
        %v1498 = vpack.c.b16 %v1448, %v1446
        %v1499 = vpack.c.b16 %v1449, %v1447
        %v1500 = vpack.c.b16 %v1452, %v1450
        %v1501 = vpack.c.b16 %v1453, %v1451
        %v1502 = vpack.c.b16 %v1456, %v1454
        %v1503 = vpack.c.b16 %v1457, %v1455
        %v1504 = vpack.c.b16 %v1460, %v1458
        %v1505 = vpack.c.b16 %v1461, %v1459
        %v1506 = vpack.c.b16 %v1464, %v1462
        %v1507 = vpack.c.b16 %v1465, %v1463
        %v1508 = vpack.c.b16 %v1468, %v1466
        %v1509 = vpack.c.b16 %v1469, %v1467
        %v1510 = vpack.c.b16 %v1472, %v1470
        %v1511 = vpack.c.b16 %v1473, %v1471
        %v1512 = vpack.c.b16 %v1476, %v1474
        %v1513 = vpack.c.b16 %v1477, %v1475
        %v1514 = vpack.c.b16 %v1480, %v1478
        %v1515 = vpack.c.b16 %v1481, %v1479
        %v1516 = vpack.c.b16 %v1484, %v1482
        %v1517 = vpack.c.b16 %v1485, %v1483
        %1550 = vmatprep.subr.bf16.mxu0 %v1487
        %1551 = vmatpush1.bf16.msra.mxu0 %v1486
        %1552 = vmatprep.subr.bf16.mxu0 %v1489
        %1553 = vmatpush1.bf16.msra.mxu0 %v1488
        %1554 = vmatprep.subr.bf16.mxu0 %v1491
        %1555 = vmatpush1.bf16.msra.mxu0 %v1490
        %1556 = vmatprep.subr.bf16.mxu0 %v1493
        %1557 = vmatpush1.bf16.msra.mxu0 %v1492
        %1558 = vmatprep.subr.bf16.mxu0 %v1495
        %1559 = vmatpush1.bf16.msra.mxu0 %v1494
        %1560 = vmatprep.subr.bf16.mxu0 %v1497
        %1561 = vmatpush1.bf16.msra.mxu0 %v1496
        %1562 = vmatprep.subr.bf16.mxu0 %v1499
        %1563 = vmatpush1.bf16.msra.mxu0 %v1498
        %1564 = vmatprep.subr.bf16.mxu0 %v1501
        %1565 = vmatpush1.bf16.msra.mxu0 %v1500
        %1566 = vmatprep.subr.bf16.mxu0 %v1503
        %1567 = vmatpush1.bf16.msra.mxu0 %v1502
        %1568 = vmatprep.subr.bf16.mxu0 %v1505
        %1569 = vmatpush1.bf16.msra.mxu0 %v1504
        %1570 = vmatprep.subr.bf16.mxu0 %v1507
        %1571 = vmatpush1.bf16.msra.mxu0 %v1506
        %1572 = vmatprep.subr.bf16.mxu0 %v1509
        %1573 = vmatpush1.bf16.msra.mxu0 %v1508
        %1574 = vmatprep.subr.bf16.mxu0 %v1511
        %1575 = vmatpush1.bf16.msra.mxu0 %v1510
        %1576 = vmatprep.subr.bf16.mxu0 %v1513
        %1577 = vmatpush1.bf16.msra.mxu0 %v1512
        %1578 = vmatprep.subr.bf16.mxu0 %v1515
        %1579 = vmatpush1.bf16.msra.mxu0 %v1514
        %1580 = vmatprep.subr.bf16.mxu0 %v1517
        %1581 = vmatpush1.bf16.msra.mxu0 %v1516
        %1582 = vmatprep.mubr.bf16.mxu0 %v1313
        %1583 = vmatmul.mubr.bf16.gmra.mrb[0].mxu0 %v1312
        %v1584 = vpop.f32.mrb[0].mxu0
        %v1585 = vadd.f32 %v1383, %v1584
        %v1586 = vpop.f32.mrb[0].mxu0
        %v1587 = vadd.f32 %v1387, %v1586
        %v1588 = vpop.f32.mrb[0].mxu0
        %v1589 = vadd.f32 %v1383, %v1588
        %v1590 = vpop.f32.mrb[0].mxu0
        %v1591 = vadd.f32 %v1387, %v1590
        %1592 = vmatprep.mubr.bf16.mxu0 %v1315
        %1593 = vmatmul.mubr.bf16.gmra.mrb[0].mxu0 %v1314
        %v1594 = vpop.f32.mrb[0].mxu0
        %v1595 = vadd.f32 %v1383, %v1594
        %v1596 = vpop.f32.mrb[0].mxu0
        %v1597 = vadd.f32 %v1387, %v1596
        %v1598 = vpop.f32.mrb[0].mxu0
        %v1599 = vadd.f32 %v1383, %v1598
        %v1600 = vpop.f32.mrb[0].mxu0
        %v1601 = vadd.f32 %v1387, %v1600
        %1602 = vmatprep.mubr.bf16.mxu0 %v1317
        %1603 = vmatmul.mubr.bf16.gmra.mrb[0].mxu0 %v1316
        %v1604 = vpop.f32.mrb[0].mxu0
        %v1605 = vadd.f32 %v1383, %v1604
        %v1606 = vpop.f32.mrb[0].mxu0
        %v1607 = vadd.f32 %v1387, %v1606
        %v1608 = vpop.f32.mrb[0].mxu0
        %v1609 = vadd.f32 %v1383, %v1608
        %v1610 = vpop.f32.mrb[0].mxu0
        %v1611 = vadd.f32 %v1387, %v1610
        %1612 = vmatprep.mubr.bf16.mxu0 %v1319
        %1613 = vmatmul.mubr.bf16.gmra.mrb[0].mxu0 %v1318
        %v1614 = vpop.f32.mrb[0].mxu0
        %v1615 = vadd.f32 %v1383, %v1614
        %v1616 = vpop.f32.mrb[0].mxu0
        %v1617 = vadd.f32 %v1387, %v1616
        %v1618 = vpop.f32.mrb[0].mxu0
        %v1619 = vadd.f32 %v1383, %v1618
        %v1620 = vpop.f32.mrb[0].mxu0
        %v1621 = vadd.f32 %v1387, %v1620
        %1622 = vmatprep.mubr.bf16.mxu0 %v1321
        %1623 = vmatmul.mubr.bf16.gmra.mrb[0].mxu0 %v1320
        %v1624 = vpop.f32.mrb[0].mxu0
        %v1625 = vadd.f32 %v1383, %v1624
        %v1626 = vpop.f32.mrb[0].mxu0
        %v1627 = vadd.f32 %v1387, %v1626
        %v1628 = vpop.f32.mrb[0].mxu0
        %v1629 = vadd.f32 %v1383, %v1628
        %v1630 = vpop.f32.mrb[0].mxu0
        %v1631 = vadd.f32 %v1387, %v1630
        %1632 = vmatprep.mubr.bf16.mxu0 %v1323
        %1633 = vmatmul.mubr.bf16.gmra.mrb[0].mxu0 %v1322
        %v1634 = vpop.f32.mrb[0].mxu0
        %v1635 = vadd.f32 %v1383, %v1634
        %v1636 = vpop.f32.mrb[0].mxu0
        %v1637 = vadd.f32 %v1387, %v1636
        %v1638 = vpop.f32.mrb[0].mxu0
        %v1639 = vadd.f32 %v1383, %v1638
        %v1640 = vpop.f32.mrb[0].mxu0
        %v1641 = vadd.f32 %v1387, %v1640
        %1642 = vmatprep.mubr.bf16.mxu0 %v1325
        %1643 = vmatmul.mubr.bf16.gmra.mrb[0].mxu0 %v1324
        %v1644 = vpop.f32.mrb[0].mxu0
        %v1645 = vadd.f32 %v1383, %v1644
        %v1646 = vpop.f32.mrb[0].mxu0
        %v1647 = vadd.f32 %v1387, %v1646
        %v1648 = vpop.f32.mrb[0].mxu0
        %v1649 = vadd.f32 %v1383, %v1648
        %v1650 = vpop.f32.mrb[0].mxu0
        %v1651 = vadd.f32 %v1387, %v1650
        %1652 = vmatprep.mubr.bf16.mxu0 %v1327
        %1653 = vmatmul.mubr.bf16.gmra.mrb[0].mxu0 %v1326
        %v1654 = vpop.f32.mrb[0].mxu0
        %v1655 = vadd.f32 %v1383, %v1654
        %v1656 = vpop.f32.mrb[0].mxu0
        %v1657 = vadd.f32 %v1387, %v1656
        %v1658 = vpop.f32.mrb[0].mxu0
        %v1659 = vadd.f32 %v1383, %v1658
        %v1660 = vpop.f32.mrb[0].mxu0
        %v1661 = vadd.f32 %v1387, %v1660
        %1662 = vmatprep.mubr.bf16.mxu0 %v1329
        %1663 = vmatmul.mubr.bf16.gmra.mrb[0].mxu0 %v1328
        %v1664 = vpop.f32.mrb[0].mxu0
        %v1665 = vadd.f32 %v1383, %v1664
        %v1666 = vpop.f32.mrb[0].mxu0
        %v1667 = vadd.f32 %v1387, %v1666
        %v1668 = vpop.f32.mrb[0].mxu0
        %v1669 = vadd.f32 %v1383, %v1668
        %v1670 = vpop.f32.mrb[0].mxu0
        %v1671 = vadd.f32 %v1387, %v1670
        %1672 = vmatprep.mubr.bf16.mxu0 %v1331
        %1673 = vmatmul.mubr.bf16.gmra.mrb[0].mxu0 %v1330
        %v1674 = vpop.f32.mrb[0].mxu0
        %v1675 = vadd.f32 %v1383, %v1674
        %v1676 = vpop.f32.mrb[0].mxu0
        %v1677 = vadd.f32 %v1387, %v1676
        %v1678 = vpop.f32.mrb[0].mxu0
        %v1679 = vadd.f32 %v1383, %v1678
        %v1680 = vpop.f32.mrb[0].mxu0
        %v1681 = vadd.f32 %v1387, %v1680
        %1682 = vmatprep.mubr.bf16.mxu0 %v1333
        %1683 = vmatmul.mubr.bf16.gmra.mrb[0].mxu0 %v1332
        %v1684 = vpop.f32.mrb[0].mxu0
        %v1685 = vadd.f32 %v1383, %v1684
        %v1686 = vpop.f32.mrb[0].mxu0
        %v1687 = vadd.f32 %v1387, %v1686
        %v1688 = vpop.f32.mrb[0].mxu0
        %v1689 = vadd.f32 %v1383, %v1688
        %v1690 = vpop.f32.mrb[0].mxu0
        %v1691 = vadd.f32 %v1387, %v1690
        %1692 = vmatprep.mubr.bf16.mxu0 %v1335
        %1693 = vmatmul.mubr.bf16.gmra.mrb[0].mxu0 %v1334
        %v1694 = vpop.f32.mrb[0].mxu0
        %v1695 = vadd.f32 %v1383, %v1694
        %v1696 = vpop.f32.mrb[0].mxu0
        %v1697 = vadd.f32 %v1387, %v1696
        %v1698 = vpop.f32.mrb[0].mxu0
        %v1699 = vadd.f32 %v1383, %v1698
        %v1700 = vpop.f32.mrb[0].mxu0
        %v1701 = vadd.f32 %v1387, %v1700
        %1702 = vmatprep.mubr.bf16.mxu0 %v1337
        %1703 = vmatmul.mubr.bf16.gmra.mrb[0].mxu0 %v1336
        %v1704 = vpop.f32.mrb[0].mxu0
        %v1705 = vadd.f32 %v1383, %v1704
        %v1706 = vpop.f32.mrb[0].mxu0
        %v1707 = vadd.f32 %v1387, %v1706
        %v1708 = vpop.f32.mrb[0].mxu0
        %v1709 = vadd.f32 %v1383, %v1708
        %v1710 = vpop.f32.mrb[0].mxu0
        %v1711 = vadd.f32 %v1387, %v1710
        %1712 = vmatprep.mubr.bf16.mxu0 %v1339
        %1713 = vmatmul.mubr.bf16.gmra.mrb[0].mxu0 %v1338
        %v1714 = vpop.f32.mrb[0].mxu0
        %v1715 = vadd.f32 %v1383, %v1714
        %v1716 = vpop.f32.mrb[0].mxu0
        %v1717 = vadd.f32 %v1387, %v1716
        %v1718 = vpop.f32.mrb[0].mxu0
        %v1719 = vadd.f32 %v1383, %v1718
        %v1720 = vpop.f32.mrb[0].mxu0
        %v1721 = vadd.f32 %v1387, %v1720
        %1722 = vmatprep.mubr.bf16.mxu0 %v1341
        %1723 = vmatmul.mubr.bf16.gmra.mrb[0].mxu0 %v1340
        %v1724 = vpop.f32.mrb[0].mxu0
        %v1725 = vadd.f32 %v1383, %v1724
        %v1726 = vpop.f32.mrb[0].mxu0
        %v1727 = vadd.f32 %v1387, %v1726
        %v1728 = vpop.f32.mrb[0].mxu0
        %v1729 = vadd.f32 %v1383, %v1728
        %v1730 = vpop.f32.mrb[0].mxu0
        %v1731 = vadd.f32 %v1387, %v1730
        %1732 = vmatprep.mubr.bf16.mxu0 %v1343
        %1733 = vmatmul.mubr.bf16.gmra.mrb[0].mxu0 %v1342
        %v1734 = vpop.f32.mrb[0].mxu0
        %v1735 = vadd.f32 %v1383, %v1734
        %v1736 = vpop.f32.mrb[0].mxu0
        %v1737 = vadd.f32 %v1387, %v1736
        %v1738 = vpop.f32.mrb[0].mxu0
        %v1739 = vadd.f32 %v1383, %v1738
        %v1740 = vpop.f32.mrb[0].mxu0
        %v1741 = vadd.f32 %v1387, %v1740
        %1742 = vdwg.mxu0
        %v1743 = vmax.f32 %v1585, 0.0
        %v1744 = vmax.f32 %v1587, 0.0
        %v1745 = vmax.f32 %v1589, 0.0
        %v1746 = vmax.f32 %v1591, 0.0
        %v1747 = vmax.f32 %v1595, 0.0
        %v1748 = vmax.f32 %v1597, 0.0
        %v1749 = vmax.f32 %v1599, 0.0
        %v1750 = vmax.f32 %v1601, 0.0
        %v1751 = vmax.f32 %v1605, 0.0
        %v1752 = vmax.f32 %v1607, 0.0
        %v1753 = vmax.f32 %v1609, 0.0
        %v1754 = vmax.f32 %v1611, 0.0
        %v1755 = vmax.f32 %v1615, 0.0
        %v1756 = vmax.f32 %v1617, 0.0
        %v1757 = vmax.f32 %v1619, 0.0
        %v1758 = vmax.f32 %v1621, 0.0
        %v1759 = vmax.f32 %v1625, 0.0
        %v1760 = vmax.f32 %v1627, 0.0
        %v1761 = vmax.f32 %v1629, 0.0
        %v1762 = vmax.f32 %v1631, 0.0
        %v1763 = vmax.f32 %v1635, 0.0
        %v1764 = vmax.f32 %v1637, 0.0
        %v1765 = vmax.f32 %v1639, 0.0
        %v1766 = vmax.f32 %v1641, 0.0
        %v1767 = vmax.f32 %v1645, 0.0
        %v1768 = vmax.f32 %v1647, 0.0
        %v1769 = vmax.f32 %v1649, 0.0
        %v1770 = vmax.f32 %v1651, 0.0
        %v1771 = vmax.f32 %v1655, 0.0
        %v1772 = vmax.f32 %v1657, 0.0
        %v1773 = vmax.f32 %v1659, 0.0
        %v1774 = vmax.f32 %v1661, 0.0
        %v1775 = vmax.f32 %v1665, 0.0
        %v1776 = vmax.f32 %v1667, 0.0
        %v1777 = vmax.f32 %v1669, 0.0
        %v1778 = vmax.f32 %v1671, 0.0
        %v1779 = vmax.f32 %v1675, 0.0
        %v1780 = vmax.f32 %v1677, 0.0
        %v1781 = vmax.f32 %v1679, 0.0
        %v1782 = vmax.f32 %v1681, 0.0
        %v1783 = vmax.f32 %v1685, 0.0
        %v1784 = vmax.f32 %v1687, 0.0
        %v1785 = vmax.f32 %v1689, 0.0
        %v1786 = vmax.f32 %v1691, 0.0
        %v1787 = vmax.f32 %v1695, 0.0
        %v1788 = vmax.f32 %v1697, 0.0
        %v1789 = vmax.f32 %v1699, 0.0
        %v1790 = vmax.f32 %v1701, 0.0
        %v1791 = vmax.f32 %v1705, 0.0
        %v1792 = vmax.f32 %v1707, 0.0
        %v1793 = vmax.f32 %v1709, 0.0
        %v1794 = vmax.f32 %v1711, 0.0
        %v1795 = vmax.f32 %v1715, 0.0
        %v1796 = vmax.f32 %v1717, 0.0
        %v1797 = vmax.f32 %v1719, 0.0
        %v1798 = vmax.f32 %v1721, 0.0
        %v1799 = vmax.f32 %v1725, 0.0
        %v1800 = vmax.f32 %v1727, 0.0
        %v1801 = vmax.f32 %v1729, 0.0
        %v1802 = vmax.f32 %v1731, 0.0
        %v1803 = vmax.f32 %v1735, 0.0
        %v1804 = vmax.f32 %v1737, 0.0
        %v1805 = vmax.f32 %v1739, 0.0
        %v1806 = vmax.f32 %v1741, 0.0
        %v1807 = vpack.c.bf16 %v1745, %v1743
        %v1808 = vpack.c.bf16 %v1746, %v1744
        %v1809 = vpack.c.bf16 %v1749, %v1747
        %v1810 = vpack.c.bf16 %v1750, %v1748
        %v1811 = vpack.c.bf16 %v1753, %v1751
        %v1812 = vpack.c.bf16 %v1754, %v1752
        %v1813 = vpack.c.bf16 %v1757, %v1755
        %v1814 = vpack.c.bf16 %v1758, %v1756
        %v1815 = vpack.c.bf16 %v1761, %v1759
        %v1816 = vpack.c.bf16 %v1762, %v1760
        %v1817 = vpack.c.bf16 %v1765, %v1763
        %v1818 = vpack.c.bf16 %v1766, %v1764
        %v1819 = vpack.c.bf16 %v1769, %v1767
        %v1820 = vpack.c.bf16 %v1770, %v1768
        %v1821 = vpack.c.bf16 %v1773, %v1771
        %v1822 = vpack.c.bf16 %v1774, %v1772
        %v1823 = vpack.c.bf16 %v1777, %v1775
        %v1824 = vpack.c.bf16 %v1778, %v1776
        %v1825 = vpack.c.bf16 %v1781, %v1779
        %v1826 = vpack.c.bf16 %v1782, %v1780
        %v1827 = vpack.c.bf16 %v1785, %v1783
        %v1828 = vpack.c.bf16 %v1786, %v1784
        %v1829 = vpack.c.bf16 %v1789, %v1787
        %v1830 = vpack.c.bf16 %v1790, %v1788
        %v1831 = vpack.c.bf16 %v1793, %v1791
        %v1832 = vpack.c.bf16 %v1794, %v1792
        %v1833 = vpack.c.bf16 %v1797, %v1795
        %v1834 = vpack.c.bf16 %v1798, %v1796
        %v1835 = vpack.c.bf16 %v1801, %v1799
        %v1836 = vpack.c.bf16 %v1802, %v1800
        %v1837 = vpack.c.bf16 %v1805, %v1803
        %v1838 = vpack.c.bf16 %v1806, %v1804
        %v1839 = vld [vmem:[%s3] sm:$0xf]
        %v1840 = vld [vmem:[%s3 + $0x4] sm:$0xf]
        %v1841 = vld [vmem:[%s3 + $0x8] sm:$0xf]
        %v1842 = vld [vmem:[%s3 + $0xc] sm:$0xf]
        %v1843 = vld [vmem:[%s3 + $0x10] sm:$0xf]
        %v1844 = vld [vmem:[%s3 + $0x14] sm:$0xf]
        %v1845 = vld [vmem:[%s3 + $0x18] sm:$0xf]
        %v1846 = vld [vmem:[%s3 + $0x1c] sm:$0xf]
        %v1847 = vld [vmem:[%s3 + $0x20] sm:$0xf]
        %v1848 = vld [vmem:[%s3 + $0x24] sm:$0xf]
        %v1849 = vld [vmem:[%s3 + $0x28] sm:$0xf]
        %v1850 = vld [vmem:[%s3 + $0x2c] sm:$0xf]
        %v1851 = vld [vmem:[%s3 + $0x30] sm:$0xf]
        %v1852 = vld [vmem:[%s3 + $0x34] sm:$0xf]
        %v1853 = vld [vmem:[%s3 + $0x38] sm:$0xf]
        %v1854 = vld [vmem:[%s3 + $0x3c] sm:$0xf]
        %v1855 = vld [vmem:[%s3 + $0x40] sm:$0xf]
        %v1856 = vld [vmem:[%s3 + $0x44] sm:$0xf]
        %v1857 = vld [vmem:[%s3 + $0x48] sm:$0xf]
        %v1858 = vld [vmem:[%s3 + $0x4c] sm:$0xf]
        %v1859 = vld [vmem:[%s3 + $0x50] sm:$0xf]
        %v1860 = vld [vmem:[%s3 + $0x54] sm:$0xf]
        %v1861 = vld [vmem:[%s3 + $0x58] sm:$0xf]
        %v1862 = vld [vmem:[%s3 + $0x5c] sm:$0xf]
        %v1863 = vld [vmem:[%s3 + $0x60] sm:$0xf]
        %v1864 = vld [vmem:[%s3 + $0x64] sm:$0xf]
        %v1865 = vld [vmem:[%s3 + $0x68] sm:$0xf]
        %v1866 = vld [vmem:[%s3 + $0x6c] sm:$0xf]
        %v1867 = vld [vmem:[%s3 + $0x70] sm:$0xf]
        %v1868 = vld [vmem:[%s3 + $0x74] sm:$0xf]
        %v1869 = vld [vmem:[%s3 + $0x78] sm:$0xf]
        %v1870 = vld [vmem:[%s3 + $0x7c] sm:$0xf]
        %v1871 = vld [vmem:[%s7 + $0x3] ss:$0 sm:$0xff]
        %v1904 = vunpack.c.l.b16 %v1839
        %v1905 = vunpack.c.l.b16 %v1840
        %v1906 = vunpack.c.l.b16 %v1841
        %v1907 = vunpack.c.l.b16 %v1842
        %v1908 = vunpack.c.l.b16 %v1843
        %v1909 = vunpack.c.l.b16 %v1844
        %v1910 = vunpack.c.l.b16 %v1845
        %v1911 = vunpack.c.l.b16 %v1846
        %v1912 = vunpack.c.l.b16 %v1847
        %v1913 = vunpack.c.l.b16 %v1848
        %v1914 = vunpack.c.l.b16 %v1849
        %v1915 = vunpack.c.l.b16 %v1850
        %v1916 = vunpack.c.l.b16 %v1851
        %v1917 = vunpack.c.l.b16 %v1852
        %v1918 = vunpack.c.l.b16 %v1853
        %v1919 = vunpack.c.l.b16 %v1854
        %v1920 = vunpack.c.l.b16 %v1855
        %v1921 = vunpack.c.l.b16 %v1856
        %v1922 = vunpack.c.l.b16 %v1857
        %v1923 = vunpack.c.l.b16 %v1858
        %v1924 = vunpack.c.l.b16 %v1859
        %v1925 = vunpack.c.l.b16 %v1860
        %v1926 = vunpack.c.l.b16 %v1861
        %v1927 = vunpack.c.l.b16 %v1862
        %v1928 = vunpack.c.l.b16 %v1863
        %v1929 = vunpack.c.l.b16 %v1864
        %v1930 = vunpack.c.l.b16 %v1865
        %v1931 = vunpack.c.l.b16 %v1866
        %v1932 = vunpack.c.l.b16 %v1867
        %v1933 = vunpack.c.l.b16 %v1868
        %v1934 = vunpack.c.l.b16 %v1869
        %v1935 = vunpack.c.l.b16 %v1870
        %v1936 = vpack.c.b16 %v1905, %v1904
        %v1937 = vpack.c.b16 %v1907, %v1906
        %v1938 = vpack.c.b16 %v1909, %v1908
        %v1939 = vpack.c.b16 %v1911, %v1910
        %v1940 = vpack.c.b16 %v1913, %v1912
        %v1941 = vpack.c.b16 %v1915, %v1914
        %v1942 = vpack.c.b16 %v1917, %v1916
        %v1943 = vpack.c.b16 %v1919, %v1918
        %v1944 = vpack.c.b16 %v1921, %v1920
        %v1945 = vpack.c.b16 %v1923, %v1922
        %v1946 = vpack.c.b16 %v1925, %v1924
        %v1947 = vpack.c.b16 %v1927, %v1926
        %v1948 = vpack.c.b16 %v1929, %v1928
        %v1949 = vpack.c.b16 %v1931, %v1930
        %v1950 = vpack.c.b16 %v1933, %v1932
        %v1951 = vpack.c.b16 %v1935, %v1934
        %1968 = vmatprep.subr.bf16.mxu0 0
        %1969 = vmatpush1.bf16.msra.mxu0 %v1936
        %1970 = vmatprep.subr.bf16.mxu0 0
        %1971 = vmatpush1.bf16.msra.mxu0 %v1937
        %1972 = vmatprep.subr.bf16.mxu0 0
        %1973 = vmatpush1.bf16.msra.mxu0 %v1938
        %1974 = vmatprep.subr.bf16.mxu0 0
        %1975 = vmatpush1.bf16.msra.mxu0 %v1939
        %1976 = vmatprep.subr.bf16.mxu0 0
        %1977 = vmatpush1.bf16.msra.mxu0 %v1940
        %1978 = vmatprep.subr.bf16.mxu0 0
        %1979 = vmatpush1.bf16.msra.mxu0 %v1941
        %1980 = vmatprep.subr.bf16.mxu0 0
        %1981 = vmatpush1.bf16.msra.mxu0 %v1942
        %1982 = vmatprep.subr.bf16.mxu0 0
        %1983 = vmatpush1.bf16.msra.mxu0 %v1943
        %1984 = vmatprep.subr.bf16.mxu0 0
        %1985 = vmatpush1.bf16.msra.mxu0 %v1944
        %1986 = vmatprep.subr.bf16.mxu0 0
        %1987 = vmatpush1.bf16.msra.mxu0 %v1945
        %1988 = vmatprep.subr.bf16.mxu0 0
        %1989 = vmatpush1.bf16.msra.mxu0 %v1946
        %1990 = vmatprep.subr.bf16.mxu0 0
        %1991 = vmatpush1.bf16.msra.mxu0 %v1947
        %1992 = vmatprep.subr.bf16.mxu0 0
        %1993 = vmatpush1.bf16.msra.mxu0 %v1948
        %1994 = vmatprep.subr.bf16.mxu0 0
        %1995 = vmatpush1.bf16.msra.mxu0 %v1949
        %1996 = vmatprep.subr.bf16.mxu0 0
        %1997 = vmatpush1.bf16.msra.mxu0 %v1950
        %1998 = vmatprep.subr.bf16.mxu0 0
        %1999 = vmatpush1.bf16.msra.mxu0 %v1951
        %2000 = vmatprep.mubr.bf16.mxu0 %v1808
        %2001 = vmatmul.mubr.bf16.gmra.mrb[0].mxu0 %v1807
        %v2002 = vpop.f32.mrb[0].mxu0
        %v2003 = vadd.f32 %v1871, %v2002
        %v2004 = vpop.f32.mrb[0].mxu0
        %v2005 = vpop.f32.mrb[0].mxu0
        %v2006 = vadd.f32 %v1871, %v2005
        %v2007 = vpop.f32.mrb[0].mxu0
        %2008 = vmatprep.mubr.bf16.mxu0 %v1810
        %2009 = vmatmul.mubr.bf16.gmra.mrb[0].mxu0 %v1809
        %v2010 = vpop.f32.mrb[0].mxu0
        %v2011 = vadd.f32 %v1871, %v2010
        %v2012 = vpop.f32.mrb[0].mxu0
        %v2013 = vpop.f32.mrb[0].mxu0
        %v2014 = vadd.f32 %v1871, %v2013
        %v2015 = vpop.f32.mrb[0].mxu0
        %2016 = vmatprep.mubr.bf16.mxu0 %v1812
        %2017 = vmatmul.mubr.bf16.gmra.mrb[0].mxu0 %v1811
        %v2018 = vpop.f32.mrb[0].mxu0
        %v2019 = vadd.f32 %v1871, %v2018
        %v2020 = vpop.f32.mrb[0].mxu0
        %v2021 = vpop.f32.mrb[0].mxu0
        %v2022 = vadd.f32 %v1871, %v2021
        %v2023 = vpop.f32.mrb[0].mxu0
        %2024 = vmatprep.mubr.bf16.mxu0 %v1814
        %2025 = vmatmul.mubr.bf16.gmra.mrb[0].mxu0 %v1813
        %v2026 = vpop.f32.mrb[0].mxu0
        %v2027 = vadd.f32 %v1871, %v2026
        %v2028 = vpop.f32.mrb[0].mxu0
        %v2029 = vpop.f32.mrb[0].mxu0
        %v2030 = vadd.f32 %v1871, %v2029
        %v2031 = vpop.f32.mrb[0].mxu0
        %2032 = vmatprep.mubr.bf16.mxu0 %v1816
        %2033 = vmatmul.mubr.bf16.gmra.mrb[0].mxu0 %v1815
        %v2034 = vpop.f32.mrb[0].mxu0
        %v2035 = vadd.f32 %v1871, %v2034
        %v2036 = vpop.f32.mrb[0].mxu0
        %v2037 = vpop.f32.mrb[0].mxu0
        %v2038 = vadd.f32 %v1871, %v2037
        %v2039 = vpop.f32.mrb[0].mxu0
        %2040 = vmatprep.mubr.bf16.mxu0 %v1818
        %2041 = vmatmul.mubr.bf16.gmra.mrb[0].mxu0 %v1817
        %v2042 = vpop.f32.mrb[0].mxu0
        %v2043 = vadd.f32 %v1871, %v2042
        %v2044 = vpop.f32.mrb[0].mxu0
        %v2045 = vpop.f32.mrb[0].mxu0
        %v2046 = vadd.f32 %v1871, %v2045
        %v2047 = vpop.f32.mrb[0].mxu0
        %2048 = vmatprep.mubr.bf16.mxu0 %v1820
        %2049 = vmatmul.mubr.bf16.gmra.mrb[0].mxu0 %v1819
        %v2050 = vpop.f32.mrb[0].mxu0
        %v2051 = vadd.f32 %v1871, %v2050
        %v2052 = vpop.f32.mrb[0].mxu0
        %v2053 = vpop.f32.mrb[0].mxu0
        %v2054 = vadd.f32 %v1871, %v2053
        %v2055 = vpop.f32.mrb[0].mxu0
        %2056 = vmatprep.mubr.bf16.mxu0 %v1822
        %2057 = vmatmul.mubr.bf16.gmra.mrb[0].mxu0 %v1821
        %v2058 = vpop.f32.mrb[0].mxu0
        %v2059 = vadd.f32 %v1871, %v2058
        %v2060 = vpop.f32.mrb[0].mxu0
        %v2061 = vpop.f32.mrb[0].mxu0
        %v2062 = vadd.f32 %v1871, %v2061
        %v2063 = vpop.f32.mrb[0].mxu0
        %2064 = vmatprep.mubr.bf16.mxu0 %v1824
        %2065 = vmatmul.mubr.bf16.gmra.mrb[0].mxu0 %v1823
        %v2066 = vpop.f32.mrb[0].mxu0
        %v2067 = vadd.f32 %v1871, %v2066
        %v2068 = vpop.f32.mrb[0].mxu0
        %v2069 = vpop.f32.mrb[0].mxu0
        %v2070 = vadd.f32 %v1871, %v2069
        %v2071 = vpop.f32.mrb[0].mxu0
        %2072 = vmatprep.mubr.bf16.mxu0 %v1826
        %2073 = vmatmul.mubr.bf16.gmra.mrb[0].mxu0 %v1825
        %v2074 = vpop.f32.mrb[0].mxu0
        %v2075 = vadd.f32 %v1871, %v2074
        %v2076 = vpop.f32.mrb[0].mxu0
        %v2077 = vpop.f32.mrb[0].mxu0
        %v2078 = vadd.f32 %v1871, %v2077
        %v2079 = vpop.f32.mrb[0].mxu0
        %2080 = vmatprep.mubr.bf16.mxu0 %v1828
        %2081 = vmatmul.mubr.bf16.gmra.mrb[0].mxu0 %v1827
        %v2082 = vpop.f32.mrb[0].mxu0
        %v2083 = vadd.f32 %v1871, %v2082
        %v2084 = vpop.f32.mrb[0].mxu0
        %v2085 = vpop.f32.mrb[0].mxu0
        %v2086 = vadd.f32 %v1871, %v2085
        %v2087 = vpop.f32.mrb[0].mxu0
        %2088 = vmatprep.mubr.bf16.mxu0 %v1830
        %2089 = vmatmul.mubr.bf16.gmra.mrb[0].mxu0 %v1829
        %v2090 = vpop.f32.mrb[0].mxu0
        %v2091 = vadd.f32 %v1871, %v2090
        %v2092 = vpop.f32.mrb[0].mxu0
        %v2093 = vpop.f32.mrb[0].mxu0
        %v2094 = vadd.f32 %v1871, %v2093
        %v2095 = vpop.f32.mrb[0].mxu0
        %2096 = vmatprep.mubr.bf16.mxu0 %v1832
        %2097 = vmatmul.mubr.bf16.gmra.mrb[0].mxu0 %v1831
        %v2098 = vpop.f32.mrb[0].mxu0
        %v2099 = vadd.f32 %v1871, %v2098
        %v2100 = vpop.f32.mrb[0].mxu0
        %v2101 = vpop.f32.mrb[0].mxu0
        %v2102 = vadd.f32 %v1871, %v2101
        %v2103 = vpop.f32.mrb[0].mxu0
        %2104 = vmatprep.mubr.bf16.mxu0 %v1834
        %2105 = vmatmul.mubr.bf16.gmra.mrb[0].mxu0 %v1833
        %v2106 = vpop.f32.mrb[0].mxu0
        %v2107 = vadd.f32 %v1871, %v2106
        %v2108 = vpop.f32.mrb[0].mxu0
        %v2109 = vpop.f32.mrb[0].mxu0
        %v2110 = vadd.f32 %v1871, %v2109
        %v2111 = vpop.f32.mrb[0].mxu0
        %2112 = vmatprep.mubr.bf16.mxu0 %v1836
        %2113 = vmatmul.mubr.bf16.gmra.mrb[0].mxu0 %v1835
        %v2114 = vpop.f32.mrb[0].mxu0
        %v2115 = vadd.f32 %v1871, %v2114
        %v2116 = vpop.f32.mrb[0].mxu0
        %v2117 = vpop.f32.mrb[0].mxu0
        %v2118 = vadd.f32 %v1871, %v2117
        %v2119 = vpop.f32.mrb[0].mxu0
        %2120 = vmatprep.mubr.bf16.mxu0 %v1838
        %2121 = vmatmul.mubr.bf16.gmra.mrb[0].mxu0 %v1837
        %v2122 = vpop.f32.mrb[0].mxu0
        %v2123 = vadd.f32 %v1871, %v2122
        %v2124 = vpop.f32.mrb[0].mxu0
        %v2125 = vpop.f32.mrb[0].mxu0
        %v2126 = vadd.f32 %v1871, %v2125
        %v2127 = vpop.f32.mrb[0].mxu0
        %2128 = vdwg.mxu0
        %v2129 = vmax.f32 %v2003, 0.0
        %v2130 = vmax.f32 %v2006, 0.0
        %v2131 = vmax.f32 %v2011, 0.0
        %v2132 = vmax.f32 %v2014, 0.0
        %v2133 = vmax.f32 %v2019, 0.0
        %v2134 = vmax.f32 %v2022, 0.0
        %v2135 = vmax.f32 %v2027, 0.0
        %v2136 = vmax.f32 %v2030, 0.0
        %v2137 = vmax.f32 %v2035, 0.0
        %v2138 = vmax.f32 %v2038, 0.0
        %v2139 = vmax.f32 %v2043, 0.0
        %v2140 = vmax.f32 %v2046, 0.0
        %v2141 = vmax.f32 %v2051, 0.0
        %v2142 = vmax.f32 %v2054, 0.0
        %v2143 = vmax.f32 %v2059, 0.0
        %v2144 = vmax.f32 %v2062, 0.0
        %v2145 = vmax.f32 %v2067, 0.0
        %v2146 = vmax.f32 %v2070, 0.0
        %v2147 = vmax.f32 %v2075, 0.0
        %v2148 = vmax.f32 %v2078, 0.0
        %v2149 = vmax.f32 %v2083, 0.0
        %v2150 = vmax.f32 %v2086, 0.0
        %v2151 = vmax.f32 %v2091, 0.0
        %v2152 = vmax.f32 %v2094, 0.0
        %v2153 = vmax.f32 %v2099, 0.0
        %v2154 = vmax.f32 %v2102, 0.0
        %v2155 = vmax.f32 %v2107, 0.0
        %v2156 = vmax.f32 %v2110, 0.0
        %v2157 = vmax.f32 %v2115, 0.0
        %v2158 = vmax.f32 %v2118, 0.0
        %v2159 = vmax.f32 %v2123, 0.0
        %v2160 = vmax.f32 %v2126, 0.0
        %v2161 = vpack.c.bf16 %v2130, %v2129
        %v2162 = vpack.c.bf16 %v2132, %v2131
        %v2163 = vpack.c.bf16 %v2134, %v2133
        %v2164 = vpack.c.bf16 %v2136, %v2135
        %v2165 = vpack.c.bf16 %v2138, %v2137
        %v2166 = vpack.c.bf16 %v2140, %v2139
        %v2167 = vpack.c.bf16 %v2142, %v2141
        %v2168 = vpack.c.bf16 %v2144, %v2143
        %v2169 = vpack.c.bf16 %v2146, %v2145
        %v2170 = vpack.c.bf16 %v2148, %v2147
        %v2171 = vpack.c.bf16 %v2150, %v2149
        %v2172 = vpack.c.bf16 %v2152, %v2151
        %v2173 = vpack.c.bf16 %v2154, %v2153
        %v2174 = vpack.c.bf16 %v2156, %v2155
        %v2175 = vpack.c.bf16 %v2158, %v2157
        %v2176 = vpack.c.bf16 %v2160, %v2159
        %v2177 = vld [vmem:[%s5] sm:$0xff]
        %v2178 = vld [vmem:[%s5 + $0x8] sm:$0xf]
        %v2179 = vld [vmem:[%s5 + $0xc] sm:$0xff]
        %v2180 = vld [vmem:[%s5 + $0x14] sm:$0xf]
        %v2181 = vld [vmem:[%s5 + $0x18] sm:$0xff]
        %v2182 = vld [vmem:[%s5 + $0x20] sm:$0xf]
        %v2183 = vld [vmem:[%s5 + $0x24] sm:$0xff]
        %v2184 = vld [vmem:[%s5 + $0x2c] sm:$0xf]
        %v2185 = vld [vmem:[%s5 + $0x30] sm:$0xff]
        %v2186 = vld [vmem:[%s5 + $0x38] sm:$0xf]
        %v2187 = vld [vmem:[%s5 + $0x3c] sm:$0xff]
        %v2188 = vld [vmem:[%s5 + $0x44] sm:$0xf]
        %v2189 = vld [vmem:[%s5 + $0x48] sm:$0xff]
        %v2190 = vld [vmem:[%s5 + $0x50] sm:$0xf]
        %v2191 = vld [vmem:[%s5 + $0x54] sm:$0xff]
        %v2192 = vld [vmem:[%s5 + $0x5c] sm:$0xf]
        %v2209 = vunpack.c.l.b16 %v2177
        %v2210 = vunpack.c.h.b16 %v2177
        %v2211 = vunpack.c.l.b16 %v2178
        %v2212 = vunpack.c.l.b16 %v2179
        %v2213 = vunpack.c.h.b16 %v2179
        %v2214 = vunpack.c.l.b16 %v2180
        %v2215 = vunpack.c.l.b16 %v2181
        %v2216 = vunpack.c.h.b16 %v2181
        %v2217 = vunpack.c.l.b16 %v2182
        %v2218 = vunpack.c.l.b16 %v2183
        %v2219 = vunpack.c.h.b16 %v2183
        %v2220 = vunpack.c.l.b16 %v2184
        %v2221 = vunpack.c.l.b16 %v2185
        %v2222 = vunpack.c.h.b16 %v2185
        %v2223 = vunpack.c.l.b16 %v2186
        %v2224 = vunpack.c.l.b16 %v2187
        %v2225 = vunpack.c.h.b16 %v2187
        %v2226 = vunpack.c.l.b16 %v2188
        %v2227 = vunpack.c.l.b16 %v2189
        %v2228 = vunpack.c.h.b16 %v2189
        %v2229 = vunpack.c.l.b16 %v2190
        %v2230 = vunpack.c.l.b16 %v2191
        %v2231 = vunpack.c.h.b16 %v2191
        %v2232 = vunpack.c.l.b16 %v2192
        %v2233 = vpack.c.b16 %v2212, %v2209
        %v2234 = vpack.c.b16 %v2213, %v2210
        %v2235 = vpack.c.b16 %v2214, %v2211
        %v2236 = vpack.c.b16 %v2218, %v2215
        %v2237 = vpack.c.b16 %v2219, %v2216
        %v2238 = vpack.c.b16 %v2220, %v2217
        %v2239 = vpack.c.b16 %v2224, %v2221
        %v2240 = vpack.c.b16 %v2225, %v2222
        %v2241 = vpack.c.b16 %v2226, %v2223
        %v2242 = vpack.c.b16 %v2230, %v2227
        %v2243 = vpack.c.b16 %v2231, %v2228
        %v2244 = vpack.c.b16 %v2232, %v2229
        %2257 = vmatprep.subr.bf16.mxu0 %v2234
        %2258 = vmatpush1.bf16.msra.mxu0 %v2233
        %2259 = vmatprep.subr.bf16.mxu0 %v2237
        %2260 = vmatpush1.bf16.msra.mxu0 %v2236
        %2261 = vmatprep.subr.bf16.mxu0 %v2240
        %2262 = vmatpush1.bf16.msra.mxu0 %v2239
        %2263 = vmatprep.subr.bf16.mxu0 %v2243
        %2264 = vmatpush1.bf16.msra.mxu0 %v2242
        %2265 = vmatprep.subr.bf16.mxu0 0
        %2266 = vmatpush1.bf16.msra.mxu0 0
        %2267 = vmatprep.subr.bf16.mxu0 0
        %2268 = vmatpush1.bf16.msra.mxu0 0
        %2269 = vmatprep.subr.bf16.mxu0 0
        %2270 = vmatpush1.bf16.msra.mxu0 0
        %2271 = vmatprep.subr.bf16.mxu0 0
        %2272 = vmatpush1.bf16.msra.mxu0 0
        %2273 = vmatprep.subr.bf16.mxu0 0
        %2274 = vmatpush1.bf16.msra.mxu0 0
        %2275 = vmatprep.subr.bf16.mxu0 0
        %2276 = vmatpush1.bf16.msra.mxu0 0
        %2277 = vmatprep.subr.bf16.mxu0 0
        %2278 = vmatpush1.bf16.msra.mxu0 0
        %2279 = vmatprep.subr.bf16.mxu0 0
        %2280 = vmatpush1.bf16.msra.mxu0 0
        %2281 = vmatprep.subr.bf16.mxu0 0
        %2282 = vmatpush1.bf16.msra.mxu0 0
        %2283 = vmatprep.subr.bf16.mxu0 0
        %2284 = vmatpush1.bf16.msra.mxu0 0
        %2285 = vmatprep.subr.bf16.mxu0 0
        %2286 = vmatpush1.bf16.msra.mxu0 0
        %2287 = vmatprep.subr.bf16.mxu0 0
        %2288 = vmatpush1.bf16.msra.mxu0 0
        %2289 = vmatprep.mubr.bf16.mxu0 0
        %2290 = vmatmul.mubr.bf16.gmra.mrb[0].mxu0 %v514
        %v2291 = vpop.f32.mrb[0].mxu0
        %v2292 = vadd.f32 0.0, %v2291
        %v2293 = vpop.f32.mrb[0].mxu0
        %v2294 = vadd.f32 0.0, %v2293
        %v2295 = vpop.f32.mrb[0].mxu0
        %v2296 = vadd.f32 0.0, %v2295
        %v2297 = vpop.f32.mrb[0].mxu0
        %v2298 = vadd.f32 0.0, %v2297
        %2299 = vmatprep.mubr.bf16.mxu0 0
        %2300 = vmatmul.mubr.bf16.gmra.mrb[0].mxu0 %v517
        %v2301 = vpop.f32.mrb[0].mxu0
        %v2302 = vadd.f32 0.0, %v2301
        %v2303 = vpop.f32.mrb[0].mxu0
        %v2304 = vadd.f32 0.0, %v2303
        %v2305 = vpop.f32.mrb[0].mxu0
        %v2306 = vadd.f32 0.0, %v2305
        %v2307 = vpop.f32.mrb[0].mxu0
        %v2308 = vadd.f32 0.0, %v2307
        %2309 = vmatprep.mubr.bf16.mxu0 0
        %2310 = vmatmul.mubr.bf16.gmra.mrb[0].mxu0 %v520
        %v2311 = vpop.f32.mrb[0].mxu0
        %v2312 = vadd.f32 0.0, %v2311
        %v2313 = vpop.f32.mrb[0].mxu0
        %v2314 = vadd.f32 0.0, %v2313
        %v2315 = vpop.f32.mrb[0].mxu0
        %v2316 = vadd.f32 0.0, %v2315
        %v2317 = vpop.f32.mrb[0].mxu0
        %v2318 = vadd.f32 0.0, %v2317
        %2319 = vmatprep.mubr.bf16.mxu0 0
        %2320 = vmatmul.mubr.bf16.gmra.mrb[0].mxu0 %v523
        %v2321 = vpop.f32.mrb[0].mxu0
        %v2322 = vadd.f32 0.0, %v2321
        %v2323 = vpop.f32.mrb[0].mxu0
        %v2324 = vadd.f32 0.0, %v2323
        %v2325 = vpop.f32.mrb[0].mxu0
        %v2326 = vadd.f32 0.0, %v2325
        %v2327 = vpop.f32.mrb[0].mxu0
        %v2328 = vadd.f32 0.0, %v2327
        %2329 = vmatprep.mubr.bf16.mxu0 0
        %2330 = vmatmul.mubr.bf16.gmra.mrb[0].mxu0 %v526
        %v2331 = vpop.f32.mrb[0].mxu0
        %v2332 = vadd.f32 0.0, %v2331
        %v2333 = vpop.f32.mrb[0].mxu0
        %v2334 = vadd.f32 0.0, %v2333
        %v2335 = vpop.f32.mrb[0].mxu0
        %v2336 = vadd.f32 0.0, %v2335
        %v2337 = vpop.f32.mrb[0].mxu0
        %v2338 = vadd.f32 0.0, %v2337
        %2339 = vmatprep.mubr.bf16.mxu0 0
        %2340 = vmatmul.mubr.bf16.gmra.mrb[0].mxu0 %v529
        %v2341 = vpop.f32.mrb[0].mxu0
        %v2342 = vadd.f32 0.0, %v2341
        %v2343 = vpop.f32.mrb[0].mxu0
        %v2344 = vadd.f32 0.0, %v2343
        %v2345 = vpop.f32.mrb[0].mxu0
        %v2346 = vadd.f32 0.0, %v2345
        %v2347 = vpop.f32.mrb[0].mxu0
        %v2348 = vadd.f32 0.0, %v2347
        %2349 = vmatprep.mubr.bf16.mxu0 0
        %2350 = vmatmul.mubr.bf16.gmra.mrb[0].mxu0 %v532
        %v2351 = vpop.f32.mrb[0].mxu0
        %v2352 = vadd.f32 0.0, %v2351
        %v2353 = vpop.f32.mrb[0].mxu0
        %v2354 = vadd.f32 0.0, %v2353
        %v2355 = vpop.f32.mrb[0].mxu0
        %v2356 = vadd.f32 0.0, %v2355
        %v2357 = vpop.f32.mrb[0].mxu0
        %v2358 = vadd.f32 0.0, %v2357
        %2359 = vmatprep.mubr.bf16.mxu0 0
        %2360 = vmatmul.mubr.bf16.gmra.mrb[0].mxu0 %v535
        %v2361 = vpop.f32.mrb[0].mxu0
        %v2362 = vadd.f32 0.0, %v2361
        %v2363 = vpop.f32.mrb[0].mxu0
        %v2364 = vadd.f32 0.0, %v2363
        %v2365 = vpop.f32.mrb[0].mxu0
        %v2366 = vadd.f32 0.0, %v2365
        %v2367 = vpop.f32.mrb[0].mxu0
        %v2368 = vadd.f32 0.0, %v2367
        %2369 = vmatprep.mubr.bf16.mxu0 0
        %2370 = vmatmul.mubr.bf16.gmra.mrb[0].mxu0 %v538
        %v2371 = vpop.f32.mrb[0].mxu0
        %v2372 = vadd.f32 0.0, %v2371
        %v2373 = vpop.f32.mrb[0].mxu0
        %v2374 = vadd.f32 0.0, %v2373
        %v2375 = vpop.f32.mrb[0].mxu0
        %v2376 = vadd.f32 0.0, %v2375
        %v2377 = vpop.f32.mrb[0].mxu0
        %v2378 = vadd.f32 0.0, %v2377
        %2379 = vmatprep.mubr.bf16.mxu0 0
        %2380 = vmatmul.mubr.bf16.gmra.mrb[0].mxu0 %v541
        %v2381 = vpop.f32.mrb[0].mxu0
        %v2382 = vadd.f32 0.0, %v2381
        %v2383 = vpop.f32.mrb[0].mxu0
        %v2384 = vadd.f32 0.0, %v2383
        %v2385 = vpop.f32.mrb[0].mxu0
        %v2386 = vadd.f32 0.0, %v2385
        %v2387 = vpop.f32.mrb[0].mxu0
        %v2388 = vadd.f32 0.0, %v2387
        %2389 = vmatprep.mubr.bf16.mxu0 0
        %2390 = vmatmul.mubr.bf16.gmra.mrb[0].mxu0 %v544
        %v2391 = vpop.f32.mrb[0].mxu0
        %v2392 = vadd.f32 0.0, %v2391
        %v2393 = vpop.f32.mrb[0].mxu0
        %v2394 = vadd.f32 0.0, %v2393
        %v2395 = vpop.f32.mrb[0].mxu0
        %v2396 = vadd.f32 0.0, %v2395
        %v2397 = vpop.f32.mrb[0].mxu0
        %v2398 = vadd.f32 0.0, %v2397
        %2399 = vmatprep.mubr.bf16.mxu0 0
        %2400 = vmatmul.mubr.bf16.gmra.mrb[0].mxu0 %v547
        %v2401 = vpop.f32.mrb[0].mxu0
        %v2402 = vadd.f32 0.0, %v2401
        %v2403 = vpop.f32.mrb[0].mxu0
        %v2404 = vadd.f32 0.0, %v2403
        %v2405 = vpop.f32.mrb[0].mxu0
        %v2406 = vadd.f32 0.0, %v2405
        %v2407 = vpop.f32.mrb[0].mxu0
        %v2408 = vadd.f32 0.0, %v2407
        %2409 = vmatprep.mubr.bf16.mxu0 0
        %2410 = vmatmul.mubr.bf16.gmra.mrb[0].mxu0 %v550
        %v2411 = vpop.f32.mrb[0].mxu0
        %v2412 = vadd.f32 0.0, %v2411
        %v2413 = vpop.f32.mrb[0].mxu0
        %v2414 = vadd.f32 0.0, %v2413
        %v2415 = vpop.f32.mrb[0].mxu0
        %v2416 = vadd.f32 0.0, %v2415
        %v2417 = vpop.f32.mrb[0].mxu0
        %v2418 = vadd.f32 0.0, %v2417
        %2419 = vmatprep.mubr.bf16.mxu0 0
        %2420 = vmatmul.mubr.bf16.gmra.mrb[0].mxu0 %v553
        %v2421 = vpop.f32.mrb[0].mxu0
        %v2422 = vadd.f32 0.0, %v2421
        %v2423 = vpop.f32.mrb[0].mxu0
        %v2424 = vadd.f32 0.0, %v2423
        %v2425 = vpop.f32.mrb[0].mxu0
        %v2426 = vadd.f32 0.0, %v2425
        %v2427 = vpop.f32.mrb[0].mxu0
        %v2428 = vadd.f32 0.0, %v2427
        %2429 = vmatprep.mubr.bf16.mxu0 0
        %2430 = vmatmul.mubr.bf16.gmra.mrb[0].mxu0 %v556
        %v2431 = vpop.f32.mrb[0].mxu0
        %v2432 = vadd.f32 0.0, %v2431
        %v2433 = vpop.f32.mrb[0].mxu0
        %v2434 = vadd.f32 0.0, %v2433
        %v2435 = vpop.f32.mrb[0].mxu0
        %v2436 = vadd.f32 0.0, %v2435
        %v2437 = vpop.f32.mrb[0].mxu0
        %v2438 = vadd.f32 0.0, %v2437
        %2439 = vmatprep.mubr.bf16.mxu0 0
        %2440 = vmatmul.mubr.bf16.gmra.mrb[0].mxu0 %v559
        %v2441 = vpop.f32.mrb[0].mxu0
        %v2442 = vadd.f32 0.0, %v2441
        %v2443 = vpop.f32.mrb[0].mxu0
        %v2444 = vadd.f32 0.0, %v2443
        %v2445 = vpop.f32.mrb[0].mxu0
        %v2446 = vadd.f32 0.0, %v2445
        %v2447 = vpop.f32.mrb[0].mxu0
        %v2448 = vadd.f32 0.0, %v2447
        %2449 = vdwg.mxu0
        %2450 = vmatprep.subr.bf16.mxu0 0
        %2451 = vmatpush1.bf16.msra.mxu0 %v2235
        %2452 = vmatprep.subr.bf16.mxu0 0
        %2453 = vmatpush1.bf16.msra.mxu0 %v2238
        %2454 = vmatprep.subr.bf16.mxu0 0
        %2455 = vmatpush1.bf16.msra.mxu0 %v2241
        %2456 = vmatprep.subr.bf16.mxu0 0
        %2457 = vmatpush1.bf16.msra.mxu0 %v2244
        %2458 = vmatprep.subr.bf16.mxu0 0
        %2459 = vmatpush1.bf16.msra.mxu0 0
        %2460 = vmatprep.subr.bf16.mxu0 0
        %2461 = vmatpush1.bf16.msra.mxu0 0
        %2462 = vmatprep.subr.bf16.mxu0 0
        %2463 = vmatpush1.bf16.msra.mxu0 0
        %2464 = vmatprep.subr.bf16.mxu0 0
        %2465 = vmatpush1.bf16.msra.mxu0 0
        %2466 = vmatprep.subr.bf16.mxu0 0
        %2467 = vmatpush1.bf16.msra.mxu0 0
        %2468 = vmatprep.subr.bf16.mxu0 0
        %2469 = vmatpush1.bf16.msra.mxu0 0
        %2470 = vmatprep.subr.bf16.mxu0 0
        %2471 = vmatpush1.bf16.msra.mxu0 0
        %2472 = vmatprep.subr.bf16.mxu0 0
        %2473 = vmatpush1.bf16.msra.mxu0 0
        %2474 = vmatprep.subr.bf16.mxu0 0
        %2475 = vmatpush1.bf16.msra.mxu0 0
        %2476 = vmatprep.subr.bf16.mxu0 0
        %2477 = vmatpush1.bf16.msra.mxu0 0
        %2478 = vmatprep.subr.bf16.mxu0 0
        %2479 = vmatpush1.bf16.msra.mxu0 0
        %2480 = vmatprep.subr.bf16.mxu0 0
        %2481 = vmatpush1.bf16.msra.mxu0 0
        %2482 = vmatprep.mubr.bf16.mxu0 0
        %2483 = vmatmul.mubr.bf16.gmra.mrb[0].mxu0 %v514
        %v2484 = vpop.f32.mrb[0].mxu0
        %v2485 = vadd.f32 0.0, %v2484
        %v2486 = vpop.f32.mrb[0].mxu0
        %v2487 = vpop.f32.mrb[0].mxu0
        %v2488 = vadd.f32 0.0, %v2487
        %v2489 = vpop.f32.mrb[0].mxu0
        %2490 = vmatprep.mubr.bf16.mxu0 0
        %2491 = vmatmul.mubr.bf16.gmra.mrb[0].mxu0 %v517
        %v2492 = vpop.f32.mrb[0].mxu0
        %v2493 = vadd.f32 0.0, %v2492
        %v2494 = vpop.f32.mrb[0].mxu0
        %v2495 = vpop.f32.mrb[0].mxu0
        %v2496 = vadd.f32 0.0, %v2495
        %v2497 = vpop.f32.mrb[0].mxu0
        %2498 = vmatprep.mubr.bf16.mxu0 0
        %2499 = vmatmul.mubr.bf16.gmra.mrb[0].mxu0 %v520
        %v2500 = vpop.f32.mrb[0].mxu0
        %v2501 = vadd.f32 0.0, %v2500
        %v2502 = vpop.f32.mrb[0].mxu0
        %v2503 = vpop.f32.mrb[0].mxu0
        %v2504 = vadd.f32 0.0, %v2503
        %v2505 = vpop.f32.mrb[0].mxu0
        %2506 = vmatprep.mubr.bf16.mxu0 0
        %2507 = vmatmul.mubr.bf16.gmra.mrb[0].mxu0 %v523
        %v2508 = vpop.f32.mrb[0].mxu0
        %v2509 = vadd.f32 0.0, %v2508
        %v2510 = vpop.f32.mrb[0].mxu0
        %v2511 = vpop.f32.mrb[0].mxu0
        %v2512 = vadd.f32 0.0, %v2511
        %v2513 = vpop.f32.mrb[0].mxu0
        %2514 = vmatprep.mubr.bf16.mxu0 0
        %2515 = vmatmul.mubr.bf16.gmra.mrb[0].mxu0 %v526
        %v2516 = vpop.f32.mrb[0].mxu0
        %v2517 = vadd.f32 0.0, %v2516
        %v2518 = vpop.f32.mrb[0].mxu0
        %v2519 = vpop.f32.mrb[0].mxu0
        %v2520 = vadd.f32 0.0, %v2519
        %v2521 = vpop.f32.mrb[0].mxu0
        %2522 = vmatprep.mubr.bf16.mxu0 0
        %2523 = vmatmul.mubr.bf16.gmra.mrb[0].mxu0 %v529
        %v2524 = vpop.f32.mrb[0].mxu0
        %v2525 = vadd.f32 0.0, %v2524
        %v2526 = vpop.f32.mrb[0].mxu0
        %v2527 = vpop.f32.mrb[0].mxu0
        %v2528 = vadd.f32 0.0, %v2527
        %v2529 = vpop.f32.mrb[0].mxu0
        %2530 = vmatprep.mubr.bf16.mxu0 0
        %2531 = vmatmul.mubr.bf16.gmra.mrb[0].mxu0 %v532
        %v2532 = vpop.f32.mrb[0].mxu0
        %v2533 = vadd.f32 0.0, %v2532
        %v2534 = vpop.f32.mrb[0].mxu0
        %v2535 = vpop.f32.mrb[0].mxu0
        %v2536 = vadd.f32 0.0, %v2535
        %v2537 = vpop.f32.mrb[0].mxu0
        %2538 = vmatprep.mubr.bf16.mxu0 0
        %2539 = vmatmul.mubr.bf16.gmra.mrb[0].mxu0 %v535
        %v2540 = vpop.f32.mrb[0].mxu0
        %v2541 = vadd.f32 0.0, %v2540
        %v2542 = vpop.f32.mrb[0].mxu0
        %v2543 = vpop.f32.mrb[0].mxu0
        %v2544 = vadd.f32 0.0, %v2543
        %v2545 = vpop.f32.mrb[0].mxu0
        %2546 = vmatprep.mubr.bf16.mxu0 0
        %2547 = vmatmul.mubr.bf16.gmra.mrb[0].mxu0 %v538
        %v2548 = vpop.f32.mrb[0].mxu0
        %v2549 = vadd.f32 0.0, %v2548
        %v2550 = vpop.f32.mrb[0].mxu0
        %v2551 = vpop.f32.mrb[0].mxu0
        %v2552 = vadd.f32 0.0, %v2551
        %v2553 = vpop.f32.mrb[0].mxu0
        %2554 = vmatprep.mubr.bf16.mxu0 0
        %2555 = vmatmul.mubr.bf16.gmra.mrb[0].mxu0 %v541
        %v2556 = vpop.f32.mrb[0].mxu0
        %v2557 = vadd.f32 0.0, %v2556
        %v2558 = vpop.f32.mrb[0].mxu0
        %v2559 = vpop.f32.mrb[0].mxu0
        %v2560 = vadd.f32 0.0, %v2559
        %v2561 = vpop.f32.mrb[0].mxu0
        %2562 = vmatprep.mubr.bf16.mxu0 0
        %2563 = vmatmul.mubr.bf16.gmra.mrb[0].mxu0 %v544
        %v2564 = vpop.f32.mrb[0].mxu0
        %v2565 = vadd.f32 0.0, %v2564
        %v2566 = vpop.f32.mrb[0].mxu0
        %v2567 = vpop.f32.mrb[0].mxu0
        %v2568 = vadd.f32 0.0, %v2567
        %v2569 = vpop.f32.mrb[0].mxu0
        %2570 = vmatprep.mubr.bf16.mxu0 0
        %2571 = vmatmul.mubr.bf16.gmra.mrb[0].mxu0 %v547
        %v2572 = vpop.f32.mrb[0].mxu0
        %v2573 = vadd.f32 0.0, %v2572
        %v2574 = vpop.f32.mrb[0].mxu0
        %v2575 = vpop.f32.mrb[0].mxu0
        %v2576 = vadd.f32 0.0, %v2575
        %v2577 = vpop.f32.mrb[0].mxu0
        %2578 = vmatprep.mubr.bf16.mxu0 0
        %2579 = vmatmul.mubr.bf16.gmra.mrb[0].mxu0 %v550
        %v2580 = vpop.f32.mrb[0].mxu0
        %v2581 = vadd.f32 0.0, %v2580
        %v2582 = vpop.f32.mrb[0].mxu0
        %v2583 = vpop.f32.mrb[0].mxu0
        %v2584 = vadd.f32 0.0, %v2583
        %v2585 = vpop.f32.mrb[0].mxu0
        %2586 = vmatprep.mubr.bf16.mxu0 0
        %2587 = vmatmul.mubr.bf16.gmra.mrb[0].mxu0 %v553
        %v2588 = vpop.f32.mrb[0].mxu0
        %v2589 = vadd.f32 0.0, %v2588
        %v2590 = vpop.f32.mrb[0].mxu0
        %v2591 = vpop.f32.mrb[0].mxu0
        %v2592 = vadd.f32 0.0, %v2591
        %v2593 = vpop.f32.mrb[0].mxu0
        %2594 = vmatprep.mubr.bf16.mxu0 0
        %2595 = vmatmul.mubr.bf16.gmra.mrb[0].mxu0 %v556
        %v2596 = vpop.f32.mrb[0].mxu0
        %v2597 = vadd.f32 0.0, %v2596
        %v2598 = vpop.f32.mrb[0].mxu0
        %v2599 = vpop.f32.mrb[0].mxu0
        %v2600 = vadd.f32 0.0, %v2599
        %v2601 = vpop.f32.mrb[0].mxu0
        %2602 = vmatprep.mubr.bf16.mxu0 0
        %2603 = vmatmul.mubr.bf16.gmra.mrb[0].mxu0 %v559
        %v2604 = vpop.f32.mrb[0].mxu0
        %v2605 = vadd.f32 0.0, %v2604
        %v2606 = vpop.f32.mrb[0].mxu0
        %v2607 = vpop.f32.mrb[0].mxu0
        %v2608 = vadd.f32 0.0, %v2607
        %v2609 = vpop.f32.mrb[0].mxu0
        %2610 = vdwg.mxu0
        %v2611 = vld [vmem:[#allocation4] sm:$0xff]
        %v2612 = vld [vmem:[#allocation4 + $0x8] sm:$0xff]
        %v2613 = vld [vmem:[#allocation4 + $0x10] sm:$0xff]
        %v2614 = vld [vmem:[#allocation4 + $0x18] sm:$0xff]
        %v2615 = vld [vmem:[#allocation4 + $0x20] sm:$0xff]
        %v2616 = vld [vmem:[#allocation4 + $0x28] sm:$0xff]
        %v2617 = vld [vmem:[#allocation4 + $0x30] sm:$0xff]
        %v2618 = vld [vmem:[#allocation4 + $0x38] sm:$0xff]
        %2635 = vrot.lane.b32.xlu0 %v2161, 124
        %v2636 = vpop.permute.xlu0 %2635
        %2637 = vrot.lane.b32.xlu0 %v2162, 124
        %v2638 = vpop.permute.xlu0 %2637
        %2639 = vrot.lane.b32.xlu0 %v2163, 124
        %v2640 = vpop.permute.xlu0 %2639
        %2641 = vrot.lane.b32.xlu0 %v2164, 124
        %v2642 = vpop.permute.xlu0 %2641
        %2643 = vrot.lane.b32.xlu0 %v2165, 124
        %v2644 = vpop.permute.xlu0 %2643
        %2645 = vrot.lane.b32.xlu0 %v2166, 124
        %v2646 = vpop.permute.xlu0 %2645
        %2647 = vrot.lane.b32.xlu0 %v2167, 124
        %v2648 = vpop.permute.xlu0 %2647
        %2649 = vrot.lane.b32.xlu0 %v2168, 124
        %v2650 = vpop.permute.xlu0 %2649
        %2651 = vrot.lane.b32.xlu0 %v2169, 124
        %v2652 = vpop.permute.xlu0 %2651
        %2653 = vrot.lane.b32.xlu0 %v2170, 124
        %v2654 = vpop.permute.xlu0 %2653
        %2655 = vrot.lane.b32.xlu0 %v2171, 124
        %v2656 = vpop.permute.xlu0 %2655
        %2657 = vrot.lane.b32.xlu0 %v2172, 124
        %v2658 = vpop.permute.xlu0 %2657
        %2659 = vrot.lane.b32.xlu0 %v2173, 124
        %v2660 = vpop.permute.xlu0 %2659
        %2661 = vrot.lane.b32.xlu0 %v2174, 124
        %v2662 = vpop.permute.xlu0 %2661
        %2663 = vrot.lane.b32.xlu0 %v2175, 124
        %v2664 = vpop.permute.xlu0 %2663
        %2665 = vrot.lane.b32.xlu0 %v2176, 124
        %v2666 = vpop.permute.xlu0 %2665
        %v2675 = vunpack.c.l.b16 %v2611
        %v2676 = vunpack.c.h.b16 %v2611
        %v2677 = vunpack.c.l.b16 %v2612
        %v2678 = vunpack.c.h.b16 %v2612
        %v2679 = vunpack.c.l.b16 %v2613
        %v2680 = vunpack.c.h.b16 %v2613
        %v2681 = vunpack.c.l.b16 %v2614
        %v2682 = vunpack.c.h.b16 %v2614
        %v2683 = vunpack.c.l.b16 %v2615
        %v2684 = vunpack.c.h.b16 %v2615
        %v2685 = vunpack.c.l.b16 %v2616
        %v2686 = vunpack.c.h.b16 %v2616
        %v2687 = vunpack.c.l.b16 %v2617
        %v2688 = vunpack.c.h.b16 %v2617
        %v2689 = vunpack.c.l.b16 %v2618
        %v2690 = vunpack.c.h.b16 %v2618
        %v2691 = vpack.c.b16 %v2677, %v2675
        %v2692 = vpack.c.b16 %v2678, %v2676
        %v2693 = vpack.c.b16 %v2681, %v2679
        %v2694 = vpack.c.b16 %v2682, %v2680
        %v2695 = vpack.c.b16 %v2685, %v2683
        %v2696 = vpack.c.b16 %v2686, %v2684
        %v2697 = vpack.c.b16 %v2689, %v2687
        %v2698 = vpack.c.b16 %v2690, %v2688
        %v2708 = vsel %vm512, %v2636, 0
        %v2711 = vsel %vm512, %v2638, 0
        %v2714 = vsel %vm512, %v2640, 0
        %v2717 = vsel %vm512, %v2642, 0
        %v2720 = vsel %vm512, %v2644, 0
        %v2723 = vsel %vm512, %v2646, 0
        %v2726 = vsel %vm512, %v2648, 0
        %v2729 = vsel %vm512, %v2650, 0
        %v2732 = vsel %vm512, %v2652, 0
        %v2735 = vsel %vm512, %v2654, 0
        %v2738 = vsel %vm512, %v2656, 0
        %v2741 = vsel %vm512, %v2658, 0
        %v2744 = vsel %vm512, %v2660, 0
        %v2747 = vsel %vm512, %v2662, 0
        %v2750 = vsel %vm512, %v2664, 0
        %v2753 = vsel %vm512, %v2666, 0
        %2755 = vmatprep.subr.bf16.mxu0 %v2692
        %2756 = vmatpush1.bf16.msra.mxu0 %v2691
        %2757 = vmatprep.subr.bf16.mxu0 %v2694
        %2758 = vmatpush1.bf16.msra.mxu0 %v2693
        %2759 = vmatprep.subr.bf16.mxu0 %v2696
        %2760 = vmatpush1.bf16.msra.mxu0 %v2695
        %2761 = vmatprep.subr.bf16.mxu0 %v2698
        %2762 = vmatpush1.bf16.msra.mxu0 %v2697
        %2763 = vmatprep.subr.bf16.mxu0 0
        %2764 = vmatpush1.bf16.msra.mxu0 0
        %2765 = vmatprep.subr.bf16.mxu0 0
        %2766 = vmatpush1.bf16.msra.mxu0 0
        %2767 = vmatprep.subr.bf16.mxu0 0
        %2768 = vmatpush1.bf16.msra.mxu0 0
        %2769 = vmatprep.subr.bf16.mxu0 0
        %2770 = vmatpush1.bf16.msra.mxu0 0
        %2771 = vmatprep.subr.bf16.mxu0 0
        %2772 = vmatpush1.bf16.msra.mxu0 0
        %2773 = vmatprep.subr.bf16.mxu0 0
        %2774 = vmatpush1.bf16.msra.mxu0 0
        %2775 = vmatprep.subr.bf16.mxu0 0
        %2776 = vmatpush1.bf16.msra.mxu0 0
        %2777 = vmatprep.subr.bf16.mxu0 0
        %2778 = vmatpush1.bf16.msra.mxu0 0
        %2779 = vmatprep.subr.bf16.mxu0 0
        %2780 = vmatpush1.bf16.msra.mxu0 0
        %2781 = vmatprep.subr.bf16.mxu0 0
        %2782 = vmatpush1.bf16.msra.mxu0 0
        %2783 = vmatprep.subr.bf16.mxu0 0
        %2784 = vmatpush1.bf16.msra.mxu0 0
        %2785 = vmatprep.subr.bf16.mxu0 0
        %2786 = vmatpush1.bf16.msra.mxu0 0
        %2787 = vmatprep.mubr.bf16.mxu0 0
        %2788 = vmatmul.mubr.bf16.gmra.mrb[0].mxu0 %v2708
        %v2789 = vpop.f32.mrb[0].mxu0
        %v2790 = vadd.f32 %v2292, %v2789
        %v2791 = vpop.f32.mrb[0].mxu0
        %v2792 = vadd.f32 %v2294, %v2791
        %v2793 = vpop.f32.mrb[0].mxu0
        %v2794 = vadd.f32 %v2296, %v2793
        %v2795 = vpop.f32.mrb[0].mxu0
        %v2796 = vadd.f32 %v2298, %v2795
        %2797 = vmatprep.mubr.bf16.mxu0 0
        %2798 = vmatmul.mubr.bf16.gmra.mrb[0].mxu0 %v2711
        %v2799 = vpop.f32.mrb[0].mxu0
        %v2800 = vadd.f32 %v2302, %v2799
        %v2801 = vpop.f32.mrb[0].mxu0
        %v2802 = vadd.f32 %v2304, %v2801
        %v2803 = vpop.f32.mrb[0].mxu0
        %v2804 = vadd.f32 %v2306, %v2803
        %v2805 = vpop.f32.mrb[0].mxu0
        %v2806 = vadd.f32 %v2308, %v2805
        %2807 = vmatprep.mubr.bf16.mxu0 0
        %2808 = vmatmul.mubr.bf16.gmra.mrb[0].mxu0 %v2714
        %v2809 = vpop.f32.mrb[0].mxu0
        %v2810 = vadd.f32 %v2312, %v2809
        %v2811 = vpop.f32.mrb[0].mxu0
        %v2812 = vadd.f32 %v2314, %v2811
        %v2813 = vpop.f32.mrb[0].mxu0
        %v2814 = vadd.f32 %v2316, %v2813
        %v2815 = vpop.f32.mrb[0].mxu0
        %v2816 = vadd.f32 %v2318, %v2815
        %2817 = vmatprep.mubr.bf16.mxu0 0
        %2818 = vmatmul.mubr.bf16.gmra.mrb[0].mxu0 %v2717
        %v2819 = vpop.f32.mrb[0].mxu0
        %v2820 = vadd.f32 %v2322, %v2819
        %v2821 = vpop.f32.mrb[0].mxu0
        %v2822 = vadd.f32 %v2324, %v2821
        %v2823 = vpop.f32.mrb[0].mxu0
        %v2824 = vadd.f32 %v2326, %v2823
        %v2825 = vpop.f32.mrb[0].mxu0
        %v2826 = vadd.f32 %v2328, %v2825
        %2827 = vmatprep.mubr.bf16.mxu0 0
        %2828 = vmatmul.mubr.bf16.gmra.mrb[0].mxu0 %v2720
        %v2829 = vpop.f32.mrb[0].mxu0
        %v2830 = vadd.f32 %v2332, %v2829
        %v2831 = vpop.f32.mrb[0].mxu0
        %v2832 = vadd.f32 %v2334, %v2831
        %v2833 = vpop.f32.mrb[0].mxu0
        %v2834 = vadd.f32 %v2336, %v2833
        %v2835 = vpop.f32.mrb[0].mxu0
        %v2836 = vadd.f32 %v2338, %v2835
        %2837 = vmatprep.mubr.bf16.mxu0 0
        %2838 = vmatmul.mubr.bf16.gmra.mrb[0].mxu0 %v2723
        %v2839 = vpop.f32.mrb[0].mxu0
        %v2840 = vadd.f32 %v2342, %v2839
        %v2841 = vpop.f32.mrb[0].mxu0
        %v2842 = vadd.f32 %v2344, %v2841
        %v2843 = vpop.f32.mrb[0].mxu0
        %v2844 = vadd.f32 %v2346, %v2843
        %v2845 = vpop.f32.mrb[0].mxu0
        %v2846 = vadd.f32 %v2348, %v2845
        %2847 = vmatprep.mubr.bf16.mxu0 0
        %2848 = vmatmul.mubr.bf16.gmra.mrb[0].mxu0 %v2726
        %v2849 = vpop.f32.mrb[0].mxu0
        %v2850 = vadd.f32 %v2352, %v2849
        %v2851 = vpop.f32.mrb[0].mxu0
        %v2852 = vadd.f32 %v2354, %v2851
        %v2853 = vpop.f32.mrb[0].mxu0
        %v2854 = vadd.f32 %v2356, %v2853
        %v2855 = vpop.f32.mrb[0].mxu0
        %v2856 = vadd.f32 %v2358, %v2855
        %2857 = vmatprep.mubr.bf16.mxu0 0
        %2858 = vmatmul.mubr.bf16.gmra.mrb[0].mxu0 %v2729
        %v2859 = vpop.f32.mrb[0].mxu0
        %v2860 = vadd.f32 %v2362, %v2859
        %v2861 = vpop.f32.mrb[0].mxu0
        %v2862 = vadd.f32 %v2364, %v2861
        %v2863 = vpop.f32.mrb[0].mxu0
        %v2864 = vadd.f32 %v2366, %v2863
        %v2865 = vpop.f32.mrb[0].mxu0
        %v2866 = vadd.f32 %v2368, %v2865
        %2867 = vmatprep.mubr.bf16.mxu0 0
        %2868 = vmatmul.mubr.bf16.gmra.mrb[0].mxu0 %v2732
        %v2869 = vpop.f32.mrb[0].mxu0
        %v2870 = vadd.f32 %v2372, %v2869
        %v2871 = vpop.f32.mrb[0].mxu0
        %v2872 = vadd.f32 %v2374, %v2871
        %v2873 = vpop.f32.mrb[0].mxu0
        %v2874 = vadd.f32 %v2376, %v2873
        %v2875 = vpop.f32.mrb[0].mxu0
        %v2876 = vadd.f32 %v2378, %v2875
        %2877 = vmatprep.mubr.bf16.mxu0 0
        %2878 = vmatmul.mubr.bf16.gmra.mrb[0].mxu0 %v2735
        %v2879 = vpop.f32.mrb[0].mxu0
        %v2880 = vadd.f32 %v2382, %v2879
        %v2881 = vpop.f32.mrb[0].mxu0
        %v2882 = vadd.f32 %v2384, %v2881
        %v2883 = vpop.f32.mrb[0].mxu0
        %v2884 = vadd.f32 %v2386, %v2883
        %v2885 = vpop.f32.mrb[0].mxu0
        %v2886 = vadd.f32 %v2388, %v2885
        %2887 = vmatprep.mubr.bf16.mxu0 0
        %2888 = vmatmul.mubr.bf16.gmra.mrb[0].mxu0 %v2738
        %v2889 = vpop.f32.mrb[0].mxu0
        %v2890 = vadd.f32 %v2392, %v2889
        %v2891 = vpop.f32.mrb[0].mxu0
        %v2892 = vadd.f32 %v2394, %v2891
        %v2893 = vpop.f32.mrb[0].mxu0
        %v2894 = vadd.f32 %v2396, %v2893
        %v2895 = vpop.f32.mrb[0].mxu0
        %v2896 = vadd.f32 %v2398, %v2895
        %2897 = vmatprep.mubr.bf16.mxu0 0
        %2898 = vmatmul.mubr.bf16.gmra.mrb[0].mxu0 %v2741
        %v2899 = vpop.f32.mrb[0].mxu0
        %v2900 = vadd.f32 %v2402, %v2899
        %v2901 = vpop.f32.mrb[0].mxu0
        %v2902 = vadd.f32 %v2404, %v2901
        %v2903 = vpop.f32.mrb[0].mxu0
        %v2904 = vadd.f32 %v2406, %v2903
        %v2905 = vpop.f32.mrb[0].mxu0
        %v2906 = vadd.f32 %v2408, %v2905
        %2907 = vmatprep.mubr.bf16.mxu0 0
        %2908 = vmatmul.mubr.bf16.gmra.mrb[0].mxu0 %v2744
        %v2909 = vpop.f32.mrb[0].mxu0
        %v2910 = vadd.f32 %v2412, %v2909
        %v2911 = vpop.f32.mrb[0].mxu0
        %v2912 = vadd.f32 %v2414, %v2911
        %v2913 = vpop.f32.mrb[0].mxu0
        %v2914 = vadd.f32 %v2416, %v2913
        %v2915 = vpop.f32.mrb[0].mxu0
        %v2916 = vadd.f32 %v2418, %v2915
        %2917 = vmatprep.mubr.bf16.mxu0 0
        %2918 = vmatmul.mubr.bf16.gmra.mrb[0].mxu0 %v2747
        %v2919 = vpop.f32.mrb[0].mxu0
        %v2920 = vadd.f32 %v2422, %v2919
        %v2921 = vpop.f32.mrb[0].mxu0
        %v2922 = vadd.f32 %v2424, %v2921
        %v2923 = vpop.f32.mrb[0].mxu0
        %v2924 = vadd.f32 %v2426, %v2923
        %v2925 = vpop.f32.mrb[0].mxu0
        %v2926 = vadd.f32 %v2428, %v2925
        %2927 = vmatprep.mubr.bf16.mxu0 0
        %2928 = vmatmul.mubr.bf16.gmra.mrb[0].mxu0 %v2750
        %v2929 = vpop.f32.mrb[0].mxu0
        %v2930 = vadd.f32 %v2432, %v2929
        %v2931 = vpop.f32.mrb[0].mxu0
        %v2932 = vadd.f32 %v2434, %v2931
        %v2933 = vpop.f32.mrb[0].mxu0
        %v2934 = vadd.f32 %v2436, %v2933
        %v2935 = vpop.f32.mrb[0].mxu0
        %v2936 = vadd.f32 %v2438, %v2935
        %2937 = vmatprep.mubr.bf16.mxu0 0
        %2938 = vmatmul.mubr.bf16.gmra.mrb[0].mxu0 %v2753
        %v2939 = vpop.f32.mrb[0].mxu0
        %v2940 = vadd.f32 %v2442, %v2939
        %v2941 = vpop.f32.mrb[0].mxu0
        %v2942 = vadd.f32 %v2444, %v2941
        %v2943 = vpop.f32.mrb[0].mxu0
        %v2944 = vadd.f32 %v2446, %v2943
        %v2945 = vpop.f32.mrb[0].mxu0
        %v2946 = vadd.f32 %v2448, %v2945
        %2947 = vdwg.mxu0
        %s2948 = scalar_lea.vmem %s7, 4
        %v2949 = vld [vmem:[%s2948] ss:$8 sm:$0x3]
        %v2951 = vlaneseq
        %v2952 = vshrl.u32 %v2951, 7
        %v2953 = vsub.s32 0, %v2952
        %v2954 = vrot.slane %v2949, %v2953
        %v2955 = vlaneseq
        %v2956 = vshrl.u32 %v2955, 7
        %v2957 = vsub.s32 1, %v2956
        %v2958 = vrot.slane %v2949, %v2957
        %v2961 = vadd.f32 %v2790, %v2954
        %v2962 = vadd.f32 %v2792, %v2958
        %v2963 = vadd.f32 %v2794, %v2954
        %v2964 = vadd.f32 %v2796, %v2958
        %v2965 = vadd.f32 %v2800, %v2954
        %v2966 = vadd.f32 %v2802, %v2958
        %v2967 = vadd.f32 %v2804, %v2954
        %v2968 = vadd.f32 %v2806, %v2958
        %v2969 = vadd.f32 %v2810, %v2954
        %v2970 = vadd.f32 %v2812, %v2958
        %v2971 = vadd.f32 %v2814, %v2954
        %v2972 = vadd.f32 %v2816, %v2958
        %v2973 = vadd.f32 %v2820, %v2954
        %v2974 = vadd.f32 %v2822, %v2958
        %v2975 = vadd.f32 %v2824, %v2954
        %v2976 = vadd.f32 %v2826, %v2958
        %v2977 = vadd.f32 %v2830, %v2954
        %v2978 = vadd.f32 %v2832, %v2958
        %v2979 = vadd.f32 %v2834, %v2954
        %v2980 = vadd.f32 %v2836, %v2958
        %v2981 = vadd.f32 %v2840, %v2954
        %v2982 = vadd.f32 %v2842, %v2958
        %v2983 = vadd.f32 %v2844, %v2954
        %v2984 = vadd.f32 %v2846, %v2958
        %v2985 = vadd.f32 %v2850, %v2954
        %v2986 = vadd.f32 %v2852, %v2958
        %v2987 = vadd.f32 %v2854, %v2954
        %v2988 = vadd.f32 %v2856, %v2958
        %v2989 = vadd.f32 %v2860, %v2954
        %v2990 = vadd.f32 %v2862, %v2958
        %v2991 = vadd.f32 %v2864, %v2954
        %v2992 = vadd.f32 %v2866, %v2958
        %v2993 = vadd.f32 %v2870, %v2954
        %v2994 = vadd.f32 %v2872, %v2958
        %v2995 = vadd.f32 %v2874, %v2954
        %v2996 = vadd.f32 %v2876, %v2958
        %v2997 = vadd.f32 %v2880, %v2954
        %v2998 = vadd.f32 %v2882, %v2958
        %v2999 = vadd.f32 %v2884, %v2954
        %v3000 = vadd.f32 %v2886, %v2958
        %v3001 = vadd.f32 %v2890, %v2954
        %v3002 = vadd.f32 %v2892, %v2958
        %v3003 = vadd.f32 %v2894, %v2954
        %v3004 = vadd.f32 %v2896, %v2958
        %v3005 = vadd.f32 %v2900, %v2954
        %v3006 = vadd.f32 %v2902, %v2958
        %v3007 = vadd.f32 %v2904, %v2954
        %v3008 = vadd.f32 %v2906, %v2958
        %v3009 = vadd.f32 %v2910, %v2954
        %v3010 = vadd.f32 %v2912, %v2958
        %v3011 = vadd.f32 %v2914, %v2954
        %v3012 = vadd.f32 %v2916, %v2958
        %v3013 = vadd.f32 %v2920, %v2954
        %v3014 = vadd.f32 %v2922, %v2958
        %v3015 = vadd.f32 %v2924, %v2954
        %v3016 = vadd.f32 %v2926, %v2958
        %v3017 = vadd.f32 %v2930, %v2954
        %v3018 = vadd.f32 %v2932, %v2958
        %v3019 = vadd.f32 %v2934, %v2954
        %v3020 = vadd.f32 %v2936, %v2958
        %v3021 = vadd.f32 %v2940, %v2954
        %v3022 = vadd.f32 %v2942, %v2958
        %v3023 = vadd.f32 %v2944, %v2954
        %v3024 = vadd.f32 %v2946, %v2958
        %v3025 = vpack.c.bf16 %v2963, %v2961
        %v3026 = vpack.c.bf16 %v2964, %v2962
        %v3027 = vpack.c.bf16 %v2967, %v2965
        %v3028 = vpack.c.bf16 %v2968, %v2966
        %v3029 = vpack.c.bf16 %v2971, %v2969
        %v3030 = vpack.c.bf16 %v2972, %v2970
        %v3031 = vpack.c.bf16 %v2975, %v2973
        %v3032 = vpack.c.bf16 %v2976, %v2974
        %v3033 = vpack.c.bf16 %v2979, %v2977
        %v3034 = vpack.c.bf16 %v2980, %v2978
        %v3035 = vpack.c.bf16 %v2983, %v2981
        %v3036 = vpack.c.bf16 %v2984, %v2982
        %v3037 = vpack.c.bf16 %v2987, %v2985
        %v3038 = vpack.c.bf16 %v2988, %v2986
        %v3039 = vpack.c.bf16 %v2991, %v2989
        %v3040 = vpack.c.bf16 %v2992, %v2990
        %v3041 = vpack.c.bf16 %v2995, %v2993
        %v3042 = vpack.c.bf16 %v2996, %v2994
        %v3043 = vpack.c.bf16 %v2999, %v2997
        %v3044 = vpack.c.bf16 %v3000, %v2998
        %v3045 = vpack.c.bf16 %v3003, %v3001
        %v3046 = vpack.c.bf16 %v3004, %v3002
        %v3047 = vpack.c.bf16 %v3007, %v3005
        %v3048 = vpack.c.bf16 %v3008, %v3006
        %v3049 = vpack.c.bf16 %v3011, %v3009
        %v3050 = vpack.c.bf16 %v3012, %v3010
        %v3051 = vpack.c.bf16 %v3015, %v3013
        %v3052 = vpack.c.bf16 %v3016, %v3014
        %v3053 = vpack.c.bf16 %v3019, %v3017
        %v3054 = vpack.c.bf16 %v3020, %v3018
        %v3055 = vpack.c.bf16 %v3023, %v3021
        %v3056 = vpack.c.bf16 %v3024, %v3022
        %s3057 = scalar_lea.vmem [#allocation2], 512
        %v3058 = vld [vmem:[%s3057] sm:$0xff]
        %v3059 = vld [vmem:[%s3057 + $0x8] sm:$0xff]
        %v3060 = vld [vmem:[%s3057 + $0x10] sm:$0xff]
        %v3061 = vld [vmem:[%s3057 + $0x18] sm:$0xff]
        %v3062 = vld [vmem:[%s3057 + $0x20] sm:$0xff]
        %v3063 = vld [vmem:[%s3057 + $0x28] sm:$0xff]
        %v3064 = vld [vmem:[%s3057 + $0x30] sm:$0xff]
        %v3065 = vld [vmem:[%s3057 + $0x38] sm:$0xff]
        %v3066 = vld [vmem:[%s3057 + $0x40] sm:$0xff]
        %v3067 = vld [vmem:[%s3057 + $0x48] sm:$0xff]
        %v3068 = vld [vmem:[%s3057 + $0x50] sm:$0xff]
        %v3069 = vld [vmem:[%s3057 + $0x58] sm:$0xff]
        %v3070 = vld [vmem:[%s3057 + $0x60] sm:$0xff]
        %v3071 = vld [vmem:[%s3057 + $0x68] sm:$0xff]
        %v3072 = vld [vmem:[%s3057 + $0x70] sm:$0xff]
        %v3073 = vld [vmem:[%s3057 + $0x78] sm:$0xff]
        %v3074 = vld [vmem:[%s3057 + $0x80] sm:$0xff]
        %v3075 = vld [vmem:[%s3057 + $0x88] sm:$0xff]
        %v3076 = vld [vmem:[%s3057 + $0x90] sm:$0xff]
        %v3077 = vld [vmem:[%s3057 + $0x98] sm:$0xff]
        %v3078 = vld [vmem:[%s3057 + $0xa0] sm:$0xff]
        %v3079 = vld [vmem:[%s3057 + $0xa8] sm:$0xff]
        %v3080 = vld [vmem:[%s3057 + $0xb0] sm:$0xff]
        %v3081 = vld [vmem:[%s3057 + $0xb8] sm:$0xff]
        %v3082 = vld [vmem:[%s3057 + $0xc0] sm:$0xff]
        %v3083 = vld [vmem:[%s3057 + $0xc8] sm:$0xff]
        %v3084 = vld [vmem:[%s3057 + $0xd0] sm:$0xff]
        %v3085 = vld [vmem:[%s3057 + $0xd8] sm:$0xff]
        %v3086 = vld [vmem:[%s3057 + $0xe0] sm:$0xff]
        %v3087 = vld [vmem:[%s3057 + $0xe8] sm:$0xff]
        %v3088 = vld [vmem:[%s3057 + $0xf0] sm:$0xff]
        %v3089 = vld [vmem:[%s3057 + $0xf8] sm:$0xff]
        %s3090 = scalar_lea.vmem %s7, 5
        %v3091 = vld [vmem:[%s3090] ss:$8 sm:$0x3]
        %v3093 = vlaneseq
        %v3094 = vshrl.u32 %v3093, 7
        %v3095 = vsub.s32 0, %v3094
        %v3096 = vrot.slane %v3091, %v3095
        %v3097 = vlaneseq
        %v3098 = vshrl.u32 %v3097, 7
        %v3099 = vsub.s32 1, %v3098
        %v3100 = vrot.slane %v3091, %v3099
        %v3135 = vunpack.c.l.b16 %v3058
        %v3136 = vunpack.c.h.b16 %v3058
        %v3137 = vunpack.c.l.b16 %v3059
        %v3138 = vunpack.c.h.b16 %v3059
        %v3139 = vunpack.c.l.b16 %v3060
        %v3140 = vunpack.c.h.b16 %v3060
        %v3141 = vunpack.c.l.b16 %v3061
        %v3142 = vunpack.c.h.b16 %v3061
        %v3143 = vunpack.c.l.b16 %v3062
        %v3144 = vunpack.c.h.b16 %v3062
        %v3145 = vunpack.c.l.b16 %v3063
        %v3146 = vunpack.c.h.b16 %v3063
        %v3147 = vunpack.c.l.b16 %v3064
        %v3148 = vunpack.c.h.b16 %v3064
        %v3149 = vunpack.c.l.b16 %v3065
        %v3150 = vunpack.c.h.b16 %v3065
        %v3151 = vunpack.c.l.b16 %v3066
        %v3152 = vunpack.c.h.b16 %v3066
        %v3153 = vunpack.c.l.b16 %v3067
        %v3154 = vunpack.c.h.b16 %v3067
        %v3155 = vunpack.c.l.b16 %v3068
        %v3156 = vunpack.c.h.b16 %v3068
        %v3157 = vunpack.c.l.b16 %v3069
        %v3158 = vunpack.c.h.b16 %v3069
        %v3159 = vunpack.c.l.b16 %v3070
        %v3160 = vunpack.c.h.b16 %v3070
        %v3161 = vunpack.c.l.b16 %v3071
        %v3162 = vunpack.c.h.b16 %v3071
        %v3163 = vunpack.c.l.b16 %v3072
        %v3164 = vunpack.c.h.b16 %v3072
        %v3165 = vunpack.c.l.b16 %v3073
        %v3166 = vunpack.c.h.b16 %v3073
        %v3167 = vunpack.c.l.b16 %v3074
        %v3168 = vunpack.c.h.b16 %v3074
        %v3169 = vunpack.c.l.b16 %v3075
        %v3170 = vunpack.c.h.b16 %v3075
        %v3171 = vunpack.c.l.b16 %v3076
        %v3172 = vunpack.c.h.b16 %v3076
        %v3173 = vunpack.c.l.b16 %v3077
        %v3174 = vunpack.c.h.b16 %v3077
        %v3175 = vunpack.c.l.b16 %v3078
        %v3176 = vunpack.c.h.b16 %v3078
        %v3177 = vunpack.c.l.b16 %v3079
        %v3178 = vunpack.c.h.b16 %v3079
        %v3179 = vunpack.c.l.b16 %v3080
        %v3180 = vunpack.c.h.b16 %v3080
        %v3181 = vunpack.c.l.b16 %v3081
        %v3182 = vunpack.c.h.b16 %v3081
        %v3183 = vunpack.c.l.b16 %v3082
        %v3184 = vunpack.c.h.b16 %v3082
        %v3185 = vunpack.c.l.b16 %v3083
        %v3186 = vunpack.c.h.b16 %v3083
        %v3187 = vunpack.c.l.b16 %v3084
        %v3188 = vunpack.c.h.b16 %v3084
        %v3189 = vunpack.c.l.b16 %v3085
        %v3190 = vunpack.c.h.b16 %v3085
        %v3191 = vunpack.c.l.b16 %v3086
        %v3192 = vunpack.c.h.b16 %v3086
        %v3193 = vunpack.c.l.b16 %v3087
        %v3194 = vunpack.c.h.b16 %v3087
        %v3195 = vunpack.c.l.b16 %v3088
        %v3196 = vunpack.c.h.b16 %v3088
        %v3197 = vunpack.c.l.b16 %v3089
        %v3198 = vunpack.c.h.b16 %v3089
        %v3199 = vpack.c.b16 %v3137, %v3135
        %v3200 = vpack.c.b16 %v3138, %v3136
        %v3201 = vpack.c.b16 %v3141, %v3139
        %v3202 = vpack.c.b16 %v3142, %v3140
        %v3203 = vpack.c.b16 %v3145, %v3143
        %v3204 = vpack.c.b16 %v3146, %v3144
        %v3205 = vpack.c.b16 %v3149, %v3147
        %v3206 = vpack.c.b16 %v3150, %v3148
        %v3207 = vpack.c.b16 %v3153, %v3151
        %v3208 = vpack.c.b16 %v3154, %v3152
        %v3209 = vpack.c.b16 %v3157, %v3155
        %v3210 = vpack.c.b16 %v3158, %v3156
        %v3211 = vpack.c.b16 %v3161, %v3159
        %v3212 = vpack.c.b16 %v3162, %v3160
        %v3213 = vpack.c.b16 %v3165, %v3163
        %v3214 = vpack.c.b16 %v3166, %v3164
        %v3215 = vpack.c.b16 %v3169, %v3167
        %v3216 = vpack.c.b16 %v3170, %v3168
        %v3217 = vpack.c.b16 %v3173, %v3171
        %v3218 = vpack.c.b16 %v3174, %v3172
        %v3219 = vpack.c.b16 %v3177, %v3175
        %v3220 = vpack.c.b16 %v3178, %v3176
        %v3221 = vpack.c.b16 %v3181, %v3179
        %v3222 = vpack.c.b16 %v3182, %v3180
        %v3223 = vpack.c.b16 %v3185, %v3183
        %v3224 = vpack.c.b16 %v3186, %v3184
        %v3225 = vpack.c.b16 %v3189, %v3187
        %v3226 = vpack.c.b16 %v3190, %v3188
        %v3227 = vpack.c.b16 %v3193, %v3191
        %v3228 = vpack.c.b16 %v3194, %v3192
        %v3229 = vpack.c.b16 %v3197, %v3195
        %v3230 = vpack.c.b16 %v3198, %v3196
        %3263 = vmatprep.subr.bf16.mxu0 %v3200
        %3264 = vmatpush1.bf16.msra.mxu0 %v3199
        %3265 = vmatprep.subr.bf16.mxu0 %v3202
        %3266 = vmatpush1.bf16.msra.mxu0 %v3201
        %3267 = vmatprep.subr.bf16.mxu0 %v3204
        %3268 = vmatpush1.bf16.msra.mxu0 %v3203
        %3269 = vmatprep.subr.bf16.mxu0 %v3206
        %3270 = vmatpush1.bf16.msra.mxu0 %v3205
        %3271 = vmatprep.subr.bf16.mxu0 %v3208
        %3272 = vmatpush1.bf16.msra.mxu0 %v3207
        %3273 = vmatprep.subr.bf16.mxu0 %v3210
        %3274 = vmatpush1.bf16.msra.mxu0 %v3209
        %3275 = vmatprep.subr.bf16.mxu0 %v3212
        %3276 = vmatpush1.bf16.msra.mxu0 %v3211
        %3277 = vmatprep.subr.bf16.mxu0 %v3214
        %3278 = vmatpush1.bf16.msra.mxu0 %v3213
        %3279 = vmatprep.subr.bf16.mxu0 %v3216
        %3280 = vmatpush1.bf16.msra.mxu0 %v3215
        %3281 = vmatprep.subr.bf16.mxu0 %v3218
        %3282 = vmatpush1.bf16.msra.mxu0 %v3217
        %3283 = vmatprep.subr.bf16.mxu0 %v3220
        %3284 = vmatpush1.bf16.msra.mxu0 %v3219
        %3285 = vmatprep.subr.bf16.mxu0 %v3222
        %3286 = vmatpush1.bf16.msra.mxu0 %v3221
        %3287 = vmatprep.subr.bf16.mxu0 %v3224
        %3288 = vmatpush1.bf16.msra.mxu0 %v3223
        %3289 = vmatprep.subr.bf16.mxu0 %v3226
        %3290 = vmatpush1.bf16.msra.mxu0 %v3225
        %3291 = vmatprep.subr.bf16.mxu0 %v3228
        %3292 = vmatpush1.bf16.msra.mxu0 %v3227
        %3293 = vmatprep.subr.bf16.mxu0 %v3230
        %3294 = vmatpush1.bf16.msra.mxu0 %v3229
        %3295 = vmatprep.mubr.bf16.mxu0 %v3026
        %3296 = vmatmul.mubr.bf16.gmra.mrb[0].mxu0 %v3025
        %v3297 = vpop.f32.mrb[0].mxu0
        %v3298 = vadd.f32 %v3096, %v3297
        %v3299 = vpop.f32.mrb[0].mxu0
        %v3300 = vadd.f32 %v3100, %v3299
        %v3301 = vpop.f32.mrb[0].mxu0
        %v3302 = vadd.f32 %v3096, %v3301
        %v3303 = vpop.f32.mrb[0].mxu0
        %v3304 = vadd.f32 %v3100, %v3303
        %3305 = vmatprep.mubr.bf16.mxu0 %v3028
        %3306 = vmatmul.mubr.bf16.gmra.mrb[0].mxu0 %v3027
        %v3307 = vpop.f32.mrb[0].mxu0
        %v3308 = vadd.f32 %v3096, %v3307
        %v3309 = vpop.f32.mrb[0].mxu0
        %v3310 = vadd.f32 %v3100, %v3309
        %v3311 = vpop.f32.mrb[0].mxu0
        %v3312 = vadd.f32 %v3096, %v3311
        %v3313 = vpop.f32.mrb[0].mxu0
        %v3314 = vadd.f32 %v3100, %v3313
        %3315 = vmatprep.mubr.bf16.mxu0 %v3030
        %3316 = vmatmul.mubr.bf16.gmra.mrb[0].mxu0 %v3029
        %v3317 = vpop.f32.mrb[0].mxu0
        %v3318 = vadd.f32 %v3096, %v3317
        %v3319 = vpop.f32.mrb[0].mxu0
        %v3320 = vadd.f32 %v3100, %v3319
        %v3321 = vpop.f32.mrb[0].mxu0
        %v3322 = vadd.f32 %v3096, %v3321
        %v3323 = vpop.f32.mrb[0].mxu0
        %v3324 = vadd.f32 %v3100, %v3323
        %3325 = vmatprep.mubr.bf16.mxu0 %v3032
        %3326 = vmatmul.mubr.bf16.gmra.mrb[0].mxu0 %v3031
        %v3327 = vpop.f32.mrb[0].mxu0
        %v3328 = vadd.f32 %v3096, %v3327
        %v3329 = vpop.f32.mrb[0].mxu0
        %v3330 = vadd.f32 %v3100, %v3329
        %v3331 = vpop.f32.mrb[0].mxu0
        %v3332 = vadd.f32 %v3096, %v3331
        %v3333 = vpop.f32.mrb[0].mxu0
        %v3334 = vadd.f32 %v3100, %v3333
        %3335 = vmatprep.mubr.bf16.mxu0 %v3034
        %3336 = vmatmul.mubr.bf16.gmra.mrb[0].mxu0 %v3033
        %v3337 = vpop.f32.mrb[0].mxu0
        %v3338 = vadd.f32 %v3096, %v3337
        %v3339 = vpop.f32.mrb[0].mxu0
        %v3340 = vadd.f32 %v3100, %v3339
        %v3341 = vpop.f32.mrb[0].mxu0
        %v3342 = vadd.f32 %v3096, %v3341
        %v3343 = vpop.f32.mrb[0].mxu0
        %v3344 = vadd.f32 %v3100, %v3343
        %3345 = vmatprep.mubr.bf16.mxu0 %v3036
        %3346 = vmatmul.mubr.bf16.gmra.mrb[0].mxu0 %v3035
        %v3347 = vpop.f32.mrb[0].mxu0
        %v3348 = vadd.f32 %v3096, %v3347
        %v3349 = vpop.f32.mrb[0].mxu0
        %v3350 = vadd.f32 %v3100, %v3349
        %v3351 = vpop.f32.mrb[0].mxu0
        %v3352 = vadd.f32 %v3096, %v3351
        %v3353 = vpop.f32.mrb[0].mxu0
        %v3354 = vadd.f32 %v3100, %v3353
        %3355 = vmatprep.mubr.bf16.mxu0 %v3038
        %3356 = vmatmul.mubr.bf16.gmra.mrb[0].mxu0 %v3037
        %v3357 = vpop.f32.mrb[0].mxu0
        %v3358 = vadd.f32 %v3096, %v3357
        %v3359 = vpop.f32.mrb[0].mxu0
        %v3360 = vadd.f32 %v3100, %v3359
        %v3361 = vpop.f32.mrb[0].mxu0
        %v3362 = vadd.f32 %v3096, %v3361
        %v3363 = vpop.f32.mrb[0].mxu0
        %v3364 = vadd.f32 %v3100, %v3363
        %3365 = vmatprep.mubr.bf16.mxu0 %v3040
        %3366 = vmatmul.mubr.bf16.gmra.mrb[0].mxu0 %v3039
        %v3367 = vpop.f32.mrb[0].mxu0
        %v3368 = vadd.f32 %v3096, %v3367
        %v3369 = vpop.f32.mrb[0].mxu0
        %v3370 = vadd.f32 %v3100, %v3369
        %v3371 = vpop.f32.mrb[0].mxu0
        %v3372 = vadd.f32 %v3096, %v3371
        %v3373 = vpop.f32.mrb[0].mxu0
        %v3374 = vadd.f32 %v3100, %v3373
        %3375 = vmatprep.mubr.bf16.mxu0 %v3042
        %3376 = vmatmul.mubr.bf16.gmra.mrb[0].mxu0 %v3041
        %v3377 = vpop.f32.mrb[0].mxu0
        %v3378 = vadd.f32 %v3096, %v3377
        %v3379 = vpop.f32.mrb[0].mxu0
        %v3380 = vadd.f32 %v3100, %v3379
        %v3381 = vpop.f32.mrb[0].mxu0
        %v3382 = vadd.f32 %v3096, %v3381
        %v3383 = vpop.f32.mrb[0].mxu0
        %v3384 = vadd.f32 %v3100, %v3383
        %3385 = vmatprep.mubr.bf16.mxu0 %v3044
        %3386 = vmatmul.mubr.bf16.gmra.mrb[0].mxu0 %v3043
        %v3387 = vpop.f32.mrb[0].mxu0
        %v3388 = vadd.f32 %v3096, %v3387
        %v3389 = vpop.f32.mrb[0].mxu0
        %v3390 = vadd.f32 %v3100, %v3389
        %v3391 = vpop.f32.mrb[0].mxu0
        %v3392 = vadd.f32 %v3096, %v3391
        %v3393 = vpop.f32.mrb[0].mxu0
        %v3394 = vadd.f32 %v3100, %v3393
        %3395 = vmatprep.mubr.bf16.mxu0 %v3046
        %3396 = vmatmul.mubr.bf16.gmra.mrb[0].mxu0 %v3045
        %v3397 = vpop.f32.mrb[0].mxu0
        %v3398 = vadd.f32 %v3096, %v3397
        %v3399 = vpop.f32.mrb[0].mxu0
        %v3400 = vadd.f32 %v3100, %v3399
        %v3401 = vpop.f32.mrb[0].mxu0
        %v3402 = vadd.f32 %v3096, %v3401
        %v3403 = vpop.f32.mrb[0].mxu0
        %v3404 = vadd.f32 %v3100, %v3403
        %3405 = vmatprep.mubr.bf16.mxu0 %v3048
        %3406 = vmatmul.mubr.bf16.gmra.mrb[0].mxu0 %v3047
        %v3407 = vpop.f32.mrb[0].mxu0
        %v3408 = vadd.f32 %v3096, %v3407
        %v3409 = vpop.f32.mrb[0].mxu0
        %v3410 = vadd.f32 %v3100, %v3409
        %v3411 = vpop.f32.mrb[0].mxu0
        %v3412 = vadd.f32 %v3096, %v3411
        %v3413 = vpop.f32.mrb[0].mxu0
        %v3414 = vadd.f32 %v3100, %v3413
        %3415 = vmatprep.mubr.bf16.mxu0 %v3050
        %3416 = vmatmul.mubr.bf16.gmra.mrb[0].mxu0 %v3049
        %v3417 = vpop.f32.mrb[0].mxu0
        %v3418 = vadd.f32 %v3096, %v3417
        %v3419 = vpop.f32.mrb[0].mxu0
        %v3420 = vadd.f32 %v3100, %v3419
        %v3421 = vpop.f32.mrb[0].mxu0
        %v3422 = vadd.f32 %v3096, %v3421
        %v3423 = vpop.f32.mrb[0].mxu0
        %v3424 = vadd.f32 %v3100, %v3423
        %3425 = vmatprep.mubr.bf16.mxu0 %v3052
        %3426 = vmatmul.mubr.bf16.gmra.mrb[0].mxu0 %v3051
        %v3427 = vpop.f32.mrb[0].mxu0
        %v3428 = vadd.f32 %v3096, %v3427
        %v3429 = vpop.f32.mrb[0].mxu0
        %v3430 = vadd.f32 %v3100, %v3429
        %v3431 = vpop.f32.mrb[0].mxu0
        %v3432 = vadd.f32 %v3096, %v3431
        %v3433 = vpop.f32.mrb[0].mxu0
        %v3434 = vadd.f32 %v3100, %v3433
        %3435 = vmatprep.mubr.bf16.mxu0 %v3054
        %3436 = vmatmul.mubr.bf16.gmra.mrb[0].mxu0 %v3053
        %v3437 = vpop.f32.mrb[0].mxu0
        %v3438 = vadd.f32 %v3096, %v3437
        %v3439 = vpop.f32.mrb[0].mxu0
        %v3440 = vadd.f32 %v3100, %v3439
        %v3441 = vpop.f32.mrb[0].mxu0
        %v3442 = vadd.f32 %v3096, %v3441
        %v3443 = vpop.f32.mrb[0].mxu0
        %v3444 = vadd.f32 %v3100, %v3443
        %3445 = vmatprep.mubr.bf16.mxu0 %v3056
        %3446 = vmatmul.mubr.bf16.gmra.mrb[0].mxu0 %v3055
        %v3447 = vpop.f32.mrb[0].mxu0
        %v3448 = vadd.f32 %v3096, %v3447
        %v3449 = vpop.f32.mrb[0].mxu0
        %v3450 = vadd.f32 %v3100, %v3449
        %v3451 = vpop.f32.mrb[0].mxu0
        %v3452 = vadd.f32 %v3096, %v3451
        %v3453 = vpop.f32.mrb[0].mxu0
        %v3454 = vadd.f32 %v3100, %v3453
        %3455 = vdwg.mxu0
        %v3456 = vpack.c.bf16 %v3302, %v3298
        %v3457 = vpack.c.bf16 %v3304, %v3300
        %v3458 = vpack.c.bf16 %v3312, %v3308
        %v3459 = vpack.c.bf16 %v3314, %v3310
        %v3460 = vpack.c.bf16 %v3322, %v3318
        %v3461 = vpack.c.bf16 %v3324, %v3320
        %v3462 = vpack.c.bf16 %v3332, %v3328
        %v3463 = vpack.c.bf16 %v3334, %v3330
        %v3464 = vpack.c.bf16 %v3342, %v3338
        %v3465 = vpack.c.bf16 %v3344, %v3340
        %v3466 = vpack.c.bf16 %v3352, %v3348
        %v3467 = vpack.c.bf16 %v3354, %v3350
        %v3468 = vpack.c.bf16 %v3362, %v3358
        %v3469 = vpack.c.bf16 %v3364, %v3360
        %v3470 = vpack.c.bf16 %v3372, %v3368
        %v3471 = vpack.c.bf16 %v3374, %v3370
        %v3472 = vpack.c.bf16 %v3382, %v3378
        %v3473 = vpack.c.bf16 %v3384, %v3380
        %v3474 = vpack.c.bf16 %v3392, %v3388
        %v3475 = vpack.c.bf16 %v3394, %v3390
        %v3476 = vpack.c.bf16 %v3402, %v3398
        %v3477 = vpack.c.bf16 %v3404, %v3400
        %v3478 = vpack.c.bf16 %v3412, %v3408
        %v3479 = vpack.c.bf16 %v3414, %v3410
        %v3480 = vpack.c.bf16 %v3422, %v3418
        %v3481 = vpack.c.bf16 %v3424, %v3420
        %v3482 = vpack.c.bf16 %v3432, %v3428
        %v3483 = vpack.c.bf16 %v3434, %v3430
        %v3484 = vpack.c.bf16 %v3442, %v3438
        %v3485 = vpack.c.bf16 %v3444, %v3440
        %v3486 = vpack.c.bf16 %v3452, %v3448
        %v3487 = vpack.c.bf16 %v3454, %v3450
        %s3488 = scalar_lea.vmem %s3, 128
        %v3489 = vld [vmem:[%s3488] sm:$0xf]
        %v3490 = vld [vmem:[%s3488 + $0x4] sm:$0xf]
        %v3491 = vld [vmem:[%s3488 + $0x8] sm:$0xf]
        %v3492 = vld [vmem:[%s3488 + $0xc] sm:$0xf]
        %v3493 = vld [vmem:[%s3488 + $0x10] sm:$0xf]
        %v3494 = vld [vmem:[%s3488 + $0x14] sm:$0xf]
        %v3495 = vld [vmem:[%s3488 + $0x18] sm:$0xf]
        %v3496 = vld [vmem:[%s3488 + $0x1c] sm:$0xf]
        %v3497 = vld [vmem:[%s3488 + $0x20] sm:$0xf]
        %v3498 = vld [vmem:[%s3488 + $0x24] sm:$0xf]
        %v3499 = vld [vmem:[%s3488 + $0x28] sm:$0xf]
        %v3500 = vld [vmem:[%s3488 + $0x2c] sm:$0xf]
        %v3501 = vld [vmem:[%s3488 + $0x30] sm:$0xf]
        %v3502 = vld [vmem:[%s3488 + $0x34] sm:$0xf]
        %v3503 = vld [vmem:[%s3488 + $0x38] sm:$0xf]
        %v3504 = vld [vmem:[%s3488 + $0x3c] sm:$0xf]
        %v3505 = vld [vmem:[%s3488 + $0x40] sm:$0xf]
        %v3506 = vld [vmem:[%s3488 + $0x44] sm:$0xf]
        %v3507 = vld [vmem:[%s3488 + $0x48] sm:$0xf]
        %v3508 = vld [vmem:[%s3488 + $0x4c] sm:$0xf]
        %v3509 = vld [vmem:[%s3488 + $0x50] sm:$0xf]
        %v3510 = vld [vmem:[%s3488 + $0x54] sm:$0xf]
        %v3511 = vld [vmem:[%s3488 + $0x58] sm:$0xf]
        %v3512 = vld [vmem:[%s3488 + $0x5c] sm:$0xf]
        %v3513 = vld [vmem:[%s3488 + $0x60] sm:$0xf]
        %v3514 = vld [vmem:[%s3488 + $0x64] sm:$0xf]
        %v3515 = vld [vmem:[%s3488 + $0x68] sm:$0xf]
        %v3516 = vld [vmem:[%s3488 + $0x6c] sm:$0xf]
        %v3517 = vld [vmem:[%s3488 + $0x70] sm:$0xf]
        %v3518 = vld [vmem:[%s3488 + $0x74] sm:$0xf]
        %v3519 = vld [vmem:[%s3488 + $0x78] sm:$0xf]
        %v3520 = vld [vmem:[%s3488 + $0x7c] sm:$0xf]
        %v3553 = vunpack.c.l.b16 %v3489
        %v3554 = vunpack.c.l.b16 %v3490
        %v3555 = vunpack.c.l.b16 %v3491
        %v3556 = vunpack.c.l.b16 %v3492
        %v3557 = vunpack.c.l.b16 %v3493
        %v3558 = vunpack.c.l.b16 %v3494
        %v3559 = vunpack.c.l.b16 %v3495
        %v3560 = vunpack.c.l.b16 %v3496
        %v3561 = vunpack.c.l.b16 %v3497
        %v3562 = vunpack.c.l.b16 %v3498
        %v3563 = vunpack.c.l.b16 %v3499
        %v3564 = vunpack.c.l.b16 %v3500
        %v3565 = vunpack.c.l.b16 %v3501
        %v3566 = vunpack.c.l.b16 %v3502
        %v3567 = vunpack.c.l.b16 %v3503
        %v3568 = vunpack.c.l.b16 %v3504
        %v3569 = vunpack.c.l.b16 %v3505
        %v3570 = vunpack.c.l.b16 %v3506
        %v3571 = vunpack.c.l.b16 %v3507
        %v3572 = vunpack.c.l.b16 %v3508
        %v3573 = vunpack.c.l.b16 %v3509
        %v3574 = vunpack.c.l.b16 %v3510
        %v3575 = vunpack.c.l.b16 %v3511
        %v3576 = vunpack.c.l.b16 %v3512
        %v3577 = vunpack.c.l.b16 %v3513
        %v3578 = vunpack.c.l.b16 %v3514
        %v3579 = vunpack.c.l.b16 %v3515
        %v3580 = vunpack.c.l.b16 %v3516
        %v3581 = vunpack.c.l.b16 %v3517
        %v3582 = vunpack.c.l.b16 %v3518
        %v3583 = vunpack.c.l.b16 %v3519
        %v3584 = vunpack.c.l.b16 %v3520
        %v3585 = vpack.c.b16 %v3554, %v3553
        %v3586 = vpack.c.b16 %v3556, %v3555
        %v3587 = vpack.c.b16 %v3558, %v3557
        %v3588 = vpack.c.b16 %v3560, %v3559
        %v3589 = vpack.c.b16 %v3562, %v3561
        %v3590 = vpack.c.b16 %v3564, %v3563
        %v3591 = vpack.c.b16 %v3566, %v3565
        %v3592 = vpack.c.b16 %v3568, %v3567
        %v3593 = vpack.c.b16 %v3570, %v3569
        %v3594 = vpack.c.b16 %v3572, %v3571
        %v3595 = vpack.c.b16 %v3574, %v3573
        %v3596 = vpack.c.b16 %v3576, %v3575
        %v3597 = vpack.c.b16 %v3578, %v3577
        %v3598 = vpack.c.b16 %v3580, %v3579
        %v3599 = vpack.c.b16 %v3582, %v3581
        %v3600 = vpack.c.b16 %v3584, %v3583
        %3617 = vmatprep.subr.bf16.mxu0 0
        %3618 = vmatpush1.bf16.msra.mxu0 %v3585
        %3619 = vmatprep.subr.bf16.mxu0 0
        %3620 = vmatpush1.bf16.msra.mxu0 %v3586
        %3621 = vmatprep.subr.bf16.mxu0 0
        %3622 = vmatpush1.bf16.msra.mxu0 %v3587
        %3623 = vmatprep.subr.bf16.mxu0 0
        %3624 = vmatpush1.bf16.msra.mxu0 %v3588
        %3625 = vmatprep.subr.bf16.mxu0 0
        %3626 = vmatpush1.bf16.msra.mxu0 %v3589
        %3627 = vmatprep.subr.bf16.mxu0 0
        %3628 = vmatpush1.bf16.msra.mxu0 %v3590
        %3629 = vmatprep.subr.bf16.mxu0 0
        %3630 = vmatpush1.bf16.msra.mxu0 %v3591
        %3631 = vmatprep.subr.bf16.mxu0 0
        %3632 = vmatpush1.bf16.msra.mxu0 %v3592
        %3633 = vmatprep.subr.bf16.mxu0 0
        %3634 = vmatpush1.bf16.msra.mxu0 %v3593
        %3635 = vmatprep.subr.bf16.mxu0 0
        %3636 = vmatpush1.bf16.msra.mxu0 %v3594
        %3637 = vmatprep.subr.bf16.mxu0 0
        %3638 = vmatpush1.bf16.msra.mxu0 %v3595
        %3639 = vmatprep.subr.bf16.mxu0 0
        %3640 = vmatpush1.bf16.msra.mxu0 %v3596
        %3641 = vmatprep.subr.bf16.mxu0 0
        %3642 = vmatpush1.bf16.msra.mxu0 %v3597
        %3643 = vmatprep.subr.bf16.mxu0 0
        %3644 = vmatpush1.bf16.msra.mxu0 %v3598
        %3645 = vmatprep.subr.bf16.mxu0 0
        %3646 = vmatpush1.bf16.msra.mxu0 %v3599
        %3647 = vmatprep.subr.bf16.mxu0 0
        %3648 = vmatpush1.bf16.msra.mxu0 %v3600
        %3649 = vmatprep.mubr.bf16.mxu0 %v3457
        %3650 = vmatmul.mubr.bf16.gmra.mrb[0].mxu0 %v3456
        %v3651 = vpop.f32.mrb[0].mxu0
        %v3652 = vadd.f32 %v2485, %v3651
        %v3653 = vpop.f32.mrb[0].mxu0
        %v3654 = vpop.f32.mrb[0].mxu0
        %v3655 = vadd.f32 %v2488, %v3654
        %v3656 = vpop.f32.mrb[0].mxu0
        %3657 = vmatprep.mubr.bf16.mxu0 %v3459
        %3658 = vmatmul.mubr.bf16.gmra.mrb[0].mxu0 %v3458
        %v3659 = vpop.f32.mrb[0].mxu0
        %v3660 = vadd.f32 %v2493, %v3659
        %v3661 = vpop.f32.mrb[0].mxu0
        %v3662 = vpop.f32.mrb[0].mxu0
        %v3663 = vadd.f32 %v2496, %v3662
        %v3664 = vpop.f32.mrb[0].mxu0
        %3665 = vmatprep.mubr.bf16.mxu0 %v3461
        %3666 = vmatmul.mubr.bf16.gmra.mrb[0].mxu0 %v3460
        %v3667 = vpop.f32.mrb[0].mxu0
        %v3668 = vadd.f32 %v2501, %v3667
        %v3669 = vpop.f32.mrb[0].mxu0
        %v3670 = vpop.f32.mrb[0].mxu0
        %v3671 = vadd.f32 %v2504, %v3670
        %v3672 = vpop.f32.mrb[0].mxu0
        %3673 = vmatprep.mubr.bf16.mxu0 %v3463
        %3674 = vmatmul.mubr.bf16.gmra.mrb[0].mxu0 %v3462
        %v3675 = vpop.f32.mrb[0].mxu0
        %v3676 = vadd.f32 %v2509, %v3675
        %v3677 = vpop.f32.mrb[0].mxu0
        %v3678 = vpop.f32.mrb[0].mxu0
        %v3679 = vadd.f32 %v2512, %v3678
        %v3680 = vpop.f32.mrb[0].mxu0
        %3681 = vmatprep.mubr.bf16.mxu0 %v3465
        %3682 = vmatmul.mubr.bf16.gmra.mrb[0].mxu0 %v3464
        %v3683 = vpop.f32.mrb[0].mxu0
        %v3684 = vadd.f32 %v2517, %v3683
        %v3685 = vpop.f32.mrb[0].mxu0
        %v3686 = vpop.f32.mrb[0].mxu0
        %v3687 = vadd.f32 %v2520, %v3686
        %v3688 = vpop.f32.mrb[0].mxu0
        %3689 = vmatprep.mubr.bf16.mxu0 %v3467
        %3690 = vmatmul.mubr.bf16.gmra.mrb[0].mxu0 %v3466
        %v3691 = vpop.f32.mrb[0].mxu0
        %v3692 = vadd.f32 %v2525, %v3691
        %v3693 = vpop.f32.mrb[0].mxu0
        %v3694 = vpop.f32.mrb[0].mxu0
        %v3695 = vadd.f32 %v2528, %v3694
        %v3696 = vpop.f32.mrb[0].mxu0
        %3697 = vmatprep.mubr.bf16.mxu0 %v3469
        %3698 = vmatmul.mubr.bf16.gmra.mrb[0].mxu0 %v3468
        %v3699 = vpop.f32.mrb[0].mxu0
        %v3700 = vadd.f32 %v2533, %v3699
        %v3701 = vpop.f32.mrb[0].mxu0
        %v3702 = vpop.f32.mrb[0].mxu0
        %v3703 = vadd.f32 %v2536, %v3702
        %v3704 = vpop.f32.mrb[0].mxu0
        %3705 = vmatprep.mubr.bf16.mxu0 %v3471
        %3706 = vmatmul.mubr.bf16.gmra.mrb[0].mxu0 %v3470
        %v3707 = vpop.f32.mrb[0].mxu0
        %v3708 = vadd.f32 %v2541, %v3707
        %v3709 = vpop.f32.mrb[0].mxu0
        %v3710 = vpop.f32.mrb[0].mxu0
        %v3711 = vadd.f32 %v2544, %v3710
        %v3712 = vpop.f32.mrb[0].mxu0
        %3713 = vmatprep.mubr.bf16.mxu0 %v3473
        %3714 = vmatmul.mubr.bf16.gmra.mrb[0].mxu0 %v3472
        %v3715 = vpop.f32.mrb[0].mxu0
        %v3716 = vadd.f32 %v2549, %v3715
        %v3717 = vpop.f32.mrb[0].mxu0
        %v3718 = vpop.f32.mrb[0].mxu0
        %v3719 = vadd.f32 %v2552, %v3718
        %v3720 = vpop.f32.mrb[0].mxu0
        %3721 = vmatprep.mubr.bf16.mxu0 %v3475
        %3722 = vmatmul.mubr.bf16.gmra.mrb[0].mxu0 %v3474
        %v3723 = vpop.f32.mrb[0].mxu0
        %v3724 = vadd.f32 %v2557, %v3723
        %v3725 = vpop.f32.mrb[0].mxu0
        %v3726 = vpop.f32.mrb[0].mxu0
        %v3727 = vadd.f32 %v2560, %v3726
        %v3728 = vpop.f32.mrb[0].mxu0
        %3729 = vmatprep.mubr.bf16.mxu0 %v3477
        %3730 = vmatmul.mubr.bf16.gmra.mrb[0].mxu0 %v3476
        %v3731 = vpop.f32.mrb[0].mxu0
        %v3732 = vadd.f32 %v2565, %v3731
        %v3733 = vpop.f32.mrb[0].mxu0
        %v3734 = vpop.f32.mrb[0].mxu0
        %v3735 = vadd.f32 %v2568, %v3734
        %v3736 = vpop.f32.mrb[0].mxu0
        %3737 = vmatprep.mubr.bf16.mxu0 %v3479
        %3738 = vmatmul.mubr.bf16.gmra.mrb[0].mxu0 %v3478
        %v3739 = vpop.f32.mrb[0].mxu0
        %v3740 = vadd.f32 %v2573, %v3739
        %v3741 = vpop.f32.mrb[0].mxu0
        %v3742 = vpop.f32.mrb[0].mxu0
        %v3743 = vadd.f32 %v2576, %v3742
        %v3744 = vpop.f32.mrb[0].mxu0
        %3745 = vmatprep.mubr.bf16.mxu0 %v3481
        %3746 = vmatmul.mubr.bf16.gmra.mrb[0].mxu0 %v3480
        %v3747 = vpop.f32.mrb[0].mxu0
        %v3748 = vadd.f32 %v2581, %v3747
        %v3749 = vpop.f32.mrb[0].mxu0
        %v3750 = vpop.f32.mrb[0].mxu0
        %v3751 = vadd.f32 %v2584, %v3750
        %v3752 = vpop.f32.mrb[0].mxu0
        %3753 = vmatprep.mubr.bf16.mxu0 %v3483
        %3754 = vmatmul.mubr.bf16.gmra.mrb[0].mxu0 %v3482
        %v3755 = vpop.f32.mrb[0].mxu0
        %v3756 = vadd.f32 %v2589, %v3755
        %v3757 = vpop.f32.mrb[0].mxu0
        %v3758 = vpop.f32.mrb[0].mxu0
        %v3759 = vadd.f32 %v2592, %v3758
        %v3760 = vpop.f32.mrb[0].mxu0
        %3761 = vmatprep.mubr.bf16.mxu0 %v3485
        %3762 = vmatmul.mubr.bf16.gmra.mrb[0].mxu0 %v3484
        %v3763 = vpop.f32.mrb[0].mxu0
        %v3764 = vadd.f32 %v2597, %v3763
        %v3765 = vpop.f32.mrb[0].mxu0
        %v3766 = vpop.f32.mrb[0].mxu0
        %v3767 = vadd.f32 %v2600, %v3766
        %v3768 = vpop.f32.mrb[0].mxu0
        %3769 = vmatprep.mubr.bf16.mxu0 %v3487
        %3770 = vmatmul.mubr.bf16.gmra.mrb[0].mxu0 %v3486
        %v3771 = vpop.f32.mrb[0].mxu0
        %v3772 = vadd.f32 %v2605, %v3771
        %v3773 = vpop.f32.mrb[0].mxu0
        %v3774 = vpop.f32.mrb[0].mxu0
        %v3775 = vadd.f32 %v2608, %v3774
        %v3776 = vpop.f32.mrb[0].mxu0
        %3777 = vdwg.mxu0
        %v3778 = vld [vmem:[%s7 + $0x6] ss:$0 sm:$0xff]
        %v3779 = vadd.f32 %v3652, %v3778
        %v3780 = vadd.f32 %v3655, %v3778
        %v3781 = vadd.f32 %v3660, %v3778
        %v3782 = vadd.f32 %v3663, %v3778
        %v3783 = vadd.f32 %v3668, %v3778
        %v3784 = vadd.f32 %v3671, %v3778
        %v3785 = vadd.f32 %v3676, %v3778
        %v3786 = vadd.f32 %v3679, %v3778
        %v3787 = vadd.f32 %v3684, %v3778
        %v3788 = vadd.f32 %v3687, %v3778
        %v3789 = vadd.f32 %v3692, %v3778
        %v3790 = vadd.f32 %v3695, %v3778
        %v3791 = vadd.f32 %v3700, %v3778
        %v3792 = vadd.f32 %v3703, %v3778
        %v3793 = vadd.f32 %v3708, %v3778
        %v3794 = vadd.f32 %v3711, %v3778
        %v3795 = vadd.f32 %v3716, %v3778
        %v3796 = vadd.f32 %v3719, %v3778
        %v3797 = vadd.f32 %v3724, %v3778
        %v3798 = vadd.f32 %v3727, %v3778
        %v3799 = vadd.f32 %v3732, %v3778
        %v3800 = vadd.f32 %v3735, %v3778
        %v3801 = vadd.f32 %v3740, %v3778
        %v3802 = vadd.f32 %v3743, %v3778
        %v3803 = vadd.f32 %v3748, %v3778
        %v3804 = vadd.f32 %v3751, %v3778
        %v3805 = vadd.f32 %v3756, %v3778
        %v3806 = vadd.f32 %v3759, %v3778
        %v3807 = vadd.f32 %v3764, %v3778
        %v3808 = vadd.f32 %v3767, %v3778
        %v3809 = vadd.f32 %v3772, %v3778
        %v3810 = vadd.f32 %v3775, %v3778
        %v3811 = vmax.f32 %v3779, 0.0
        %v3812 = vmax.f32 %v3780, 0.0
        %v3813 = vmax.f32 %v3781, 0.0
        %v3814 = vmax.f32 %v3782, 0.0
        %v3815 = vmax.f32 %v3783, 0.0
        %v3816 = vmax.f32 %v3784, 0.0
        %v3817 = vmax.f32 %v3785, 0.0
        %v3818 = vmax.f32 %v3786, 0.0
        %v3819 = vmax.f32 %v3787, 0.0
        %v3820 = vmax.f32 %v3788, 0.0
        %v3821 = vmax.f32 %v3789, 0.0
        %v3822 = vmax.f32 %v3790, 0.0
        %v3823 = vmax.f32 %v3791, 0.0
        %v3824 = vmax.f32 %v3792, 0.0
        %v3825 = vmax.f32 %v3793, 0.0
        %v3826 = vmax.f32 %v3794, 0.0
        %v3827 = vmax.f32 %v3795, 0.0
        %v3828 = vmax.f32 %v3796, 0.0
        %v3829 = vmax.f32 %v3797, 0.0
        %v3830 = vmax.f32 %v3798, 0.0
        %v3831 = vmax.f32 %v3799, 0.0
        %v3832 = vmax.f32 %v3800, 0.0
        %v3833 = vmax.f32 %v3801, 0.0
        %v3834 = vmax.f32 %v3802, 0.0
        %v3835 = vmax.f32 %v3803, 0.0
        %v3836 = vmax.f32 %v3804, 0.0
        %v3837 = vmax.f32 %v3805, 0.0
        %v3838 = vmax.f32 %v3806, 0.0
        %v3839 = vmax.f32 %v3807, 0.0
        %v3840 = vmax.f32 %v3808, 0.0
        %v3841 = vmax.f32 %v3809, 0.0
        %v3842 = vmax.f32 %v3810, 0.0
        %v3843 = vpack.c.bf16 %v3812, %v3811
        %v3844 = vpack.c.bf16 %v3814, %v3813
        %v3845 = vpack.c.bf16 %v3816, %v3815
        %v3846 = vpack.c.bf16 %v3818, %v3817
        %v3847 = vpack.c.bf16 %v3820, %v3819
        %v3848 = vpack.c.bf16 %v3822, %v3821
        %v3849 = vpack.c.bf16 %v3824, %v3823
        %v3850 = vpack.c.bf16 %v3826, %v3825
        %v3851 = vpack.c.bf16 %v3828, %v3827
        %v3852 = vpack.c.bf16 %v3830, %v3829
        %v3853 = vpack.c.bf16 %v3832, %v3831
        %v3854 = vpack.c.bf16 %v3834, %v3833
        %v3855 = vpack.c.bf16 %v3836, %v3835
        %v3856 = vpack.c.bf16 %v3838, %v3837
        %v3857 = vpack.c.bf16 %v3840, %v3839
        %v3858 = vpack.c.bf16 %v3842, %v3841
        %v3859 = vld [vmem:[%s6] sm:$0xf]
        %v3860 = vld [vmem:[%s6 + $0x4] sm:$0xf]
        %v3861 = vld [vmem:[%s6 + $0x8] sm:$0xf]
        %v3862 = vld [vmem:[%s6 + $0xc] sm:$0xf]
        %v3863 = vld [vmem:[%s6 + $0x10] sm:$0xf]
        %v3864 = vld [vmem:[%s6 + $0x14] sm:$0xf]
        %v3865 = vld [vmem:[%s6 + $0x18] sm:$0xf]
        %v3866 = vld [vmem:[%s6 + $0x1c] sm:$0xf]
        %v3867 = vld [vmem:[%s6 + $0x20] sm:$0xf]
        %v3868 = vld [vmem:[%s6 + $0x24] sm:$0xf]
        %v3869 = vld [vmem:[%s6 + $0x28] sm:$0xf]
        %v3870 = vld [vmem:[%s6 + $0x2c] sm:$0xf]
        %v3871 = vld [vmem:[%s6 + $0x30] sm:$0xf]
        %v3872 = vld [vmem:[%s6 + $0x34] sm:$0xf]
        %v3873 = vld [vmem:[%s6 + $0x38] sm:$0xf]
        %v3874 = vld [vmem:[%s6 + $0x3c] sm:$0xf]
        %v3875 = vld [vmem:[%s7 + $0x7] ss:$0 sm:$0xff]
        %v3892 = vunpack.c.l.b16 %v3859
        %v3893 = vunpack.c.l.b16 %v3860
        %v3894 = vunpack.c.l.b16 %v3861
        %v3895 = vunpack.c.l.b16 %v3862
        %v3896 = vunpack.c.l.b16 %v3863
        %v3897 = vunpack.c.l.b16 %v3864
        %v3898 = vunpack.c.l.b16 %v3865
        %v3899 = vunpack.c.l.b16 %v3866
        %v3900 = vunpack.c.l.b16 %v3867
        %v3901 = vunpack.c.l.b16 %v3868
        %v3902 = vunpack.c.l.b16 %v3869
        %v3903 = vunpack.c.l.b16 %v3870
        %v3904 = vunpack.c.l.b16 %v3871
        %v3905 = vunpack.c.l.b16 %v3872
        %v3906 = vunpack.c.l.b16 %v3873
        %v3907 = vunpack.c.l.b16 %v3874
        %v3908 = vpack.c.b16 %v3893, %v3892
        %v3909 = vpack.c.b16 %v3895, %v3894
        %v3910 = vpack.c.b16 %v3897, %v3896
        %v3911 = vpack.c.b16 %v3899, %v3898
        %v3912 = vpack.c.b16 %v3901, %v3900
        %v3913 = vpack.c.b16 %v3903, %v3902
        %v3914 = vpack.c.b16 %v3905, %v3904
        %v3915 = vpack.c.b16 %v3907, %v3906
        %3924 = vmatprep.subr.bf16.mxu0 0
        %3925 = vmatpush1.bf16.msra.mxu0 %v3908
        %3926 = vmatprep.subr.bf16.mxu0 0
        %3927 = vmatpush1.bf16.msra.mxu0 %v3909
        %3928 = vmatprep.subr.bf16.mxu0 0
        %3929 = vmatpush1.bf16.msra.mxu0 %v3910
        %3930 = vmatprep.subr.bf16.mxu0 0
        %3931 = vmatpush1.bf16.msra.mxu0 %v3911
        %3932 = vmatprep.subr.bf16.mxu0 0
        %3933 = vmatpush1.bf16.msra.mxu0 %v3912
        %3934 = vmatprep.subr.bf16.mxu0 0
        %3935 = vmatpush1.bf16.msra.mxu0 %v3913
        %3936 = vmatprep.subr.bf16.mxu0 0
        %3937 = vmatpush1.bf16.msra.mxu0 %v3914
        %3938 = vmatprep.subr.bf16.mxu0 0
        %3939 = vmatpush1.bf16.msra.mxu0 %v3915
        %3940 = vmatprep.subr.bf16.mxu0 0
        %3941 = vmatpush1.bf16.msra.mxu0 0
        %3942 = vmatprep.subr.bf16.mxu0 0
        %3943 = vmatpush1.bf16.msra.mxu0 0
        %3944 = vmatprep.subr.bf16.mxu0 0
        %3945 = vmatpush1.bf16.msra.mxu0 0
        %3946 = vmatprep.subr.bf16.mxu0 0
        %3947 = vmatpush1.bf16.msra.mxu0 0
        %3948 = vmatprep.subr.bf16.mxu0 0
        %3949 = vmatpush1.bf16.msra.mxu0 0
        %3950 = vmatprep.subr.bf16.mxu0 0
        %3951 = vmatpush1.bf16.msra.mxu0 0
        %3952 = vmatprep.subr.bf16.mxu0 0
        %3953 = vmatpush1.bf16.msra.mxu0 0
        %3954 = vmatprep.subr.bf16.mxu0 0
        %3955 = vmatpush1.bf16.msra.mxu0 0
        %3956 = vmatprep.mubr.bf16.mxu0 0
        %3957 = vmatmul.mubr.bf16.gmra.mrb[0].mxu0 %v3843
        %v3958 = vpop.f32.mrb[0].mxu0
        %v3959 = vadd.f32 %v3875, %v3958
        %v3960 = vpop.f32.mrb[0].mxu0
        %v3961 = vpop.f32.mrb[0].mxu0
        %v3962 = vadd.f32 %v3875, %v3961
        %v3963 = vpop.f32.mrb[0].mxu0
        %3964 = vmatprep.mubr.bf16.mxu0 0
        %3965 = vmatmul.mubr.bf16.gmra.mrb[0].mxu0 %v3844
        %v3966 = vpop.f32.mrb[0].mxu0
        %v3967 = vadd.f32 %v3875, %v3966
        %v3968 = vpop.f32.mrb[0].mxu0
        %v3969 = vpop.f32.mrb[0].mxu0
        %v3970 = vadd.f32 %v3875, %v3969
        %v3971 = vpop.f32.mrb[0].mxu0
        %3972 = vmatprep.mubr.bf16.mxu0 0
        %3973 = vmatmul.mubr.bf16.gmra.mrb[0].mxu0 %v3845
        %v3974 = vpop.f32.mrb[0].mxu0
        %v3975 = vadd.f32 %v3875, %v3974
        %v3976 = vpop.f32.mrb[0].mxu0
        %v3977 = vpop.f32.mrb[0].mxu0
        %v3978 = vadd.f32 %v3875, %v3977
        %v3979 = vpop.f32.mrb[0].mxu0
        %3980 = vmatprep.mubr.bf16.mxu0 0
        %3981 = vmatmul.mubr.bf16.gmra.mrb[0].mxu0 %v3846
        %v3982 = vpop.f32.mrb[0].mxu0
        %v3983 = vadd.f32 %v3875, %v3982
        %v3984 = vpop.f32.mrb[0].mxu0
        %v3985 = vpop.f32.mrb[0].mxu0
        %v3986 = vadd.f32 %v3875, %v3985
        %v3987 = vpop.f32.mrb[0].mxu0
        %3988 = vmatprep.mubr.bf16.mxu0 0
        %3989 = vmatmul.mubr.bf16.gmra.mrb[0].mxu0 %v3847
        %v3990 = vpop.f32.mrb[0].mxu0
        %v3991 = vadd.f32 %v3875, %v3990
        %v3992 = vpop.f32.mrb[0].mxu0
        %v3993 = vpop.f32.mrb[0].mxu0
        %v3994 = vadd.f32 %v3875, %v3993
        %v3995 = vpop.f32.mrb[0].mxu0
        %3996 = vmatprep.mubr.bf16.mxu0 0
        %3997 = vmatmul.mubr.bf16.gmra.mrb[0].mxu0 %v3848
        %v3998 = vpop.f32.mrb[0].mxu0
        %v3999 = vadd.f32 %v3875, %v3998
        %v4000 = vpop.f32.mrb[0].mxu0
        %v4001 = vpop.f32.mrb[0].mxu0
        %v4002 = vadd.f32 %v3875, %v4001
        %v4003 = vpop.f32.mrb[0].mxu0
        %4004 = vmatprep.mubr.bf16.mxu0 0
        %4005 = vmatmul.mubr.bf16.gmra.mrb[0].mxu0 %v3849
        %v4006 = vpop.f32.mrb[0].mxu0
        %v4007 = vadd.f32 %v3875, %v4006
        %v4008 = vpop.f32.mrb[0].mxu0
        %v4009 = vpop.f32.mrb[0].mxu0
        %v4010 = vadd.f32 %v3875, %v4009
        %v4011 = vpop.f32.mrb[0].mxu0
        %4012 = vmatprep.mubr.bf16.mxu0 0
        %4013 = vmatmul.mubr.bf16.gmra.mrb[0].mxu0 %v3850
        %v4014 = vpop.f32.mrb[0].mxu0
        %v4015 = vadd.f32 %v3875, %v4014
        %v4016 = vpop.f32.mrb[0].mxu0
        %v4017 = vpop.f32.mrb[0].mxu0
        %v4018 = vadd.f32 %v3875, %v4017
        %v4019 = vpop.f32.mrb[0].mxu0
        %4020 = vmatprep.mubr.bf16.mxu0 0
        %4021 = vmatmul.mubr.bf16.gmra.mrb[0].mxu0 %v3851
        %v4022 = vpop.f32.mrb[0].mxu0
        %v4023 = vadd.f32 %v3875, %v4022
        %v4024 = vpop.f32.mrb[0].mxu0
        %v4025 = vpop.f32.mrb[0].mxu0
        %v4026 = vadd.f32 %v3875, %v4025
        %v4027 = vpop.f32.mrb[0].mxu0
        %4028 = vmatprep.mubr.bf16.mxu0 0
        %4029 = vmatmul.mubr.bf16.gmra.mrb[0].mxu0 %v3852
        %v4030 = vpop.f32.mrb[0].mxu0
        %v4031 = vadd.f32 %v3875, %v4030
        %v4032 = vpop.f32.mrb[0].mxu0
        %v4033 = vpop.f32.mrb[0].mxu0
        %v4034 = vadd.f32 %v3875, %v4033
        %v4035 = vpop.f32.mrb[0].mxu0
        %4036 = vmatprep.mubr.bf16.mxu0 0
        %4037 = vmatmul.mubr.bf16.gmra.mrb[0].mxu0 %v3853
        %v4038 = vpop.f32.mrb[0].mxu0
        %v4039 = vadd.f32 %v3875, %v4038
        %v4040 = vpop.f32.mrb[0].mxu0
        %v4041 = vpop.f32.mrb[0].mxu0
        %v4042 = vadd.f32 %v3875, %v4041
        %v4043 = vpop.f32.mrb[0].mxu0
        %4044 = vmatprep.mubr.bf16.mxu0 0
        %4045 = vmatmul.mubr.bf16.gmra.mrb[0].mxu0 %v3854
        %v4046 = vpop.f32.mrb[0].mxu0
        %v4047 = vadd.f32 %v3875, %v4046
        %v4048 = vpop.f32.mrb[0].mxu0
        %v4049 = vpop.f32.mrb[0].mxu0
        %v4050 = vadd.f32 %v3875, %v4049
        %v4051 = vpop.f32.mrb[0].mxu0
        %4052 = vmatprep.mubr.bf16.mxu0 0
        %4053 = vmatmul.mubr.bf16.gmra.mrb[0].mxu0 %v3855
        %v4054 = vpop.f32.mrb[0].mxu0
        %v4055 = vadd.f32 %v3875, %v4054
        %v4056 = vpop.f32.mrb[0].mxu0
        %v4057 = vpop.f32.mrb[0].mxu0
        %v4058 = vadd.f32 %v3875, %v4057
        %v4059 = vpop.f32.mrb[0].mxu0
        %4060 = vmatprep.mubr.bf16.mxu0 0
        %4061 = vmatmul.mubr.bf16.gmra.mrb[0].mxu0 %v3856
        %v4062 = vpop.f32.mrb[0].mxu0
        %v4063 = vadd.f32 %v3875, %v4062
        %v4064 = vpop.f32.mrb[0].mxu0
        %v4065 = vpop.f32.mrb[0].mxu0
        %v4066 = vadd.f32 %v3875, %v4065
        %v4067 = vpop.f32.mrb[0].mxu0
        %4068 = vmatprep.mubr.bf16.mxu0 0
        %4069 = vmatmul.mubr.bf16.gmra.mrb[0].mxu0 %v3857
        %v4070 = vpop.f32.mrb[0].mxu0
        %v4071 = vadd.f32 %v3875, %v4070
        %v4072 = vpop.f32.mrb[0].mxu0
        %v4073 = vpop.f32.mrb[0].mxu0
        %v4074 = vadd.f32 %v3875, %v4073
        %v4075 = vpop.f32.mrb[0].mxu0
        %4076 = vmatprep.mubr.bf16.mxu0 0
        %4077 = vmatmul.mubr.bf16.gmra.mrb[0].mxu0 %v3858
        %v4078 = vpop.f32.mrb[0].mxu0
        %v4079 = vadd.f32 %v3875, %v4078
        %v4080 = vpop.f32.mrb[0].mxu0
        %v4081 = vpop.f32.mrb[0].mxu0
        %v4082 = vadd.f32 %v3875, %v4081
        %v4083 = vpop.f32.mrb[0].mxu0
        %4084 = vdwg.mxu0
        %vm4085 = vcmask 31744
        %4086 = vst.msk [vmem:[%s337] sm:$0xff] %vm4085, %v2003
        %4087 = vst.msk [vmem:[%s337 + $0x8] sm:$0xff] %vm4085, %v2006
        %4088 = vst.msk [vmem:[%s337 + $0x10] sm:$0xff] %vm4085, %v2011
        %4089 = vst.msk [vmem:[%s337 + $0x18] sm:$0xff] %vm4085, %v2014
        %4090 = vst.msk [vmem:[%s337 + $0x20] sm:$0xff] %vm4085, %v2019
        %4091 = vst.msk [vmem:[%s337 + $0x28] sm:$0xff] %vm4085, %v2022
        %4092 = vst.msk [vmem:[%s337 + $0x30] sm:$0xff] %vm4085, %v2027
        %4093 = vst.msk [vmem:[%s337 + $0x38] sm:$0xff] %vm4085, %v2030
        %4094 = vst.msk [vmem:[%s337 + $0x40] sm:$0xff] %vm4085, %v2035
        %4095 = vst.msk [vmem:[%s337 + $0x48] sm:$0xff] %vm4085, %v2038
        %4096 = vst.msk [vmem:[%s337 + $0x50] sm:$0xff] %vm4085, %v2043
        %4097 = vst.msk [vmem:[%s337 + $0x58] sm:$0xff] %vm4085, %v2046
        %4098 = vst.msk [vmem:[%s337 + $0x60] sm:$0xff] %vm4085, %v2051
        %4099 = vst.msk [vmem:[%s337 + $0x68] sm:$0xff] %vm4085, %v2054
        %4100 = vst.msk [vmem:[%s337 + $0x70] sm:$0xff] %vm4085, %v2059
        %4101 = vst.msk [vmem:[%s337 + $0x78] sm:$0xff] %vm4085, %v2062
        %4102 = vst.msk [vmem:[%s337 + $0x80] sm:$0xff] %vm4085, %v2067
        %4103 = vst.msk [vmem:[%s337 + $0x88] sm:$0xff] %vm4085, %v2070
        %4104 = vst.msk [vmem:[%s337 + $0x90] sm:$0xff] %vm4085, %v2075
        %4105 = vst.msk [vmem:[%s337 + $0x98] sm:$0xff] %vm4085, %v2078
        %4106 = vst.msk [vmem:[%s337 + $0xa0] sm:$0xff] %vm4085, %v2083
        %4107 = vst.msk [vmem:[%s337 + $0xa8] sm:$0xff] %vm4085, %v2086
        %4108 = vst.msk [vmem:[%s337 + $0xb0] sm:$0xff] %vm4085, %v2091
        %4109 = vst.msk [vmem:[%s337 + $0xb8] sm:$0xff] %vm4085, %v2094
        %4110 = vst.msk [vmem:[%s337 + $0xc0] sm:$0xff] %vm4085, %v2099
        %4111 = vst.msk [vmem:[%s337 + $0xc8] sm:$0xff] %vm4085, %v2102
        %4112 = vst.msk [vmem:[%s337 + $0xd0] sm:$0xff] %vm4085, %v2107
        %4113 = vst.msk [vmem:[%s337 + $0xd8] sm:$0xff] %vm4085, %v2110
        %4114 = vst.msk [vmem:[%s337 + $0xe0] sm:$0xff] %vm4085, %v2115
        %4115 = vst.msk [vmem:[%s337 + $0xe8] sm:$0xff] %vm4085, %v2118
        %4116 = vst.msk [vmem:[%s337 + $0xf0] sm:$0xff] %vm4085, %v2123
        %4117 = vst.msk [vmem:[%s337 + $0xf8] sm:$0xff] %vm4085, %v2126
        %4150 = vrot.lane.b32.xlu0 %v3959, 4
        %v4151 = vpop.permute.xlu0 %4150
        %4152 = vrot.lane.b32.xlu0 %v3962, 4
        %v4153 = vpop.permute.xlu0 %4152
        %4154 = vrot.lane.b32.xlu0 %v3967, 4
        %v4155 = vpop.permute.xlu0 %4154
        %4156 = vrot.lane.b32.xlu0 %v3970, 4
        %v4157 = vpop.permute.xlu0 %4156
        %4158 = vrot.lane.b32.xlu0 %v3975, 4
        %v4159 = vpop.permute.xlu0 %4158
        %4160 = vrot.lane.b32.xlu0 %v3978, 4
        %v4161 = vpop.permute.xlu0 %4160
        %4162 = vrot.lane.b32.xlu0 %v3983, 4
        %v4163 = vpop.permute.xlu0 %4162
        %4164 = vrot.lane.b32.xlu0 %v3986, 4
        %v4165 = vpop.permute.xlu0 %4164
        %4166 = vrot.lane.b32.xlu0 %v3991, 4
        %v4167 = vpop.permute.xlu0 %4166
        %4168 = vrot.lane.b32.xlu0 %v3994, 4
        %v4169 = vpop.permute.xlu0 %4168
        %4170 = vrot.lane.b32.xlu0 %v3999, 4
        %v4171 = vpop.permute.xlu0 %4170
        %4172 = vrot.lane.b32.xlu0 %v4002, 4
        %v4173 = vpop.permute.xlu0 %4172
        %4174 = vrot.lane.b32.xlu0 %v4007, 4
        %v4175 = vpop.permute.xlu0 %4174
        %4176 = vrot.lane.b32.xlu0 %v4010, 4
        %v4177 = vpop.permute.xlu0 %4176
        %4178 = vrot.lane.b32.xlu0 %v4015, 4
        %v4179 = vpop.permute.xlu0 %4178
        %4180 = vrot.lane.b32.xlu0 %v4018, 4
        %v4181 = vpop.permute.xlu0 %4180
        %4182 = vrot.lane.b32.xlu0 %v4023, 4
        %v4183 = vpop.permute.xlu0 %4182
        %4184 = vrot.lane.b32.xlu0 %v4026, 4
        %v4185 = vpop.permute.xlu0 %4184
        %4186 = vrot.lane.b32.xlu0 %v4031, 4
        %v4187 = vpop.permute.xlu0 %4186
        %4188 = vrot.lane.b32.xlu0 %v4034, 4
        %v4189 = vpop.permute.xlu0 %4188
        %4190 = vrot.lane.b32.xlu0 %v4039, 4
        %v4191 = vpop.permute.xlu0 %4190
        %4192 = vrot.lane.b32.xlu0 %v4042, 4
        %v4193 = vpop.permute.xlu0 %4192
        %4194 = vrot.lane.b32.xlu0 %v4047, 4
        %v4195 = vpop.permute.xlu0 %4194
        %4196 = vrot.lane.b32.xlu0 %v4050, 4
        %v4197 = vpop.permute.xlu0 %4196
        %4198 = vrot.lane.b32.xlu0 %v4055, 4
        %v4199 = vpop.permute.xlu0 %4198
        %4200 = vrot.lane.b32.xlu0 %v4058, 4
        %v4201 = vpop.permute.xlu0 %4200
        %4202 = vrot.lane.b32.xlu0 %v4063, 4
        %v4203 = vpop.permute.xlu0 %4202
        %4204 = vrot.lane.b32.xlu0 %v4066, 4
        %v4205 = vpop.permute.xlu0 %4204
        %4206 = vrot.lane.b32.xlu0 %v4071, 4
        %v4207 = vpop.permute.xlu0 %4206
        %4208 = vrot.lane.b32.xlu0 %v4074, 4
        %v4209 = vpop.permute.xlu0 %4208
        %4210 = vrot.lane.b32.xlu0 %v4079, 4
        %v4211 = vpop.permute.xlu0 %4210
        %4212 = vrot.lane.b32.xlu0 %v4082, 4
        %v4213 = vpop.permute.xlu0 %4212
        %vm4246 = vcmask 56352
        %4247 = vst.msk [vmem:[%s337] sm:$0xff] %vm4246, %v4151
        %4248 = vst.msk [vmem:[%s337 + $0x8] sm:$0xff] %vm4246, %v4153
        %4249 = vst.msk [vmem:[%s337 + $0x10] sm:$0xff] %vm4246, %v4155
        %4250 = vst.msk [vmem:[%s337 + $0x18] sm:$0xff] %vm4246, %v4157
        %4251 = vst.msk [vmem:[%s337 + $0x20] sm:$0xff] %vm4246, %v4159
        %4252 = vst.msk [vmem:[%s337 + $0x28] sm:$0xff] %vm4246, %v4161
        %4253 = vst.msk [vmem:[%s337 + $0x30] sm:$0xff] %vm4246, %v4163
        %4254 = vst.msk [vmem:[%s337 + $0x38] sm:$0xff] %vm4246, %v4165
        %4255 = vst.msk [vmem:[%s337 + $0x40] sm:$0xff] %vm4246, %v4167
        %4256 = vst.msk [vmem:[%s337 + $0x48] sm:$0xff] %vm4246, %v4169
        %4257 = vst.msk [vmem:[%s337 + $0x50] sm:$0xff] %vm4246, %v4171
        %4258 = vst.msk [vmem:[%s337 + $0x58] sm:$0xff] %vm4246, %v4173
        %4259 = vst.msk [vmem:[%s337 + $0x60] sm:$0xff] %vm4246, %v4175
        %4260 = vst.msk [vmem:[%s337 + $0x68] sm:$0xff] %vm4246, %v4177
        %4261 = vst.msk [vmem:[%s337 + $0x70] sm:$0xff] %vm4246, %v4179
        %4262 = vst.msk [vmem:[%s337 + $0x78] sm:$0xff] %vm4246, %v4181
        %4263 = vst.msk [vmem:[%s337 + $0x80] sm:$0xff] %vm4246, %v4183
        %4264 = vst.msk [vmem:[%s337 + $0x88] sm:$0xff] %vm4246, %v4185
        %4265 = vst.msk [vmem:[%s337 + $0x90] sm:$0xff] %vm4246, %v4187
        %4266 = vst.msk [vmem:[%s337 + $0x98] sm:$0xff] %vm4246, %v4189
        %4267 = vst.msk [vmem:[%s337 + $0xa0] sm:$0xff] %vm4246, %v4191
        %4268 = vst.msk [vmem:[%s337 + $0xa8] sm:$0xff] %vm4246, %v4193
        %4269 = vst.msk [vmem:[%s337 + $0xb0] sm:$0xff] %vm4246, %v4195
        %4270 = vst.msk [vmem:[%s337 + $0xb8] sm:$0xff] %vm4246, %v4197
        %4271 = vst.msk [vmem:[%s337 + $0xc0] sm:$0xff] %vm4246, %v4199
        %4272 = vst.msk [vmem:[%s337 + $0xc8] sm:$0xff] %vm4246, %v4201
        %4273 = vst.msk [vmem:[%s337 + $0xd0] sm:$0xff] %vm4246, %v4203
        %4274 = vst.msk [vmem:[%s337 + $0xd8] sm:$0xff] %vm4246, %v4205
        %4275 = vst.msk [vmem:[%s337 + $0xe0] sm:$0xff] %vm4246, %v4207
        %4276 = vst.msk [vmem:[%s337 + $0xe8] sm:$0xff] %vm4246, %v4209
        %4277 = vst.msk [vmem:[%s337 + $0xf0] sm:$0xff] %vm4246, %v4211
        %4278 = vst.msk [vmem:[%s337 + $0xf8] sm:$0xff] %vm4246, %v4213
        %vm4279 = vcmask 64568
        %4280 = vst.msk [vmem:[%s337] sm:$0xff] %vm4279, 0.0
        %4281 = vst.msk [vmem:[%s337 + $0x8] sm:$0xff] %vm4279, 0.0
        %4282 = vst.msk [vmem:[%s337 + $0x10] sm:$0xff] %vm4279, 0.0
        %4283 = vst.msk [vmem:[%s337 + $0x18] sm:$0xff] %vm4279, 0.0
        %4284 = vst.msk [vmem:[%s337 + $0x20] sm:$0xff] %vm4279, 0.0
        %4285 = vst.msk [vmem:[%s337 + $0x28] sm:$0xff] %vm4279, 0.0
        %4286 = vst.msk [vmem:[%s337 + $0x30] sm:$0xff] %vm4279, 0.0
        %4287 = vst.msk [vmem:[%s337 + $0x38] sm:$0xff] %vm4279, 0.0
        %4288 = vst.msk [vmem:[%s337 + $0x40] sm:$0xff] %vm4279, 0.0
        %4289 = vst.msk [vmem:[%s337 + $0x48] sm:$0xff] %vm4279, 0.0
        %4290 = vst.msk [vmem:[%s337 + $0x50] sm:$0xff] %vm4279, 0.0
        %4291 = vst.msk [vmem:[%s337 + $0x58] sm:$0xff] %vm4279, 0.0
        %4292 = vst.msk [vmem:[%s337 + $0x60] sm:$0xff] %vm4279, 0.0
        %4293 = vst.msk [vmem:[%s337 + $0x68] sm:$0xff] %vm4279, 0.0
        %4294 = vst.msk [vmem:[%s337 + $0x70] sm:$0xff] %vm4279, 0.0
        %4295 = vst.msk [vmem:[%s337 + $0x78] sm:$0xff] %vm4279, 0.0
        %4296 = vst.msk [vmem:[%s337 + $0x80] sm:$0xff] %vm4279, 0.0
        %4297 = vst.msk [vmem:[%s337 + $0x88] sm:$0xff] %vm4279, 0.0
        %4298 = vst.msk [vmem:[%s337 + $0x90] sm:$0xff] %vm4279, 0.0
        %4299 = vst.msk [vmem:[%s337 + $0x98] sm:$0xff] %vm4279, 0.0
        %4300 = vst.msk [vmem:[%s337 + $0xa0] sm:$0xff] %vm4279, 0.0
        %4301 = vst.msk [vmem:[%s337 + $0xa8] sm:$0xff] %vm4279, 0.0
        %4302 = vst.msk [vmem:[%s337 + $0xb0] sm:$0xff] %vm4279, 0.0
        %4303 = vst.msk [vmem:[%s337 + $0xb8] sm:$0xff] %vm4279, 0.0
        %4304 = vst.msk [vmem:[%s337 + $0xc0] sm:$0xff] %vm4279, 0.0
        %4305 = vst.msk [vmem:[%s337 + $0xc8] sm:$0xff] %vm4279, 0.0
        %4306 = vst.msk [vmem:[%s337 + $0xd0] sm:$0xff] %vm4279, 0.0
        %4307 = vst.msk [vmem:[%s337 + $0xd8] sm:$0xff] %vm4279, 0.0
        %4308 = vst.msk [vmem:[%s337 + $0xe0] sm:$0xff] %vm4279, 0.0
        %4309 = vst.msk [vmem:[%s337 + $0xe8] sm:$0xff] %vm4279, 0.0
        %4310 = vst.msk [vmem:[%s337 + $0xf0] sm:$0xff] %vm4279, 0.0
        %4311 = vst.msk [vmem:[%s337 + $0xf8] sm:$0xff] %vm4279, 0.0
        %s4312 = smul.u32 32, %s21
        %p4313 = scmp.lt.s32.totalorder %s4312, 63
        %s4314 = scalar_select %p4313, %s4312, 63
        %s4315 = smul.addr %s4314, 8
        %s4316 = scalar_lea.vmem %s8, %s4315
        // Predicated region
        $region61: #{tpu_custom_call.1} parent=51 // pred_check
          %p4317 = pneg %p212
        $region62: #{tpu_custom_call.1} parent=51 // pred_check_branch
          %4319 = sbr.rel (%p4317) target = $region64
        $region63: #{tpu_custom_call.1} parent=51 // pred_region
          %s4320 = smul.u32 32, %s21
        $region64: #{tpu_custom_call.1} parent=51 // pred_fallthru
          _
      $region52: #{tpu_custom_call.1} parent=5 // pred_fallthru
        _
      %p4321 = scmp.le.s32.totalorder 2, %s16
      // Predicated region
      $region65: #{tpu_custom_call.1} parent=5 // pred_check
        %p4322 = pneg %p4321
      $region66: #{tpu_custom_call.1} parent=5 // pred_check_branch
        %4324 = sbr.rel (%p4322) target = $region68
      $region67: #{tpu_custom_call.1} parent=5 // pred_region
        %s4325 = ssub.s32 %s16, 2
        // Predicated region
        $region69: #{tpu_custom_call.1} parent=67 // pred_check
          %p4326 = pneg %p218
        $region70: #{tpu_custom_call.1} parent=67 // pred_check_branch
          %4328 = sbr.rel (%p4326) target = $region72
        $region71: #{tpu_custom_call.1} parent=67 // pred_region
          %s4329 = smul.u32 32, %s22
          %p4330 = scmp.lt.s32.totalorder %s4329, 63
          %s4331 = scalar_select %p4330, %s4329, 63
          %s4332 = smul.addr %s4331, 8
          %s4333 = scalar_lea.vmem %s8, %s4332
        $region72: #{tpu_custom_call.1} parent=67 // pred_fallthru
          _
      $region68: #{tpu_custom_call.1} parent=5 // pred_fallthru
        _
    $region6: #{tpu_custom_call.1} parent=1 // loop_footer
      %s20 = sadd.s32 1, %s16
    $region7: #{tpu_custom_call.1} parent=1 // loop_footer_branch
      %15 = sbr.rel target = $region3
    $region8: #{tpu_custom_call.1} parent=1 // loop_exit
      _
    %4334 = vsyncpa [#allocation3], 1
    %s4335 = scalar_lea.sflag [#allocation3], 1
    %4336 = vsyncpa %s4335, 1
    %4337 = vsyncpa [#allocation5], 1

</llo_original>
